<compile_context>
chip_gen: v7x
topology: tpu7x:2x2x1
jax: 0.10.0
libtpu: 0.0.40
codegen_flags: <defaults>
</compile_context>

<pallas_src>
import jax
import jax.numpy as jnp
from jax import lax
from jax.experimental import pallas as pl
from jax.experimental.pallas import tpu as pltpu


def _conv3x3_im2col_kernel(x_ref, w_ref, o_ref, xpad_ref, slab_ref):
    """One (batch, h-tile) grid step of the 3x3 conv as im2col + big-K matmul.

    x_ref:    (1, H, W, Cin)       whole-image NHWC input (resident across h tiles)
    w_ref:    (9*Cin, Cout_p)      conv weights, rows ordered (dy*3+dx)*Cin + cin
    o_ref:    (1, Ht*W, Cout_p)    conv output rows of this h tile
    xpad_ref: (Ht+2, W+2, Cin)     scratch: per-tile zero-padded input (1-row halo)
    slab_ref: (nbuf, Hc, W, 9*Cin) scratch: per-chunk im2col slab (double-buffered)
    """
    H, W, Cin = x_ref.shape[1], x_ref.shape[2], x_ref.shape[3]
    Ht = xpad_ref.shape[0] - 2
    nbuf, Hc = slab_ref.shape[0], slab_ref.shape[1]
    n_chunks = Ht // Hc

    h_idx = pl.program_id(1)
    n_h = pl.num_programs(1)
    row0 = h_idx * Ht                       # first image row of this tile
    cdt = xpad_ref.dtype

    # ---- per-tile padded input: border-only zeroing + 1-row halo -----------
    zrow = jnp.zeros((1, W + 2, Cin), cdt)
    zcol = jnp.zeros((Ht + 2, 1, Cin), cdt)
    xpad_ref[:, 0:1, :] = zcol                        # left border column
    xpad_ref[:, W + 1:W + 2, :] = zcol                # right border column
    xpad_ref[0:1, :, :] = zrow                        # top halo (zero at image edge)
    xpad_ref[Ht + 1:Ht + 2, :, :] = zrow              # bottom halo (zero at image edge)
    xpad_ref[1:Ht + 1, 1:W + 1, :] = x_ref[0, pl.ds(row0, Ht)]

    @pl.when(h_idx > 0)
    def _():                                          # real neighbour row above
        xpad_ref[0:1, 1:W + 1, :] = x_ref[0, pl.ds(row0 - 1, 1)]

    @pl.when(h_idx < n_h - 1)
    def _():                                          # real neighbour row below
        xpad_ref[Ht + 1:Ht + 2, 1:W + 1, :] = x_ref[0, pl.ds(row0 + Ht, 1)]

    wmat = w_ref[...]                                 # hoisted out of the chunk loop

    # ---- im2col slab (3-D, no per-tap reshape) + M-chunked MXU matmul ------
    for c in range(n_chunks):
        s = c % nbuf
        r0 = c * Hc                                   # first tile-local output row
        for dy in range(3):
            for dx in range(3):
                tap = dy * 3 + dx
                slab_ref[s, :, :, tap * Cin:(tap + 1) * Cin] = (
                    xpad_ref[r0 + dy:r0 + dy + Hc, dx:dx + W, :])
        acc = jnp.dot(slab_ref[s].reshape(Hc * W, 9 * Cin), wmat,
                      preferred_element_type=jnp.float32)
        o_ref[0, r0 * W:(r0 + Hc) * W, :] = acc.astype(o_ref.dtype)


def _pick_h_tile(H):
    """Grid-level h-tile (rows per grid step); must divide H."""
    ht = min(H, 32)
    while H % ht:
        ht -= 1
    return ht


def _pick_h_chunk(Ht, W):
    """In-kernel M-chunk rows: aim for ~512 matmul rows per dot; divides Ht."""
    hc = max(1, min(Ht, 512 // max(W, 1)))
    while Ht % hc:
        hc -= 1
    return hc


def _vmem_limit_bytes():
    """Generation-aware scoped-VMEM limit (conservative on v7x / unknown)."""
    try:
        kind = jax.devices()[0].device_kind.lower()
    except Exception:
        kind = ""
    if "v5" in kind or "v6" in kind:
        return 100 * 1024 * 1024      # 128 MiB physical: keep big tiles buffered
    return 48 * 1024 * 1024           # v7x: 64 MiB physical -> leave headroom


def conv3x3_pallas(x_nhwc, w_flat, out_dtype):
    """x_nhwc: (B, H, W, Cin) unpadded, w_flat: (9*Cin, Cout_p) -> (B, H*W, Cout_p)."""
    B, H, W, Cin = x_nhwc.shape
    Cout_p = w_flat.shape[-1]
    compute_dtype = x_nhwc.dtype

    Ht = _pick_h_tile(H)
    Hc = _pick_h_chunk(Ht, W)
    n_h = H // Ht
    nbuf = 2 if (Ht // Hc) > 1 else 1

    return pl.pallas_call(
        _conv3x3_im2col_kernel,
        out_shape=jax.ShapeDtypeStruct((B, H * W, Cout_p), out_dtype),
        grid_spec=pltpu.PrefetchScalarGridSpec(
            num_scalar_prefetch=0,
            grid=(B, n_h),
            in_specs=[
                # Whole image per batch element; block index ignores the h axis
                # so the tile stays VMEM-resident across h tiles (no re-fetch).
                pl.BlockSpec((1, H, W, Cin), lambda b, h: (b, 0, 0, 0)),
                # Constant index_map -> weights stay VMEM-resident across grid.
                pl.BlockSpec((9 * Cin, Cout_p), lambda b, h: (0, 0)),
            ],
            out_specs=pl.BlockSpec((1, Ht * W, Cout_p), lambda b, h: (b, h, 0)),
            scratch_shapes=[
                pltpu.VMEM((Ht + 2, W + 2, Cin), compute_dtype),     # padded tile
                pltpu.VMEM((nbuf, Hc, W, 9 * Cin), compute_dtype),   # im2col slab
            ],
        ),
        compiler_params=pltpu.CompilerParams(
            # No state is carried across grid steps, so both axes are parallel
            # (lets v7x megacore split over batch and h tiles).
            dimension_semantics=("parallel", "parallel"),
            vmem_limit_bytes=_vmem_limit_bytes(),
        ),
    )(x_nhwc, w_flat)


def upsample_forward(x_nchw, w_oihw, compute_dtype=jnp.bfloat16):
    """Upsample.forward: Conv2d(nf, 2*nf, 3, pad=1, bias=False) + PixelShuffle(2).

    x_nchw: (B, nf, H, W);  w_oihw: (2*nf, nf, 3, 3)  (PyTorch layout).
    Returns (B, nf//2, 2H, 2W) in NCHW.
    """
    B, Cin, H, W = x_nchw.shape
    Cout = w_oihw.shape[0]            # 2 * nf
    r = 2
    Cp = Cout // (r * r)              # nf // 2
    out_dtype = x_nchw.dtype

    # Glue (one HBM pass): NCHW -> NHWC with cast to the compute dtype.
    # TODO(synk): if the producing layer can emit NHWC directly, drop this pass.
    x_nhwc = jnp.transpose(x_nchw, (0, 2, 3, 1)).astype(compute_dtype)

    # Weights: OIHW -> HWIO -> flat (9*Cin, Cout); row = (dy*3+dx)*Cin + cin,
    # matching the im2col slab column order.  Pad Cout to a multiple of 128 so
    # the kernel's output stores are lane-dense (no-op when Cout >= 128).
    w_flat = jnp.transpose(w_oihw, (2, 3, 1, 0)).reshape(9 * Cin, Cout)
    w_flat = w_flat.astype(compute_dtype)
    Cout_p = ((Cout + 127) // 128) * 128
    if Cout_p != Cout:
        w_flat = jnp.pad(w_flat, ((0, 0), (0, Cout_p - Cout)))

    # Hot path: conv as an H-tiled, M-chunked im2col matmul (padding fused).
    y = conv3x3_pallas(x_nhwc, w_flat, out_dtype)        # (B, H*W, Cout_p)

    # Glue (one HBM pass): drop Cout padding + PixelShuffle(2) + NHWC->NCHW,
    # all fused by XLA into a single transpose-copy.
    # out[b, c, 2h+i, 2w+j] = y[b, h*W+w, c*4 + i*2 + j]
    y = y.reshape(B, H, W, Cout_p)[..., :Cout]
    y = y.reshape(B, H, W, Cp, r, r)                     # (b, h, w, c, i, j)
    y = jnp.transpose(y, (0, 3, 1, 4, 2, 5))             # (b, c, h, i, w, j)
    return y.reshape(B, Cp, H * r, W * r)


def _pixel_shuffle_nchw(y_nchw, r):
    B, Crr, H, W = y_nchw.shape
    C = Crr // (r * r)
    y = y_nchw.reshape(B, C, r, r, H, W)
    y = jnp.transpose(y, (0, 1, 4, 2, 5, 3))
    return y.reshape(B, C, H * r, W * r)


def _reference_forward(x_nchw, w_oihw, compute_dtype=jnp.bfloat16):
    # Same numerics as the kernel path: bf16 operands, f32 accumulation.
    y = lax.conv_general_dilated(
        x_nchw.astype(compute_dtype), w_oihw.astype(compute_dtype),
        window_strides=(1, 1), padding=((1, 1), (1, 1)),
        dimension_numbers=("NCHW", "OIHW", "NCHW"),
        preferred_element_type=jnp.float32).astype(x_nchw.dtype)
    return _pixel_shuffle_nchw(y, 2)


if __name__ == "__main__":
    key = jax.random.PRNGKey(0)
    kx, kw = jax.random.split(key)

    B, n_feat, H, W = 2, 4, 16, 16
    x = jax.random.normal(kx, (B, n_feat, H, W), dtype=jnp.float32)
    # Conv2d(n_feat, 2*n_feat, 3, bias=False) weight, PyTorch OIHW layout.
    w = jax.random.normal(kw, (2 * n_feat, n_feat, 3, 3), dtype=jnp.float32) * 0.1

    fwd = jax.jit(upsample_forward)
    out = jax.block_until_ready(fwd(x, w))

    ref = jax.block_until_ready(_reference_forward(x, w))
    assert out.shape == (B, n_feat // 2, 2 * H, 2 * W), out.shape
    max_err = float(jnp.max(jnp.abs(out - ref)))
    assert jnp.allclose(out, ref, atol=1e-2, rtol=1e-2), f"mismatch, max_err={max_err}"

    print("KERNEL_OK")
</pallas_src>

<mosaic_0001>
module attributes {stable_mosaic.version = 11 : i64} {
  func.func @_conv3x3_im2col_kernel(%arg0: i32, %arg1: i32, %arg2: memref<1x16x16x4xbf16, #tpu.memory_space<vmem>>, %arg3: memref<36x128xbf16, #tpu.memory_space<vmem>>, %arg4: memref<1x256x128xf32, #tpu.memory_space<vmem>>, %arg5: memref<18x18x4xbf16, #tpu.memory_space<vmem>>, %arg6: memref<1x16x16x36xbf16, #tpu.memory_space<vmem>>) attributes {dimension_semantics = [#tpu.dimension_semantics<parallel>, #tpu.dimension_semantics<parallel>], iteration_bounds = array<i64: 2, 1>, scalar_prefetch = 0 : i64, scratch_operands = 2 : i64, tpu.core_type = #tpu.core_type<tc>, window_params = [{transform_indices = @transform_0, window_bounds = array<i64: 1, 16, 16, 4>}, {pipeline_mode = #tpu.pipeline_mode<synchronous>, transform_indices = @transform_1, window_bounds = array<i64: 36, 128>}, {transform_indices = @transform_2, window_bounds = array<i64: 1, 256, 128>}]} {
    %c16_i32 = arith.constant 16 : i32
    %0 = arith.muli %arg1, %c16_i32 : i32
    %cst = arith.constant 0.000000e+00 : bf16
    %1 = vector.broadcast %cst : bf16 to vector<1x18x4xbf16>
    %cst_0 = arith.constant 0.000000e+00 : bf16
    %2 = vector.broadcast %cst_0 : bf16 to vector<18x1x4xbf16>
    %c0 = arith.constant 0 : index
    %c0_1 = arith.constant 0 : index
    %c0_2 = arith.constant 0 : index
    %3 = vector.load %arg5[%c0, %c0_1, %c0_2] : memref<18x18x4xbf16, #tpu.memory_space<vmem>>, vector<18x1x4xbf16>
    tpu.vector_store %arg5[%c0, %c0_1, %c0_2], %2 {strides = array<i32>} : memref<18x18x4xbf16, #tpu.memory_space<vmem>>, vector<18x1x4xbf16>,
    %c0_3 = arith.constant 0 : index
    %c17 = arith.constant 17 : index
    %c0_4 = arith.constant 0 : index
    %4 = vector.load %arg5[%c0_3, %c17, %c0_4] : memref<18x18x4xbf16, #tpu.memory_space<vmem>>, vector<18x1x4xbf16>
    tpu.vector_store %arg5[%c0_3, %c17, %c0_4], %2 {strides = array<i32>} : memref<18x18x4xbf16, #tpu.memory_space<vmem>>, vector<18x1x4xbf16>,
    %c0_5 = arith.constant 0 : index
    %c0_6 = arith.constant 0 : index
    %c0_7 = arith.constant 0 : index
    %5 = vector.load %arg5[%c0_5, %c0_6, %c0_7] : memref<18x18x4xbf16, #tpu.memory_space<vmem>>, vector<1x18x4xbf16>
    tpu.vector_store %arg5[%c0_5, %c0_6, %c0_7], %1 {strides = array<i32>} : memref<18x18x4xbf16, #tpu.memory_space<vmem>>, vector<1x18x4xbf16>,
    %c17_8 = arith.constant 17 : index
    %c0_9 = arith.constant 0 : index
    %c0_10 = arith.constant 0 : index
    %6 = vector.load %arg5[%c17_8, %c0_9, %c0_10] : memref<18x18x4xbf16, #tpu.memory_space<vmem>>, vector<1x18x4xbf16>
    tpu.vector_store %arg5[%c17_8, %c0_9, %c0_10], %1 {strides = array<i32>} : memref<18x18x4xbf16, #tpu.memory_space<vmem>>, vector<1x18x4xbf16>,
    %c0_11 = arith.constant 0 : index
    %7 = arith.index_cast %0 : i32 to index
    %c0_12 = arith.constant 0 : index
    %c0_13 = arith.constant 0 : index
    %8 = vector.load %arg2[%c0_11, %7, %c0_12, %c0_13] : memref<1x16x16x4xbf16, #tpu.memory_space<vmem>>, vector<1x16x16x4xbf16>
    %9 = vector.shape_cast %8 : vector<1x16x16x4xbf16> to vector<16x16x4xbf16>
    %c1 = arith.constant 1 : index
    %c1_14 = arith.constant 1 : index
    %c0_15 = arith.constant 0 : index
    %10 = vector.load %arg5[%c1, %c1_14, %c0_15] : memref<18x18x4xbf16, #tpu.memory_space<vmem>>, vector<16x16x4xbf16>
    tpu.vector_store %arg5[%c1, %c1_14, %c0_15], %9 {strides = array<i32>} : memref<18x18x4xbf16, #tpu.memory_space<vmem>>, vector<16x16x4xbf16>,
    %c0_i32 = arith.constant 0 : i32
    %11 = arith.cmpi sgt, %arg1, %c0_i32 : i32
    %12 = arith.extui %11 : i1 to i32
    %c0_i32_16 = arith.constant 0 : i32
    %13 = arith.cmpi ne, %12, %c0_i32_16 : i32
    scf.if %13 {
      %c1_i32 = arith.constant 1 : i32
      %61 = arith.subi %0, %c1_i32 : i32
      %c0_83 = arith.constant 0 : index
      %62 = arith.index_cast %61 : i32 to index
      %c0_84 = arith.constant 0 : index
      %c0_85 = arith.constant 0 : index
      %63 = vector.load %arg2[%c0_83, %62, %c0_84, %c0_85] : memref<1x16x16x4xbf16, #tpu.memory_space<vmem>>, vector<1x1x16x4xbf16>
      %64 = vector.shape_cast %63 : vector<1x1x16x4xbf16> to vector<1x16x4xbf16>
      %c0_86 = arith.constant 0 : index
      %c1_87 = arith.constant 1 : index
      %c0_88 = arith.constant 0 : index
      %65 = vector.load %arg5[%c0_86, %c1_87, %c0_88] : memref<18x18x4xbf16, #tpu.memory_space<vmem>>, vector<1x16x4xbf16>
      tpu.vector_store %arg5[%c0_86, %c1_87, %c0_88], %64 {strides = array<i32>} : memref<18x18x4xbf16, #tpu.memory_space<vmem>>, vector<1x16x4xbf16>,
    } else {
    }
    %c0_i32_17 = arith.constant 0 : i32
    %14 = arith.cmpi slt, %arg1, %c0_i32_17 : i32
    %15 = arith.extui %14 : i1 to i32
    %c0_i32_18 = arith.constant 0 : i32
    %16 = arith.cmpi ne, %15, %c0_i32_18 : i32
    scf.if %16 {
      %c16_i32_83 = arith.constant 16 : i32
      %61 = arith.addi %0, %c16_i32_83 : i32
      %c0_84 = arith.constant 0 : index
      %62 = arith.index_cast %61 : i32 to index
      %c0_85 = arith.constant 0 : index
      %c0_86 = arith.constant 0 : index
      %63 = vector.load %arg2[%c0_84, %62, %c0_85, %c0_86] : memref<1x16x16x4xbf16, #tpu.memory_space<vmem>>, vector<1x1x16x4xbf16>
      %64 = vector.shape_cast %63 : vector<1x1x16x4xbf16> to vector<1x16x4xbf16>
      %c17_87 = arith.constant 17 : index
      %c1_88 = arith.constant 1 : index
      %c0_89 = arith.constant 0 : index
      %65 = vector.load %arg5[%c17_87, %c1_88, %c0_89] : memref<18x18x4xbf16, #tpu.memory_space<vmem>>, vector<1x16x4xbf16>
      tpu.vector_store %arg5[%c17_87, %c1_88, %c0_89], %64 {strides = array<i32>} : memref<18x18x4xbf16, #tpu.memory_space<vmem>>, vector<1x16x4xbf16>,
    } else {
    }
    %c0_19 = arith.constant 0 : index
    %c0_20 = arith.constant 0 : index
    %17 = vector.load %arg3[%c0_19, %c0_20] : memref<36x128xbf16, #tpu.memory_space<vmem>>, vector<36x128xbf16>
    %c0_21 = arith.constant 0 : index
    %c0_22 = arith.constant 0 : index
    %c0_23 = arith.constant 0 : index
    %18 = vector.load %arg5[%c0_21, %c0_22, %c0_23] : memref<18x18x4xbf16, #tpu.memory_space<vmem>>, vector<16x16x4xbf16>
    %c0_24 = arith.constant 0 : index
    %c0_25 = arith.constant 0 : index
    %c0_26 = arith.constant 0 : index
    %c0_27 = arith.constant 0 : index
    %19 = vector.load %arg6[%c0_24, %c0_25, %c0_26, %c0_27] : memref<1x16x16x36xbf16, #tpu.memory_space<vmem>>, vector<1x16x16x4xbf16>
    %20 = vector.shape_cast %19 : vector<1x16x16x4xbf16> to vector<16x16x4xbf16>
    %21 = vector.shape_cast %18 : vector<16x16x4xbf16> to vector<1x16x16x4xbf16>
    tpu.vector_store %arg6[%c0_24, %c0_25, %c0_26, %c0_27], %21 {strides = array<i32>} : memref<1x16x16x36xbf16, #tpu.memory_space<vmem>>, vector<1x16x16x4xbf16>,
    %c0_28 = arith.constant 0 : index
    %c1_29 = arith.constant 1 : index
    %c0_30 = arith.constant 0 : index
    %22 = vector.load %arg5[%c0_28, %c1_29, %c0_30] : memref<18x18x4xbf16, #tpu.memory_space<vmem>>, vector<16x16x4xbf16>
    %c0_31 = arith.constant 0 : index
    %c0_32 = arith.constant 0 : index
    %c0_33 = arith.constant 0 : index
    %c4 = arith.constant 4 : index
    %23 = vector.load %arg6[%c0_31, %c0_32, %c0_33, %c4] : memref<1x16x16x36xbf16, #tpu.memory_space<vmem>>, vector<1x16x16x4xbf16>
    %24 = vector.shape_cast %23 : vector<1x16x16x4xbf16> to vector<16x16x4xbf16>
    %25 = vector.shape_cast %22 : vector<16x16x4xbf16> to vector<1x16x16x4xbf16>
    tpu.vector_store %arg6[%c0_31, %c0_32, %c0_33, %c4], %25 {strides = array<i32>} : memref<1x16x16x36xbf16, #tpu.memory_space<vmem>>, vector<1x16x16x4xbf16>,
    %c0_34 = arith.constant 0 : index
    %c2 = arith.constant 2 : index
    %c0_35 = arith.constant 0 : index
    %26 = vector.load %arg5[%c0_34, %c2, %c0_35] : memref<18x18x4xbf16, #tpu.memory_space<vmem>>, vector<16x16x4xbf16>
    %c0_36 = arith.constant 0 : index
    %c0_37 = arith.constant 0 : index
    %c0_38 = arith.constant 0 : index
    %c8 = arith.constant 8 : index
    %27 = vector.load %arg6[%c0_36, %c0_37, %c0_38, %c8] : memref<1x16x16x36xbf16, #tpu.memory_space<vmem>>, vector<1x16x16x4xbf16>
    %28 = vector.shape_cast %27 : vector<1x16x16x4xbf16> to vector<16x16x4xbf16>
    %29 = vector.shape_cast %26 : vector<16x16x4xbf16> to vector<1x16x16x4xbf16>
    tpu.vector_store %arg6[%c0_36, %c0_37, %c0_38, %c8], %29 {strides = array<i32>} : memref<1x16x16x36xbf16, #tpu.memory_space<vmem>>, vector<1x16x16x4xbf16>,
    %c1_39 = arith.constant 1 : index
    %c0_40 = arith.constant 0 : index
    %c0_41 = arith.constant 0 : index
    %30 = vector.load %arg5[%c1_39, %c0_40, %c0_41] : memref<18x18x4xbf16, #tpu.memory_space<vmem>>, vector<16x16x4xbf16>
    %c0_42 = arith.constant 0 : index
    %c0_43 = arith.constant 0 : index
    %c0_44 = arith.constant 0 : index
    %c12 = arith.constant 12 : index
    %31 = vector.load %arg6[%c0_42, %c0_43, %c0_44, %c12] : memref<1x16x16x36xbf16, #tpu.memory_space<vmem>>, vector<1x16x16x4xbf16>
    %32 = vector.shape_cast %31 : vector<1x16x16x4xbf16> to vector<16x16x4xbf16>
    %33 = vector.shape_cast %30 : vector<16x16x4xbf16> to vector<1x16x16x4xbf16>
    tpu.vector_store %arg6[%c0_42, %c0_43, %c0_44, %c12], %33 {strides = array<i32>} : memref<1x16x16x36xbf16, #tpu.memory_space<vmem>>, vector<1x16x16x4xbf16>,
    %c1_45 = arith.constant 1 : index
    %c1_46 = arith.constant 1 : index
    %c0_47 = arith.constant 0 : index
    %34 = vector.load %arg5[%c1_45, %c1_46, %c0_47] : memref<18x18x4xbf16, #tpu.memory_space<vmem>>, vector<16x16x4xbf16>
    %c0_48 = arith.constant 0 : index
    %c0_49 = arith.constant 0 : index
    %c0_50 = arith.constant 0 : index
    %c16 = arith.constant 16 : index
    %35 = vector.load %arg6[%c0_48, %c0_49, %c0_50, %c16] : memref<1x16x16x36xbf16, #tpu.memory_space<vmem>>, vector<1x16x16x4xbf16>
    %36 = vector.shape_cast %35 : vector<1x16x16x4xbf16> to vector<16x16x4xbf16>
    %37 = vector.shape_cast %34 : vector<16x16x4xbf16> to vector<1x16x16x4xbf16>
    tpu.vector_store %arg6[%c0_48, %c0_49, %c0_50, %c16], %37 {strides = array<i32>} : memref<1x16x16x36xbf16, #tpu.memory_space<vmem>>, vector<1x16x16x4xbf16>,
    %c1_51 = arith.constant 1 : index
    %c2_52 = arith.constant 2 : index
    %c0_53 = arith.constant 0 : index
    %38 = vector.load %arg5[%c1_51, %c2_52, %c0_53] : memref<18x18x4xbf16, #tpu.memory_space<vmem>>, vector<16x16x4xbf16>
    %c0_54 = arith.constant 0 : index
    %c0_55 = arith.constant 0 : index
    %c0_56 = arith.constant 0 : index
    %c20 = arith.constant 20 : index
    %39 = vector.load %arg6[%c0_54, %c0_55, %c0_56, %c20] : memref<1x16x16x36xbf16, #tpu.memory_space<vmem>>, vector<1x16x16x4xbf16>
    %40 = vector.shape_cast %39 : vector<1x16x16x4xbf16> to vector<16x16x4xbf16>
    %41 = vector.shape_cast %38 : vector<16x16x4xbf16> to vector<1x16x16x4xbf16>
    tpu.vector_store %arg6[%c0_54, %c0_55, %c0_56, %c20], %41 {strides = array<i32>} : memref<1x16x16x36xbf16, #tpu.memory_space<vmem>>, vector<1x16x16x4xbf16>,
    %c2_57 = arith.constant 2 : index
    %c0_58 = arith.constant 0 : index
    %c0_59 = arith.constant 0 : index
    %42 = vector.load %arg5[%c2_57, %c0_58, %c0_59] : memref<18x18x4xbf16, #tpu.memory_space<vmem>>, vector<16x16x4xbf16>
    %c0_60 = arith.constant 0 : index
    %c0_61 = arith.constant 0 : index
    %c0_62 = arith.constant 0 : index
    %c24 = arith.constant 24 : index
    %43 = vector.load %arg6[%c0_60, %c0_61, %c0_62, %c24] : memref<1x16x16x36xbf16, #tpu.memory_space<vmem>>, vector<1x16x16x4xbf16>
    %44 = vector.shape_cast %43 : vector<1x16x16x4xbf16> to vector<16x16x4xbf16>
    %45 = vector.shape_cast %42 : vector<16x16x4xbf16> to vector<1x16x16x4xbf16>
    tpu.vector_store %arg6[%c0_60, %c0_61, %c0_62, %c24], %45 {strides = array<i32>} : memref<1x16x16x36xbf16, #tpu.memory_space<vmem>>, vector<1x16x16x4xbf16>,
    %c2_63 = arith.constant 2 : index
    %c1_64 = arith.constant 1 : index
    %c0_65 = arith.constant 0 : index
    %46 = vector.load %arg5[%c2_63, %c1_64, %c0_65] : memref<18x18x4xbf16, #tpu.memory_space<vmem>>, vector<16x16x4xbf16>
    %c0_66 = arith.constant 0 : index
    %c0_67 = arith.constant 0 : index
    %c0_68 = arith.constant 0 : index
    %c28 = arith.constant 28 : index
    %47 = vector.load %arg6[%c0_66, %c0_67, %c0_68, %c28] : memref<1x16x16x36xbf16, #tpu.memory_space<vmem>>, vector<1x16x16x4xbf16>
    %48 = vector.shape_cast %47 : vector<1x16x16x4xbf16> to vector<16x16x4xbf16>
    %49 = vector.shape_cast %46 : vector<16x16x4xbf16> to vector<1x16x16x4xbf16>
    tpu.vector_store %arg6[%c0_66, %c0_67, %c0_68, %c28], %49 {strides = array<i32>} : memref<1x16x16x36xbf16, #tpu.memory_space<vmem>>, vector<1x16x16x4xbf16>,
    %c2_69 = arith.constant 2 : index
    %c2_70 = arith.constant 2 : index
    %c0_71 = arith.constant 0 : index
    %50 = vector.load %arg5[%c2_69, %c2_70, %c0_71] : memref<18x18x4xbf16, #tpu.memory_space<vmem>>, vector<16x16x4xbf16>
    %c0_72 = arith.constant 0 : index
    %c0_73 = arith.constant 0 : index
    %c0_74 = arith.constant 0 : index
    %c32 = arith.constant 32 : index
    %51 = vector.load %arg6[%c0_72, %c0_73, %c0_74, %c32] : memref<1x16x16x36xbf16, #tpu.memory_space<vmem>>, vector<1x16x16x4xbf16>
    %52 = vector.shape_cast %51 : vector<1x16x16x4xbf16> to vector<16x16x4xbf16>
    %53 = vector.shape_cast %50 : vector<16x16x4xbf16> to vector<1x16x16x4xbf16>
    tpu.vector_store %arg6[%c0_72, %c0_73, %c0_74, %c32], %53 {strides = array<i32>} : memref<1x16x16x36xbf16, #tpu.memory_space<vmem>>, vector<1x16x16x4xbf16>,
    %c0_75 = arith.constant 0 : index
    %c0_76 = arith.constant 0 : index
    %c0_77 = arith.constant 0 : index
    %c0_78 = arith.constant 0 : index
    %54 = vector.load %arg6[%c0_75, %c0_76, %c0_77, %c0_78] : memref<1x16x16x36xbf16, #tpu.memory_space<vmem>>, vector<1x16x16x36xbf16>
    %55 = vector.shape_cast %54 : vector<1x16x16x36xbf16> to vector<16x16x36xbf16>
    %56 = vector.shape_cast %55 : vector<16x16x36xbf16> to vector<256x36xbf16>
    %cst_79 = arith.constant dense<0.000000e+00> : vector<256x128xf32>
    %57 = tpu.matmul %56, %17, %cst_79 {dimension_numbers = #tpu.dot_dimension_numbers<[1], [0], [0], [1], [0, 0, 1, 1], [], []>} : vector<256x36xbf16>, vector<36x128xbf16>, vector<256x128xf32> -> vector<256x128xf32>
    %c0_80 = arith.constant 0 : index
    %c0_81 = arith.constant 0 : index
    %c0_82 = arith.constant 0 : index
    %58 = vector.load %arg4[%c0_80, %c0_81, %c0_82] : memref<1x256x128xf32, #tpu.memory_space<vmem>>, vector<1x256x128xf32>
    %59 = vector.shape_cast %58 : vector<1x256x128xf32> to vector<256x128xf32>
    %60 = vector.shape_cast %57 : vector<256x128xf32> to vector<1x256x128xf32>
    tpu.vector_store %arg4[%c0_80, %c0_81, %c0_82], %60 {strides = array<i32>} : memref<1x256x128xf32, #tpu.memory_space<vmem>>, vector<1x256x128xf32>,
    return
  }
  func.func @transform_0(%arg0: i32, %arg1: i32) -> (i32, i32, i32, i32) {
    %c0_i32 = arith.constant 0 : i32
    %c0_i32_0 = arith.constant 0 : i32
    %c0_i32_1 = arith.constant 0 : i32
    %c0_i32_2 = arith.constant 0 : i32
    return %arg0, %c0_i32, %c0_i32_0, %c0_i32_1 : i32, i32, i32, i32
  }
  func.func @transform_1(%arg0: i32, %arg1: i32) -> (i32, i32) {
    %c0_i32 = arith.constant 0 : i32
    %c0_i32_0 = arith.constant 0 : i32
    %c0_i32_1 = arith.constant 0 : i32
    return %c0_i32, %c0_i32_0 : i32, i32
  }
  func.func @transform_2(%arg0: i32, %arg1: i32) -> (i32, i32, i32) {
    %c0_i32 = arith.constant 0 : i32
    %c0_i32_0 = arith.constant 0 : i32
    return %arg0, %arg1, %c0_i32 : i32, i32, i32
  }
}

</mosaic_0001>

<llo_original>
// kernel: upsample_forward.1
$region0: #{upsample_forward.1}
  #allocation0 [shape = 'u32[]', space=smem, size = 0x4, offset = 0x4, fixed_abs, tag = 'smem constant byte address 0x4 - core index']
  #allocation1 [shape = 'u32[144,128]{1,0:T(1,128)}', space=vmem, size = 0x12000, scoped, tag = 'internal scratch']
  #allocation2 [shape = 'bf16[18,18,4]{2,1,0:T(8,128)(2,1)}', space=vmem, size = 0x1b000, scoped, tag = 'scratch operand']
  #allocation3 [shape = 'bf16[1,16,16,36]{3,2,1,0:T(16,128)(2,1)}', space=vmem, size = 0x10000, scoped, tag = 'scratch operand']
  %s0 = inlined_call_operand.vmem [shape: bf16[2,16,16,4], index: 0, kind: input, shape index: {}]
  %s1 = inlined_call_operand.vmem [shape: bf16[36,128], index: 1, kind: input, shape index: {}]
  %s2 = inlined_call_operand.vmem [shape: f32[2,256,128], index: 2, kind: output, shape index: {}]
  %s3 = sld [smem:[#allocation0]]
  $region49: #{upsample_forward.1} parent=0
    _
  %s5 = ssub.s32 1, %s3
  %s6 = scalar_select 0, %s5, %s3
  loop: start=0, step=1, limit=4
  $region2: #{upsample_forward.1} parent=0 // loop_pre_header
    _
  $region3: #{upsample_forward.1} parent=0 // loop_header
    %s8 = sphi 0, %s12
    %p9 = scmp.ge.s32.totalorder %s8, 4
    %s15 = sphi 0, %s27
    %s16 = sphi 0, %s23
    %s17 = sphi 0, %s15
    %s18 = sphi 0, %s16
    %s19 = sphi 0, %s17
    %s20 = sphi 0, %s18
    %s30 = sphi 0, %s32
    %s33 = sphi 0, %s30
    %s34 = sphi 0, %s33
    %s50 = sphi 0, %s34
    %s54 = sphi 0, %s54
    %s56 = sphi 0, %s54
    %s57 = sphi 0, %s56
    %s71 = sphi 0, %s57
    %s79 = sphi 0, %s81
    %s82 = sphi 0, %s79
    %s83 = sphi 0, %s82
    %s99 = sphi 0, %s83
  $region4: #{upsample_forward.1} parent=0 // loop_header_branch
    %11 = sbr.rel (%p9) target = $region8
  $region5: #{upsample_forward.1} parent=0 // loop_body
    %s13 = ssub.s32 %s8, 1
    %s14 = ssub.s32 %s8, 2
    %s21 = sadd.s32 1, %s16
    %p22 = scmp.ge.s32.totalorder %s21, 1
    %s23 = scalar_select %p22, 0, %s21
    %s24 = sadd.s32 1, %s15
    %s25 = scalar_select %p22, %s24, %s15
    %p26 = scmp.ge.s32.totalorder %s25, 2
    %s27 = scalar_select %p26, 0, %s25
    %s28 = ssub.s32 %s15, %s27
    %p29 = scmp.eq.s32.totalorder %s28, 0
    %s31 = sadd.s32 %s30, 1
    %s32 = scalar_select %p29, %s30, %s31
    %p35 = pneg %p29
    %p36 = scmp.eq.s32.totalorder %s8, 1
    %p37 = por %p35, %p36
    %p38 = scmp.ne.s32.totalorder %s30, %s33
    %p39 = scmp.eq.s32.totalorder %s8, 0
    %p40 = por %p38, %p39
    %p41 = scmp.ne.s32.totalorder %s30, %s33
    %p42 = scmp.eq.s32.totalorder %s13, 1
    %p43 = por %p41, %p42
    %p44 = scmp.ne.s32.totalorder %s33, %s34
    %p45 = scmp.eq.s32.totalorder %s13, 0
    %p46 = por %p44, %p45
    %p47 = scmp.ne.s32.totalorder %s33, %s34
    %p48 = scmp.eq.s32.totalorder %s14, 1
    %p49 = por %p47, %p48
    %p51 = scmp.ne.s32.totalorder %s34, %s50
    %p52 = scmp.eq.s32.totalorder %s14, 0
    %p53 = por %p51, %p52
    %s55 = sadd.s32 %s54, 1
    %p58 = scmp.eq.s32.totalorder %s8, 1
    %p59 = scmp.ne.s32.totalorder %s54, %s56
    %p60 = scmp.eq.s32.totalorder %s8, 0
    %p61 = por %p59, %p60
    %p62 = scmp.ne.s32.totalorder %s54, %s56
    %p63 = scmp.eq.s32.totalorder %s13, 1
    %p64 = por %p62, %p63
    %p65 = scmp.ne.s32.totalorder %s56, %s57
    %p66 = scmp.eq.s32.totalorder %s13, 0
    %p67 = por %p65, %p66
    %p68 = scmp.ne.s32.totalorder %s56, %s57
    %p69 = scmp.eq.s32.totalorder %s14, 1
    %p70 = por %p68, %p69
    %p72 = scmp.ne.s32.totalorder %s57, %s71
    %p73 = scmp.eq.s32.totalorder %s14, 0
    %p74 = por %p72, %p73
    %s75 = ssub.s32 %s15, %s27
    %s76 = ssub.s32 %s16, %s23
    %s77 = sor.u32 %s75, %s76
    %p78 = scmp.eq.s32.totalorder %s77, 0
    %s80 = sadd.s32 %s79, 1
    %s81 = scalar_select %p78, %s79, %s80
    %p84 = pneg %p78
    %p85 = scmp.eq.s32.totalorder %s8, 1
    %p86 = por %p84, %p85
    %p87 = scmp.ne.s32.totalorder %s79, %s82
    %p88 = scmp.eq.s32.totalorder %s8, 0
    %p89 = por %p87, %p88
    %p90 = scmp.ne.s32.totalorder %s79, %s82
    %p91 = scmp.eq.s32.totalorder %s13, 1
    %p92 = por %p90, %p91
    %p93 = scmp.ne.s32.totalorder %s82, %s83
    %p94 = scmp.eq.s32.totalorder %s13, 0
    %p95 = por %p93, %p94
    %p96 = scmp.ne.s32.totalorder %s82, %s83
    %p97 = scmp.eq.s32.totalorder %s14, 1
    %p98 = por %p96, %p97
    %p100 = scmp.ne.s32.totalorder %s83, %s99
    %p101 = scmp.eq.s32.totalorder %s14, 0
    %p102 = por %p100, %p101
    %p103 = scmp.le.s32.totalorder 1, %s8
    %p104 = scmp.lt.s32.totalorder %s8, 3
    %p105 = pnand %p103, %p104
    %p106 = pneg %p105
    // Predicated region
    $region9: #{upsample_forward.1} parent=5 // pred_check
      _
    $region10: #{upsample_forward.1} parent=5 // pred_check_branch
      %108 = sbr.rel (%p105) target = $region12
    $region11: #{upsample_forward.1} parent=5 // pred_region
      %s109 = ssub.s32 %s8, 1
      // Predicated region
      $region13: #{upsample_forward.1} parent=11 // pred_check
        %p110 = pneg %p67
      $region14: #{upsample_forward.1} parent=11 // pred_check_branch
        %112 = sbr.rel (%p110) target = $region16
      $region15: #{upsample_forward.1} parent=11 // pred_region
        _
      $region16: #{upsample_forward.1} parent=11 // pred_fallthru
        _
    $region12: #{upsample_forward.1} parent=5 // pred_fallthru
      _
    %p113 = scmp.lt.s32.totalorder %s8, 2
    // Predicated region
    $region17: #{upsample_forward.1} parent=5 // pred_check
      %p114 = pneg %p113
    $region18: #{upsample_forward.1} parent=5 // pred_check_branch
      %116 = sbr.rel (%p114) target = $region20
    $region19: #{upsample_forward.1} parent=5 // pred_region
      // Predicated region
      $region21: #{upsample_forward.1} parent=19 // pred_check
        %p117 = pneg %p40
      $region22: #{upsample_forward.1} parent=19 // pred_check_branch
        %119 = sbr.rel (%p117) target = $region24
      $region23: #{upsample_forward.1} parent=19 // pred_region
        %p120 = scmp.lt.s32.totalorder %s15, 1
        %s121 = scalar_select %p120, %s15, 1
        %s122 = smul.addr %s121, 32
        %s123 = smul.addr %s122, 4
        %s124 = scalar_lea.vmem %s0, %s123
      $region24: #{upsample_forward.1} parent=19 // pred_fallthru
        _
    $region20: #{upsample_forward.1} parent=5 // pred_fallthru
      _
    %p125 = scmp.le.s32.totalorder 1, %s8
    %p126 = scmp.lt.s32.totalorder %s8, 3
    %p127 = pnand %p125, %p126
    %p128 = pneg %p127
    // Predicated region
    $region25: #{upsample_forward.1} parent=5 // pred_check
      _
    $region26: #{upsample_forward.1} parent=5 // pred_check_branch
      %130 = sbr.rel (%p127) target = $region28
    $region27: #{upsample_forward.1} parent=5 // pred_region
      %s131 = ssub.s32 %s8, 1
      %p132 = scmp.lt.s32.totalorder %s17, 1
      %s133 = scalar_select %p132, %s17, 1
      %s134 = smul.addr %s133, 32
      %s135 = smul.addr %s134, 4
      %s136 = scalar_lea.vmem %s0, %s135
      %p137 = pneg %p46
      %p138 = pneg %p43
      %p139 = pneg %p67
      %p140 = pneg %p64
      %p141 = pneg %p95
      %p142 = pneg %p92
      %s143 = smul.u32 32, %s18
      %p144 = scmp.lt.s32.totalorder %s17, 1
      %s145 = scalar_select %p144, %s17, 1
      %p146 = scmp.lt.s32.totalorder %s143, 31
      %s147 = scalar_select %p146, %s143, 31
      %s148 = smul.addr %s145, 32
      %s149 = sadd.s32 %s147, %s148
      %s150 = smul.addr %s149, 8
      %s151 = scalar_lea.vmem %s2, %s150
      %p152 = scmp.lt.s32.totalorder %s17, 1
      %s153 = scalar_select %p152, %s17, 1
      %s154 = smul.addr %s153, 32
      %s155 = smul.addr %s154, 4
      %s156 = scalar_lea.vmem %s0, %s155
      %s157 = smul.u32 32, %s18
      %p158 = scmp.lt.s32.totalorder %s17, 1
      %s159 = scalar_select %p158, %s17, 1
      %p160 = scmp.lt.s32.totalorder %s157, 31
      %s161 = scalar_select %p160, %s157, 31
      %s162 = smul.addr %s159, 32
      %s163 = sadd.s32 %s161, %s162
      %s164 = smul.addr %s163, 8
      %s165 = scalar_lea.vmem %s2, %s164
      %s166 = smul.u32 32, %s18
      %s168 = smul.u32 %s18, 16
      %vm169 = vcmask 24576
      %vm170 = vsmask.f32 256
      %vm171 = vmand %vm169, %vm170
      %v172 = vld [vmem:[#allocation2] sm:$0x1]
      %v173 = vsel %vm171, 0, %v172
      %174 = vst [vmem:[#allocation2] sm:$0x1] %v173
      %v175 = vld [vmem:[#allocation2 + $0xc] sm:$0x1]
      %v176 = vsel %vm171, 0, %v175
      %177 = vst [vmem:[#allocation2 + $0xc] sm:$0x1] %v176
      %v178 = vld [vmem:[#allocation2 + $0x18] sm:$0x1]
      %v179 = vsel %vm171, 0, %v178
      %180 = vst [vmem:[#allocation2 + $0x18] sm:$0x1] %v179
      %v181 = vld [vmem:[#allocation2 + $0x24] sm:$0x1]
      %v182 = vsel %vm171, 0, %v181
      %183 = vst [vmem:[#allocation2 + $0x24] sm:$0x1] %v182
      %v184 = vld [vmem:[#allocation2 + $0x30] sm:$0x1]
      %v185 = vsel %vm171, 0, %v184
      %186 = vst [vmem:[#allocation2 + $0x30] sm:$0x1] %v185
      %v187 = vld [vmem:[#allocation2 + $0x3c] sm:$0x1]
      %v188 = vsel %vm171, 0, %v187
      %189 = vst [vmem:[#allocation2 + $0x3c] sm:$0x1] %v188
      %v190 = vld [vmem:[#allocation2 + $0x48] sm:$0x1]
      %v191 = vsel %vm171, 0, %v190
      %192 = vst [vmem:[#allocation2 + $0x48] sm:$0x1] %v191
      %v193 = vld [vmem:[#allocation2 + $0x54] sm:$0x1]
      %v194 = vsel %vm171, 0, %v193
      %195 = vst [vmem:[#allocation2 + $0x54] sm:$0x1] %v194
      %v196 = vld [vmem:[#allocation2 + $0x60] sm:$0x1]
      %v197 = vsel %vm171, 0, %v196
      %198 = vst [vmem:[#allocation2 + $0x60] sm:$0x1] %v197
      %v199 = vld [vmem:[#allocation2 + $0x6c] sm:$0x1]
      %v200 = vsel %vm171, 0, %v199
      %201 = vst [vmem:[#allocation2 + $0x6c] sm:$0x1] %v200
      %v202 = vld [vmem:[#allocation2 + $0x78] sm:$0x1]
      %v203 = vsel %vm171, 0, %v202
      %204 = vst [vmem:[#allocation2 + $0x78] sm:$0x1] %v203
      %v205 = vld [vmem:[#allocation2 + $0x84] sm:$0x1]
      %v206 = vsel %vm171, 0, %v205
      %207 = vst [vmem:[#allocation2 + $0x84] sm:$0x1] %v206
      %v208 = vld [vmem:[#allocation2 + $0x90] sm:$0x1]
      %v209 = vsel %vm171, 0, %v208
      %210 = vst [vmem:[#allocation2 + $0x90] sm:$0x1] %v209
      %v211 = vld [vmem:[#allocation2 + $0x9c] sm:$0x1]
      %v212 = vsel %vm171, 0, %v211
      %213 = vst [vmem:[#allocation2 + $0x9c] sm:$0x1] %v212
      %v214 = vld [vmem:[#allocation2 + $0xa8] sm:$0x1]
      %v215 = vsel %vm171, 0, %v214
      %216 = vst [vmem:[#allocation2 + $0xa8] sm:$0x1] %v215
      %v217 = vld [vmem:[#allocation2 + $0xb4] sm:$0x1]
      %v218 = vsel %vm171, 0, %v217
      %219 = vst [vmem:[#allocation2 + $0xb4] sm:$0x1] %v218
      %v220 = vld [vmem:[#allocation2 + $0xc0] sm:$0x1]
      %v221 = vsel %vm171, 0, %v220
      %222 = vst [vmem:[#allocation2 + $0xc0] sm:$0x1] %v221
      %v223 = vld [vmem:[#allocation2 + $0xcc] sm:$0x1]
      %v224 = vsel %vm171, 0, %v223
      %225 = vst [vmem:[#allocation2 + $0xcc] sm:$0x1] %v224
      %vm226 = vsmask.f32 7938
      %vm227 = vmand %vm169, %vm226
      %v228 = vld [vmem:[#allocation2 + $0x8] sm:$0x1]
      %v229 = vsel %vm227, 0, %v228
      %230 = vst [vmem:[#allocation2 + $0x8] sm:$0x1] %v229
      %v231 = vld [vmem:[#allocation2 + $0x14] sm:$0x1]
      %v232 = vsel %vm227, 0, %v231
      %233 = vst [vmem:[#allocation2 + $0x14] sm:$0x1] %v232
      %v234 = vld [vmem:[#allocation2 + $0x20] sm:$0x1]
      %v235 = vsel %vm227, 0, %v234
      %236 = vst [vmem:[#allocation2 + $0x20] sm:$0x1] %v235
      %v237 = vld [vmem:[#allocation2 + $0x2c] sm:$0x1]
      %v238 = vsel %vm227, 0, %v237
      %239 = vst [vmem:[#allocation2 + $0x2c] sm:$0x1] %v238
      %v240 = vld [vmem:[#allocation2 + $0x38] sm:$0x1]
      %v241 = vsel %vm227, 0, %v240
      %242 = vst [vmem:[#allocation2 + $0x38] sm:$0x1] %v241
      %v243 = vld [vmem:[#allocation2 + $0x44] sm:$0x1]
      %v244 = vsel %vm227, 0, %v243
      %245 = vst [vmem:[#allocation2 + $0x44] sm:$0x1] %v244
      %v246 = vld [vmem:[#allocation2 + $0x50] sm:$0x1]
      %v247 = vsel %vm227, 0, %v246
      %248 = vst [vmem:[#allocation2 + $0x50] sm:$0x1] %v247
      %v249 = vld [vmem:[#allocation2 + $0x5c] sm:$0x1]
      %v250 = vsel %vm227, 0, %v249
      %251 = vst [vmem:[#allocation2 + $0x5c] sm:$0x1] %v250
      %v252 = vld [vmem:[#allocation2 + $0x68] sm:$0x1]
      %v253 = vsel %vm227, 0, %v252
      %254 = vst [vmem:[#allocation2 + $0x68] sm:$0x1] %v253
      %v255 = vld [vmem:[#allocation2 + $0x74] sm:$0x1]
      %v256 = vsel %vm227, 0, %v255
      %257 = vst [vmem:[#allocation2 + $0x74] sm:$0x1] %v256
      %v258 = vld [vmem:[#allocation2 + $0x80] sm:$0x1]
      %v259 = vsel %vm227, 0, %v258
      %260 = vst [vmem:[#allocation2 + $0x80] sm:$0x1] %v259
      %v261 = vld [vmem:[#allocation2 + $0x8c] sm:$0x1]
      %v262 = vsel %vm227, 0, %v261
      %263 = vst [vmem:[#allocation2 + $0x8c] sm:$0x1] %v262
      %v264 = vld [vmem:[#allocation2 + $0x98] sm:$0x1]
      %v265 = vsel %vm227, 0, %v264
      %266 = vst [vmem:[#allocation2 + $0x98] sm:$0x1] %v265
      %v267 = vld [vmem:[#allocation2 + $0xa4] sm:$0x1]
      %v268 = vsel %vm227, 0, %v267
      %269 = vst [vmem:[#allocation2 + $0xa4] sm:$0x1] %v268
      %v270 = vld [vmem:[#allocation2 + $0xb0] sm:$0x1]
      %v271 = vsel %vm227, 0, %v270
      %272 = vst [vmem:[#allocation2 + $0xb0] sm:$0x1] %v271
      %v273 = vld [vmem:[#allocation2 + $0xbc] sm:$0x1]
      %v274 = vsel %vm227, 0, %v273
      %275 = vst [vmem:[#allocation2 + $0xbc] sm:$0x1] %v274
      %v276 = vld [vmem:[#allocation2 + $0xc8] sm:$0x1]
      %v277 = vsel %vm227, 0, %v276
      %278 = vst [vmem:[#allocation2 + $0xc8] sm:$0x1] %v277
      %v279 = vld [vmem:[#allocation2 + $0xd4] sm:$0x1]
      %v280 = vsel %vm227, 0, %v279
      %281 = vst [vmem:[#allocation2 + $0xd4] sm:$0x1] %v280
      %vm282 = vcmask 27648
      %283 = vst.msk [vmem:[#allocation2] sm:$0xf] %vm282, 0
      %284 = vst.msk [vmem:[#allocation2 + $0x4] sm:$0xf] %vm282, 0
      %vm285 = vcmask 24576
      %286 = vst.msk [vmem:[#allocation2 + $0x8] sm:$0x1] %vm285, 0
      %s287 = scalar_lea.vmem [#allocation2], 204
      %288 = vst.msk [vmem:[%s287] sm:$0xf] %vm282, 0
      %289 = vst.msk [vmem:[%s287 + $0x4] sm:$0xf] %vm282, 0
      %290 = vst.msk [vmem:[%s287 + $0x8] sm:$0x1] %vm285, 0
      %s291 = smul.u32 %s168, 2
      %s292 = smul.addr %s291, 4
      %s293 = scalar_lea.vmem %s156, %s292
      %v294 = vld [vmem:[%s293] sm:$0xf]
      %v295 = vld [vmem:[%s293 + $0x4] sm:$0xf]
      %v296 = vld [vmem:[%s293 + $0x8] sm:$0xf]
      %v297 = vld [vmem:[%s293 + $0xc] sm:$0xf]
      %v298 = vld [vmem:[%s293 + $0x10] sm:$0xf]
      %v299 = vld [vmem:[%s293 + $0x14] sm:$0xf]
      %v300 = vld [vmem:[%s293 + $0x18] sm:$0xf]
      %v301 = vld [vmem:[%s293 + $0x1c] sm:$0xf]
      %v302 = vld [vmem:[%s293 + $0x20] sm:$0xf]
      %v303 = vld [vmem:[%s293 + $0x24] sm:$0xf]
      %v304 = vld [vmem:[%s293 + $0x28] sm:$0xf]
      %v305 = vld [vmem:[%s293 + $0x2c] sm:$0xf]
      %v306 = vld [vmem:[%s293 + $0x30] sm:$0xf]
      %v307 = vld [vmem:[%s293 + $0x34] sm:$0xf]
      %v308 = vld [vmem:[%s293 + $0x38] sm:$0xf]
      %v309 = vld [vmem:[%s293 + $0x3c] sm:$0xf]
      %v310 = vld [vmem:[%s293 + $0x40] sm:$0xf]
      %v311 = vld [vmem:[%s293 + $0x44] sm:$0xf]
      %v312 = vld [vmem:[%s293 + $0x48] sm:$0xf]
      %v313 = vld [vmem:[%s293 + $0x4c] sm:$0xf]
      %v314 = vld [vmem:[%s293 + $0x50] sm:$0xf]
      %v315 = vld [vmem:[%s293 + $0x54] sm:$0xf]
      %v316 = vld [vmem:[%s293 + $0x58] sm:$0xf]
      %v317 = vld [vmem:[%s293 + $0x5c] sm:$0xf]
      %v318 = vld [vmem:[%s293 + $0x60] sm:$0xf]
      %v319 = vld [vmem:[%s293 + $0x64] sm:$0xf]
      %v320 = vld [vmem:[%s293 + $0x68] sm:$0xf]
      %v321 = vld [vmem:[%s293 + $0x6c] sm:$0xf]
      %v322 = vld [vmem:[%s293 + $0x70] sm:$0xf]
      %v323 = vld [vmem:[%s293 + $0x74] sm:$0xf]
      %v324 = vld [vmem:[%s293 + $0x78] sm:$0xf]
      %v325 = vld [vmem:[%s293 + $0x7c] sm:$0xf]
      %vm326 = vsmask.f32 4368
      %vm327 = vmor %vm170, %vm326
      %v329 = vshrl.u32 %v294, 16
      %v331 = vrot.slane %v329, 7
      %v332 = vshll.u32 %v294, 16
      %v334 = vor.u32 %v331, %v332
      %v335 = vrot.slane %v331, 4
      %v337 = vshrl.u32 %v295, 16
      %v339 = vrot.slane %v337, 7
      %v340 = vshll.u32 %v295, 16
      %v342 = vor.u32 %v339, %v340
      %v343 = vsel %vm327, %v335, %v342
      %v344 = vrot.slane %v339, 4
      %v346 = vshrl.u32 %v296, 16
      %v348 = vrot.slane %v346, 7
      %v349 = vshll.u32 %v296, 16
      %v351 = vor.u32 %v348, %v349
      %v352 = vrot.slane %v348, 4
      %v354 = vshrl.u32 %v297, 16
      %v356 = vrot.slane %v354, 7
      %v357 = vshll.u32 %v297, 16
      %v359 = vor.u32 %v356, %v357
      %v360 = vsel %vm327, %v352, %v359
      %v361 = vrot.slane %v356, 4
      %v363 = vshrl.u32 %v298, 16
      %v365 = vrot.slane %v363, 7
      %v366 = vshll.u32 %v298, 16
      %v368 = vor.u32 %v365, %v366
      %v369 = vrot.slane %v365, 4
      %v371 = vshrl.u32 %v299, 16
      %v373 = vrot.slane %v371, 7
      %v374 = vshll.u32 %v299, 16
      %v376 = vor.u32 %v373, %v374
      %v377 = vsel %vm327, %v369, %v376
      %v378 = vrot.slane %v373, 4
      %v380 = vshrl.u32 %v300, 16
      %v382 = vrot.slane %v380, 7
      %v383 = vshll.u32 %v300, 16
      %v385 = vor.u32 %v382, %v383
      %v386 = vrot.slane %v382, 4
      %v388 = vshrl.u32 %v301, 16
      %v390 = vrot.slane %v388, 7
      %v391 = vshll.u32 %v301, 16
      %v393 = vor.u32 %v390, %v391
      %v394 = vsel %vm327, %v386, %v393
      %v395 = vrot.slane %v390, 4
      %v397 = vshrl.u32 %v302, 16
      %v399 = vrot.slane %v397, 7
      %v400 = vshll.u32 %v302, 16
      %v402 = vor.u32 %v399, %v400
      %v403 = vrot.slane %v399, 4
      %v405 = vshrl.u32 %v303, 16
      %v407 = vrot.slane %v405, 7
      %v408 = vshll.u32 %v303, 16
      %v410 = vor.u32 %v407, %v408
      %v411 = vsel %vm327, %v403, %v410
      %v412 = vrot.slane %v407, 4
      %v414 = vshrl.u32 %v304, 16
      %v416 = vrot.slane %v414, 7
      %v417 = vshll.u32 %v304, 16
      %v419 = vor.u32 %v416, %v417
      %v420 = vrot.slane %v416, 4
      %v422 = vshrl.u32 %v305, 16
      %v424 = vrot.slane %v422, 7
      %v425 = vshll.u32 %v305, 16
      %v427 = vor.u32 %v424, %v425
      %v428 = vsel %vm327, %v420, %v427
      %v429 = vrot.slane %v424, 4
      %v431 = vshrl.u32 %v306, 16
      %v433 = vrot.slane %v431, 7
      %v434 = vshll.u32 %v306, 16
      %v436 = vor.u32 %v433, %v434
      %v437 = vrot.slane %v433, 4
      %v439 = vshrl.u32 %v307, 16
      %v441 = vrot.slane %v439, 7
      %v442 = vshll.u32 %v307, 16
      %v444 = vor.u32 %v441, %v442
      %v445 = vsel %vm327, %v437, %v444
      %v446 = vrot.slane %v441, 4
      %v448 = vshrl.u32 %v308, 16
      %v450 = vrot.slane %v448, 7
      %v451 = vshll.u32 %v308, 16
      %v453 = vor.u32 %v450, %v451
      %v454 = vrot.slane %v450, 4
      %v456 = vshrl.u32 %v309, 16
      %v458 = vrot.slane %v456, 7
      %v459 = vshll.u32 %v309, 16
      %v461 = vor.u32 %v458, %v459
      %v462 = vsel %vm327, %v454, %v461
      %v463 = vrot.slane %v458, 4
      %v465 = vshrl.u32 %v310, 16
      %v467 = vrot.slane %v465, 7
      %v468 = vshll.u32 %v310, 16
      %v470 = vor.u32 %v467, %v468
      %v471 = vrot.slane %v467, 4
      %v473 = vshrl.u32 %v311, 16
      %v475 = vrot.slane %v473, 7
      %v476 = vshll.u32 %v311, 16
      %v478 = vor.u32 %v475, %v476
      %v479 = vsel %vm327, %v471, %v478
      %v480 = vrot.slane %v475, 4
      %v482 = vshrl.u32 %v312, 16
      %v484 = vrot.slane %v482, 7
      %v485 = vshll.u32 %v312, 16
      %v487 = vor.u32 %v484, %v485
      %v488 = vrot.slane %v484, 4
      %v490 = vshrl.u32 %v313, 16
      %v492 = vrot.slane %v490, 7
      %v493 = vshll.u32 %v313, 16
      %v495 = vor.u32 %v492, %v493
      %v496 = vsel %vm327, %v488, %v495
      %v497 = vrot.slane %v492, 4
      %v499 = vshrl.u32 %v314, 16
      %v501 = vrot.slane %v499, 7
      %v502 = vshll.u32 %v314, 16
      %v504 = vor.u32 %v501, %v502
      %v505 = vrot.slane %v501, 4
      %v507 = vshrl.u32 %v315, 16
      %v509 = vrot.slane %v507, 7
      %v510 = vshll.u32 %v315, 16
      %v512 = vor.u32 %v509, %v510
      %v513 = vsel %vm327, %v505, %v512
      %v514 = vrot.slane %v509, 4
      %v516 = vshrl.u32 %v316, 16
      %v518 = vrot.slane %v516, 7
      %v519 = vshll.u32 %v316, 16
      %v521 = vor.u32 %v518, %v519
      %v522 = vrot.slane %v518, 4
      %v524 = vshrl.u32 %v317, 16
      %v526 = vrot.slane %v524, 7
      %v527 = vshll.u32 %v317, 16
      %v529 = vor.u32 %v526, %v527
      %v530 = vsel %vm327, %v522, %v529
      %v531 = vrot.slane %v526, 4
      %v533 = vshrl.u32 %v318, 16
      %v535 = vrot.slane %v533, 7
      %v536 = vshll.u32 %v318, 16
      %v538 = vor.u32 %v535, %v536
      %v539 = vrot.slane %v535, 4
      %v541 = vshrl.u32 %v319, 16
      %v543 = vrot.slane %v541, 7
      %v544 = vshll.u32 %v319, 16
      %v546 = vor.u32 %v543, %v544
      %v547 = vsel %vm327, %v539, %v546
      %v548 = vrot.slane %v543, 4
      %v550 = vshrl.u32 %v320, 16
      %v552 = vrot.slane %v550, 7
      %v553 = vshll.u32 %v320, 16
      %v555 = vor.u32 %v552, %v553
      %v556 = vrot.slane %v552, 4
      %v558 = vshrl.u32 %v321, 16
      %v560 = vrot.slane %v558, 7
      %v561 = vshll.u32 %v321, 16
      %v563 = vor.u32 %v560, %v561
      %v564 = vsel %vm327, %v556, %v563
      %v565 = vrot.slane %v560, 4
      %v567 = vshrl.u32 %v322, 16
      %v569 = vrot.slane %v567, 7
      %v570 = vshll.u32 %v322, 16
      %v572 = vor.u32 %v569, %v570
      %v573 = vrot.slane %v569, 4
      %v575 = vshrl.u32 %v323, 16
      %v577 = vrot.slane %v575, 7
      %v578 = vshll.u32 %v323, 16
      %v580 = vor.u32 %v577, %v578
      %v581 = vsel %vm327, %v573, %v580
      %v582 = vrot.slane %v577, 4
      %v584 = vshrl.u32 %v324, 16
      %v586 = vrot.slane %v584, 7
      %v587 = vshll.u32 %v324, 16
      %v589 = vor.u32 %v586, %v587
      %v590 = vrot.slane %v586, 4
      %v592 = vshrl.u32 %v325, 16
      %v594 = vrot.slane %v592, 7
      %v595 = vshll.u32 %v325, 16
      %v597 = vor.u32 %v594, %v595
      %v598 = vsel %vm327, %v590, %v597
      %v599 = vrot.slane %v594, 4
      %s648 = scalar_lea.vmem [#allocation2], 12
      %vm649 = vcmask 27648
      %vm650 = vmand %vm649, %vm226
      %v651 = vld [vmem:[%s648] sm:$0xf]
      %v652 = vsel %vm650, %v334, %v651
      %653 = vst [vmem:[%s648] sm:$0xf] %v652
      %654 = vst.msk [vmem:[%s648 + $0x4] sm:$0xf] %vm282, %v343
      %v655 = vld [vmem:[%s648 + $0x8] sm:$0x1]
      %v656 = vsel %vm171, %v344, %v655
      %657 = vst [vmem:[%s648 + $0x8] sm:$0x1] %v656
      %v658 = vld [vmem:[%s648 + $0xc] sm:$0xf]
      %v659 = vsel %vm650, %v351, %v658
      %660 = vst [vmem:[%s648 + $0xc] sm:$0xf] %v659
      %661 = vst.msk [vmem:[%s648 + $0x10] sm:$0xf] %vm282, %v360
      %v662 = vld [vmem:[%s648 + $0x14] sm:$0x1]
      %v663 = vsel %vm171, %v361, %v662
      %664 = vst [vmem:[%s648 + $0x14] sm:$0x1] %v663
      %v665 = vld [vmem:[%s648 + $0x18] sm:$0xf]
      %v666 = vsel %vm650, %v368, %v665
      %667 = vst [vmem:[%s648 + $0x18] sm:$0xf] %v666
      %668 = vst.msk [vmem:[%s648 + $0x1c] sm:$0xf] %vm282, %v377
      %v669 = vld [vmem:[%s648 + $0x20] sm:$0x1]
      %v670 = vsel %vm171, %v378, %v669
      %671 = vst [vmem:[%s648 + $0x20] sm:$0x1] %v670
      %v672 = vld [vmem:[%s648 + $0x24] sm:$0xf]
      %v673 = vsel %vm650, %v385, %v672
      %674 = vst [vmem:[%s648 + $0x24] sm:$0xf] %v673
      %675 = vst.msk [vmem:[%s648 + $0x28] sm:$0xf] %vm282, %v394
      %v676 = vld [vmem:[%s648 + $0x2c] sm:$0x1]
      %v677 = vsel %vm171, %v395, %v676
      %678 = vst [vmem:[%s648 + $0x2c] sm:$0x1] %v677
      %v679 = vld [vmem:[%s648 + $0x30] sm:$0xf]
      %v680 = vsel %vm650, %v402, %v679
      %681 = vst [vmem:[%s648 + $0x30] sm:$0xf] %v680
      %682 = vst.msk [vmem:[%s648 + $0x34] sm:$0xf] %vm282, %v411
      %v683 = vld [vmem:[%s648 + $0x38] sm:$0x1]
      %v684 = vsel %vm171, %v412, %v683
      %685 = vst [vmem:[%s648 + $0x38] sm:$0x1] %v684
      %v686 = vld [vmem:[%s648 + $0x3c] sm:$0xf]
      %v687 = vsel %vm650, %v419, %v686
      %688 = vst [vmem:[%s648 + $0x3c] sm:$0xf] %v687
      %689 = vst.msk [vmem:[%s648 + $0x40] sm:$0xf] %vm282, %v428
      %v690 = vld [vmem:[%s648 + $0x44] sm:$0x1]
      %v691 = vsel %vm171, %v429, %v690
      %692 = vst [vmem:[%s648 + $0x44] sm:$0x1] %v691
      %v693 = vld [vmem:[%s648 + $0x48] sm:$0xf]
      %v694 = vsel %vm650, %v436, %v693
      %695 = vst [vmem:[%s648 + $0x48] sm:$0xf] %v694
      %696 = vst.msk [vmem:[%s648 + $0x4c] sm:$0xf] %vm282, %v445
      %v697 = vld [vmem:[%s648 + $0x50] sm:$0x1]
      %v698 = vsel %vm171, %v446, %v697
      %699 = vst [vmem:[%s648 + $0x50] sm:$0x1] %v698
      %v700 = vld [vmem:[%s648 + $0x54] sm:$0xf]
      %v701 = vsel %vm650, %v453, %v700
      %702 = vst [vmem:[%s648 + $0x54] sm:$0xf] %v701
      %703 = vst.msk [vmem:[%s648 + $0x58] sm:$0xf] %vm282, %v462
      %v704 = vld [vmem:[%s648 + $0x5c] sm:$0x1]
      %v705 = vsel %vm171, %v463, %v704
      %706 = vst [vmem:[%s648 + $0x5c] sm:$0x1] %v705
      %v707 = vld [vmem:[%s648 + $0x60] sm:$0xf]
      %v708 = vsel %vm650, %v470, %v707
      %709 = vst [vmem:[%s648 + $0x60] sm:$0xf] %v708
      %710 = vst.msk [vmem:[%s648 + $0x64] sm:$0xf] %vm282, %v479
      %v711 = vld [vmem:[%s648 + $0x68] sm:$0x1]
      %v712 = vsel %vm171, %v480, %v711
      %713 = vst [vmem:[%s648 + $0x68] sm:$0x1] %v712
      %v714 = vld [vmem:[%s648 + $0x6c] sm:$0xf]
      %v715 = vsel %vm650, %v487, %v714
      %716 = vst [vmem:[%s648 + $0x6c] sm:$0xf] %v715
      %717 = vst.msk [vmem:[%s648 + $0x70] sm:$0xf] %vm282, %v496
      %v718 = vld [vmem:[%s648 + $0x74] sm:$0x1]
      %v719 = vsel %vm171, %v497, %v718
      %720 = vst [vmem:[%s648 + $0x74] sm:$0x1] %v719
      %v721 = vld [vmem:[%s648 + $0x78] sm:$0xf]
      %v722 = vsel %vm650, %v504, %v721
      %723 = vst [vmem:[%s648 + $0x78] sm:$0xf] %v722
      %724 = vst.msk [vmem:[%s648 + $0x7c] sm:$0xf] %vm282, %v513
      %v725 = vld [vmem:[%s648 + $0x80] sm:$0x1]
      %v726 = vsel %vm171, %v514, %v725
      %727 = vst [vmem:[%s648 + $0x80] sm:$0x1] %v726
      %v728 = vld [vmem:[%s648 + $0x84] sm:$0xf]
      %v729 = vsel %vm650, %v521, %v728
      %730 = vst [vmem:[%s648 + $0x84] sm:$0xf] %v729
      %731 = vst.msk [vmem:[%s648 + $0x88] sm:$0xf] %vm282, %v530
      %v732 = vld [vmem:[%s648 + $0x8c] sm:$0x1]
      %v733 = vsel %vm171, %v531, %v732
      %734 = vst [vmem:[%s648 + $0x8c] sm:$0x1] %v733
      %v735 = vld [vmem:[%s648 + $0x90] sm:$0xf]
      %v736 = vsel %vm650, %v538, %v735
      %737 = vst [vmem:[%s648 + $0x90] sm:$0xf] %v736
      %738 = vst.msk [vmem:[%s648 + $0x94] sm:$0xf] %vm282, %v547
      %v739 = vld [vmem:[%s648 + $0x98] sm:$0x1]
      %v740 = vsel %vm171, %v548, %v739
      %741 = vst [vmem:[%s648 + $0x98] sm:$0x1] %v740
      %v742 = vld [vmem:[%s648 + $0x9c] sm:$0xf]
      %v743 = vsel %vm650, %v555, %v742
      %744 = vst [vmem:[%s648 + $0x9c] sm:$0xf] %v743
      %745 = vst.msk [vmem:[%s648 + $0xa0] sm:$0xf] %vm282, %v564
      %v746 = vld [vmem:[%s648 + $0xa4] sm:$0x1]
      %v747 = vsel %vm171, %v565, %v746
      %748 = vst [vmem:[%s648 + $0xa4] sm:$0x1] %v747
      %v749 = vld [vmem:[%s648 + $0xa8] sm:$0xf]
      %v750 = vsel %vm650, %v572, %v749
      %751 = vst [vmem:[%s648 + $0xa8] sm:$0xf] %v750
      %752 = vst.msk [vmem:[%s648 + $0xac] sm:$0xf] %vm282, %v581
      %v753 = vld [vmem:[%s648 + $0xb0] sm:$0x1]
      %v754 = vsel %vm171, %v582, %v753
      %755 = vst [vmem:[%s648 + $0xb0] sm:$0x1] %v754
      %v756 = vld [vmem:[%s648 + $0xb4] sm:$0xf]
      %v757 = vsel %vm650, %v589, %v756
      %758 = vst [vmem:[%s648 + $0xb4] sm:$0xf] %v757
      %759 = vst.msk [vmem:[%s648 + $0xb8] sm:$0xf] %vm282, %v598
      %v760 = vld [vmem:[%s648 + $0xbc] sm:$0x1]
      %v761 = vsel %vm171, %v599, %v760
      %762 = vst [vmem:[%s648 + $0xbc] sm:$0x1] %v761
      %p763 = scmp.gt.s32.totalorder %s18, 0
      // Predicated region
      $region29: #{upsample_forward.1} parent=27 // pred_check
        %p764 = pneg %p763
      $region30: #{upsample_forward.1} parent=27 // pred_check_branch
        %766 = sbr.rel (%p764) target = $region32
      $region31: #{upsample_forward.1} parent=27 // pred_region
        %s767 = ssub.s32 %s168, 1
        %s768 = smul.u32 %s767, 2
        %s769 = smul.addr %s768, 4
        %s770 = scalar_lea.vmem %s156, %s769
        %v771 = vld [vmem:[%s770] sm:$0xf]
        %v772 = vld [vmem:[%s770 + $0x4] sm:$0xf]
        %v774 = vshrl.u32 %v771, 16
        %v776 = vrot.slane %v774, 7
        %v777 = vshll.u32 %v771, 16
        %v779 = vor.u32 %v776, %v777
        %v780 = vrot.slane %v776, 4
        %v782 = vshrl.u32 %v772, 16
        %v784 = vrot.slane %v782, 7
        %v785 = vshll.u32 %v772, 16
        %v787 = vor.u32 %v784, %v785
        %v788 = vsel %vm327, %v780, %v787
        %v789 = vrot.slane %v784, 4
        %v793 = vld [vmem:[#allocation2] sm:$0xf]
        %v794 = vsel %vm650, %v779, %v793
        %795 = vst [vmem:[#allocation2] sm:$0xf] %v794
        %796 = vst.msk [vmem:[#allocation2 + $0x4] sm:$0xf] %vm282, %v788
        %v797 = vld [vmem:[#allocation2 + $0x8] sm:$0x1]
        %v798 = vsel %vm171, %v789, %v797
        %799 = vst [vmem:[#allocation2 + $0x8] sm:$0x1] %v798
      $region32: #{upsample_forward.1} parent=27 // pred_fallthru
        _
      %p800 = scmp.lt.s32.totalorder %s18, 0
      // Predicated region
      $region33: #{upsample_forward.1} parent=27 // pred_check
        %p801 = pneg %p800
      $region34: #{upsample_forward.1} parent=27 // pred_check_branch
        %803 = sbr.rel (%p801) target = $region36
      $region35: #{upsample_forward.1} parent=27 // pred_region
        %s804 = sadd.s32 %s168, 16
        %s805 = smul.u32 %s804, 2
        %s806 = smul.addr %s805, 4
        %s807 = scalar_lea.vmem %s156, %s806
        %v808 = vld [vmem:[%s807] sm:$0xf]
        %v809 = vld [vmem:[%s807 + $0x4] sm:$0xf]
        %v811 = vshrl.u32 %v808, 16
        %v813 = vrot.slane %v811, 7
        %v814 = vshll.u32 %v808, 16
        %v816 = vor.u32 %v813, %v814
        %v817 = vrot.slane %v813, 4
        %v819 = vshrl.u32 %v809, 16
        %v821 = vrot.slane %v819, 7
        %v822 = vshll.u32 %v809, 16
        %v824 = vor.u32 %v821, %v822
        %v825 = vsel %vm327, %v817, %v824
        %v826 = vrot.slane %v821, 4
        %v830 = vld [vmem:[%s287] sm:$0xf]
        %v831 = vsel %vm650, %v816, %v830
        %832 = vst [vmem:[%s287] sm:$0xf] %v831
        %833 = vst.msk [vmem:[%s287 + $0x4] sm:$0xf] %vm282, %v825
        %v834 = vld [vmem:[%s287 + $0x8] sm:$0x1]
        %v835 = vsel %vm171, %v826, %v834
        %836 = vst [vmem:[%s287 + $0x8] sm:$0x1] %v835
      $region36: #{upsample_forward.1} parent=27 // pred_fallthru
        _
      %v837 = vld [vmem:[%s1] sm:$0xf]
      %v838 = vld [vmem:[%s1 + $0x4] sm:$0xf]
      %v839 = vld [vmem:[%s1 + $0x8] sm:$0xf]
      %v840 = vld [vmem:[%s1 + $0xc] sm:$0xf]
      %v841 = vld [vmem:[%s1 + $0x10] sm:$0x3]
      %v842 = vld [vmem:[#allocation2] sm:$0xf]
      %v843 = vld [vmem:[#allocation2 + $0x4] sm:$0xf]
      %v844 = vld [vmem:[#allocation2 + $0xc] sm:$0xf]
      %v845 = vld [vmem:[#allocation2 + $0x10] sm:$0xf]
      %v846 = vld [vmem:[#allocation2 + $0x18] sm:$0xf]
      %v847 = vld [vmem:[#allocation2 + $0x1c] sm:$0xf]
      %v848 = vld [vmem:[#allocation2 + $0x24] sm:$0xf]
      %v849 = vld [vmem:[#allocation2 + $0x28] sm:$0xf]
      %v850 = vld [vmem:[#allocation2 + $0x30] sm:$0xf]
      %v851 = vld [vmem:[#allocation2 + $0x34] sm:$0xf]
      %v852 = vld [vmem:[#allocation2 + $0x3c] sm:$0xf]
      %v853 = vld [vmem:[#allocation2 + $0x40] sm:$0xf]
      %v854 = vld [vmem:[#allocation2 + $0x48] sm:$0xf]
      %v855 = vld [vmem:[#allocation2 + $0x4c] sm:$0xf]
      %v856 = vld [vmem:[#allocation2 + $0x54] sm:$0xf]
      %v857 = vld [vmem:[#allocation2 + $0x58] sm:$0xf]
      %v858 = vld [vmem:[#allocation2 + $0x60] sm:$0xf]
      %v859 = vld [vmem:[#allocation2 + $0x64] sm:$0xf]
      %v860 = vld [vmem:[#allocation2 + $0x6c] sm:$0xf]
      %v861 = vld [vmem:[#allocation2 + $0x70] sm:$0xf]
      %v862 = vld [vmem:[#allocation2 + $0x78] sm:$0xf]
      %v863 = vld [vmem:[#allocation2 + $0x7c] sm:$0xf]
      %v864 = vld [vmem:[#allocation2 + $0x84] sm:$0xf]
      %v865 = vld [vmem:[#allocation2 + $0x88] sm:$0xf]
      %v866 = vld [vmem:[#allocation2 + $0x90] sm:$0xf]
      %v867 = vld [vmem:[#allocation2 + $0x94] sm:$0xf]
      %v868 = vld [vmem:[#allocation2 + $0x9c] sm:$0xf]
      %v869 = vld [vmem:[#allocation2 + $0xa0] sm:$0xf]
      %v870 = vld [vmem:[#allocation2 + $0xa8] sm:$0xf]
      %v871 = vld [vmem:[#allocation2 + $0xac] sm:$0xf]
      %v872 = vld [vmem:[#allocation2 + $0xb4] sm:$0xf]
      %v873 = vld [vmem:[#allocation2 + $0xb8] sm:$0xf]
      %v906 = vunpack.c.l.b16 %v842
      %v907 = vunpack.c.l.b16 %v843
      %v908 = vunpack.c.l.b16 %v844
      %v909 = vunpack.c.l.b16 %v845
      %v910 = vunpack.c.l.b16 %v846
      %v911 = vunpack.c.l.b16 %v847
      %v912 = vunpack.c.l.b16 %v848
      %v913 = vunpack.c.l.b16 %v849
      %v914 = vunpack.c.l.b16 %v850
      %v915 = vunpack.c.l.b16 %v851
      %v916 = vunpack.c.l.b16 %v852
      %v917 = vunpack.c.l.b16 %v853
      %v918 = vunpack.c.l.b16 %v854
      %v919 = vunpack.c.l.b16 %v855
      %v920 = vunpack.c.l.b16 %v856
      %v921 = vunpack.c.l.b16 %v857
      %v922 = vunpack.c.l.b16 %v858
      %v923 = vunpack.c.l.b16 %v859
      %v924 = vunpack.c.l.b16 %v860
      %v925 = vunpack.c.l.b16 %v861
      %v926 = vunpack.c.l.b16 %v862
      %v927 = vunpack.c.l.b16 %v863
      %v928 = vunpack.c.l.b16 %v864
      %v929 = vunpack.c.l.b16 %v865
      %v930 = vunpack.c.l.b16 %v866
      %v931 = vunpack.c.l.b16 %v867
      %v932 = vunpack.c.l.b16 %v868
      %v933 = vunpack.c.l.b16 %v869
      %v934 = vunpack.c.l.b16 %v870
      %v935 = vunpack.c.l.b16 %v871
      %v936 = vunpack.c.l.b16 %v872
      %v937 = vunpack.c.l.b16 %v873
      %v938 = vpack.c.b16 %v907, %v906
      %v939 = vpack.c.b16 %v909, %v908
      %v940 = vpack.c.b16 %v911, %v910
      %v941 = vpack.c.b16 %v913, %v912
      %v942 = vpack.c.b16 %v915, %v914
      %v943 = vpack.c.b16 %v917, %v916
      %v944 = vpack.c.b16 %v919, %v918
      %v945 = vpack.c.b16 %v921, %v920
      %v946 = vpack.c.b16 %v923, %v922
      %v947 = vpack.c.b16 %v925, %v924
      %v948 = vpack.c.b16 %v927, %v926
      %v949 = vpack.c.b16 %v929, %v928
      %v950 = vpack.c.b16 %v931, %v930
      %v951 = vpack.c.b16 %v933, %v932
      %v952 = vpack.c.b16 %v935, %v934
      %v953 = vpack.c.b16 %v937, %v936
      %vm970 = vcmask 31744
      %971 = vst.msk [vmem:[#allocation3] sm:$0xff] %vm970, %v938
      %972 = vst.msk [vmem:[#allocation3 + $0x8] sm:$0xff] %vm970, %v939
      %973 = vst.msk [vmem:[#allocation3 + $0x10] sm:$0xff] %vm970, %v940
      %974 = vst.msk [vmem:[#allocation3 + $0x18] sm:$0xff] %vm970, %v941
      %975 = vst.msk [vmem:[#allocation3 + $0x20] sm:$0xff] %vm970, %v942
      %976 = vst.msk [vmem:[#allocation3 + $0x28] sm:$0xff] %vm970, %v943
      %977 = vst.msk [vmem:[#allocation3 + $0x30] sm:$0xff] %vm970, %v944
      %978 = vst.msk [vmem:[#allocation3 + $0x38] sm:$0xff] %vm970, %v945
      %979 = vst.msk [vmem:[#allocation3 + $0x40] sm:$0xff] %vm970, %v946
      %980 = vst.msk [vmem:[#allocation3 + $0x48] sm:$0xff] %vm970, %v947
      %981 = vst.msk [vmem:[#allocation3 + $0x50] sm:$0xff] %vm970, %v948
      %982 = vst.msk [vmem:[#allocation3 + $0x58] sm:$0xff] %vm970, %v949
      %983 = vst.msk [vmem:[#allocation3 + $0x60] sm:$0xff] %vm970, %v950
      %984 = vst.msk [vmem:[#allocation3 + $0x68] sm:$0xff] %vm970, %v951
      %985 = vst.msk [vmem:[#allocation3 + $0x70] sm:$0xff] %vm970, %v952
      %986 = vst.msk [vmem:[#allocation3 + $0x78] sm:$0xff] %vm970, %v953
      %v987 = vld [vmem:[#allocation2] sm:$0xf]
      %v988 = vld [vmem:[#allocation2 + $0x4] sm:$0xf]
      %v989 = vld [vmem:[#allocation2 + $0x8] sm:$0x1]
      %v990 = vld [vmem:[#allocation2 + $0xc] sm:$0xf]
      %v991 = vld [vmem:[#allocation2 + $0x10] sm:$0xf]
      %v992 = vld [vmem:[#allocation2 + $0x14] sm:$0x1]
      %v993 = vld [vmem:[#allocation2 + $0x18] sm:$0xf]
      %v994 = vld [vmem:[#allocation2 + $0x1c] sm:$0xf]
      %v995 = vld [vmem:[#allocation2 + $0x20] sm:$0x1]
      %v996 = vld [vmem:[#allocation2 + $0x24] sm:$0xf]
      %v997 = vld [vmem:[#allocation2 + $0x28] sm:$0xf]
      %v998 = vld [vmem:[#allocation2 + $0x2c] sm:$0x1]
      %v999 = vld [vmem:[#allocation2 + $0x30] sm:$0xf]
      %v1000 = vld [vmem:[#allocation2 + $0x34] sm:$0xf]
      %v1001 = vld [vmem:[#allocation2 + $0x38] sm:$0x1]
      %v1002 = vld [vmem:[#allocation2 + $0x3c] sm:$0xf]
      %v1003 = vld [vmem:[#allocation2 + $0x40] sm:$0xf]
      %v1004 = vld [vmem:[#allocation2 + $0x44] sm:$0x1]
      %v1005 = vld [vmem:[#allocation2 + $0x48] sm:$0xf]
      %v1006 = vld [vmem:[#allocation2 + $0x4c] sm:$0xf]
      %v1007 = vld [vmem:[#allocation2 + $0x50] sm:$0x1]
      %v1008 = vld [vmem:[#allocation2 + $0x54] sm:$0xf]
      %v1009 = vld [vmem:[#allocation2 + $0x58] sm:$0xf]
      %v1010 = vld [vmem:[#allocation2 + $0x5c] sm:$0x1]
      %v1011 = vld [vmem:[#allocation2 + $0x60] sm:$0xf]
      %v1012 = vld [vmem:[#allocation2 + $0x64] sm:$0xf]
      %v1013 = vld [vmem:[#allocation2 + $0x68] sm:$0x1]
      %v1014 = vld [vmem:[#allocation2 + $0x6c] sm:$0xf]
      %v1015 = vld [vmem:[#allocation2 + $0x70] sm:$0xf]
      %v1016 = vld [vmem:[#allocation2 + $0x74] sm:$0x1]
      %v1017 = vld [vmem:[#allocation2 + $0x78] sm:$0xf]
      %v1018 = vld [vmem:[#allocation2 + $0x7c] sm:$0xf]
      %v1019 = vld [vmem:[#allocation2 + $0x80] sm:$0x1]
      %v1020 = vld [vmem:[#allocation2 + $0x84] sm:$0xf]
      %v1021 = vld [vmem:[#allocation2 + $0x88] sm:$0xf]
      %v1022 = vld [vmem:[#allocation2 + $0x8c] sm:$0x1]
      %v1023 = vld [vmem:[#allocation2 + $0x90] sm:$0xf]
      %v1024 = vld [vmem:[#allocation2 + $0x94] sm:$0xf]
      %v1025 = vld [vmem:[#allocation2 + $0x98] sm:$0x1]
      %v1026 = vld [vmem:[#allocation2 + $0x9c] sm:$0xf]
      %v1027 = vld [vmem:[#allocation2 + $0xa0] sm:$0xf]
      %v1028 = vld [vmem:[#allocation2 + $0xa4] sm:$0x1]
      %v1029 = vld [vmem:[#allocation2 + $0xa8] sm:$0xf]
      %v1030 = vld [vmem:[#allocation2 + $0xac] sm:$0xf]
      %v1031 = vld [vmem:[#allocation2 + $0xb0] sm:$0x1]
      %v1032 = vld [vmem:[#allocation2 + $0xb4] sm:$0xf]
      %v1033 = vld [vmem:[#allocation2 + $0xb8] sm:$0xf]
      %v1034 = vld [vmem:[#allocation2 + $0xbc] sm:$0x1]
      %v1083 = vunpack.c.l.b16 %v987
      %v1084 = vunpack.c.l.b16 %v988
      %v1085 = vunpack.c.l.b16 %v989
      %v1086 = vunpack.c.l.b16 %v990
      %v1087 = vunpack.c.l.b16 %v991
      %v1088 = vunpack.c.l.b16 %v992
      %v1089 = vunpack.c.l.b16 %v993
      %v1090 = vunpack.c.l.b16 %v994
      %v1091 = vunpack.c.l.b16 %v995
      %v1092 = vunpack.c.l.b16 %v996
      %v1093 = vunpack.c.l.b16 %v997
      %v1094 = vunpack.c.l.b16 %v998
      %v1095 = vunpack.c.l.b16 %v999
      %v1096 = vunpack.c.l.b16 %v1000
      %v1097 = vunpack.c.l.b16 %v1001
      %v1098 = vunpack.c.l.b16 %v1002
      %v1099 = vunpack.c.l.b16 %v1003
      %v1100 = vunpack.c.l.b16 %v1004
      %v1101 = vunpack.c.l.b16 %v1005
      %v1102 = vunpack.c.l.b16 %v1006
      %v1103 = vunpack.c.l.b16 %v1007
      %v1104 = vunpack.c.l.b16 %v1008
      %v1105 = vunpack.c.l.b16 %v1009
      %v1106 = vunpack.c.l.b16 %v1010
      %v1107 = vunpack.c.l.b16 %v1011
      %v1108 = vunpack.c.l.b16 %v1012
      %v1109 = vunpack.c.l.b16 %v1013
      %v1110 = vunpack.c.l.b16 %v1014
      %v1111 = vunpack.c.l.b16 %v1015
      %v1112 = vunpack.c.l.b16 %v1016
      %v1113 = vunpack.c.l.b16 %v1017
      %v1114 = vunpack.c.l.b16 %v1018
      %v1115 = vunpack.c.l.b16 %v1019
      %v1116 = vunpack.c.l.b16 %v1020
      %v1117 = vunpack.c.l.b16 %v1021
      %v1118 = vunpack.c.l.b16 %v1022
      %v1119 = vunpack.c.l.b16 %v1023
      %v1120 = vunpack.c.l.b16 %v1024
      %v1121 = vunpack.c.l.b16 %v1025
      %v1122 = vunpack.c.l.b16 %v1026
      %v1123 = vunpack.c.l.b16 %v1027
      %v1124 = vunpack.c.l.b16 %v1028
      %v1125 = vunpack.c.l.b16 %v1029
      %v1126 = vunpack.c.l.b16 %v1030
      %v1127 = vunpack.c.l.b16 %v1031
      %v1128 = vunpack.c.l.b16 %v1032
      %v1129 = vunpack.c.l.b16 %v1033
      %v1130 = vunpack.c.l.b16 %v1034
      %v1131 = vpack.c.b16 %v1084, %v1083
      %v1132 = vpack.c.b16 %v1085, %v1085
      %v1133 = vpack.c.b16 %v1087, %v1086
      %v1134 = vpack.c.b16 %v1088, %v1088
      %v1135 = vpack.c.b16 %v1090, %v1089
      %v1136 = vpack.c.b16 %v1091, %v1091
      %v1137 = vpack.c.b16 %v1093, %v1092
      %v1138 = vpack.c.b16 %v1094, %v1094
      %v1139 = vpack.c.b16 %v1096, %v1095
      %v1140 = vpack.c.b16 %v1097, %v1097
      %v1141 = vpack.c.b16 %v1099, %v1098
      %v1142 = vpack.c.b16 %v1100, %v1100
      %v1143 = vpack.c.b16 %v1102, %v1101
      %v1144 = vpack.c.b16 %v1103, %v1103
      %v1145 = vpack.c.b16 %v1105, %v1104
      %v1146 = vpack.c.b16 %v1106, %v1106
      %v1147 = vpack.c.b16 %v1108, %v1107
      %v1148 = vpack.c.b16 %v1109, %v1109
      %v1149 = vpack.c.b16 %v1111, %v1110
      %v1150 = vpack.c.b16 %v1112, %v1112
      %v1151 = vpack.c.b16 %v1114, %v1113
      %v1152 = vpack.c.b16 %v1115, %v1115
      %v1153 = vpack.c.b16 %v1117, %v1116
      %v1154 = vpack.c.b16 %v1118, %v1118
      %v1155 = vpack.c.b16 %v1120, %v1119
      %v1156 = vpack.c.b16 %v1121, %v1121
      %v1157 = vpack.c.b16 %v1123, %v1122
      %v1158 = vpack.c.b16 %v1124, %v1124
      %v1159 = vpack.c.b16 %v1126, %v1125
      %v1160 = vpack.c.b16 %v1127, %v1127
      %v1161 = vpack.c.b16 %v1129, %v1128
      %v1162 = vpack.c.b16 %v1130, %v1130
      %vm1163 = vsmask.f32 7424
      %v1165 = vshrl.u32 %v1131, 16
      %v1167 = vshll.u32 %v1131, 16
      %v1169 = vrot.slane %v1167, 1
      %v1170 = vor.u32 %v1165, %v1169
      %v1172 = vshll.u32 %v1132, 16
      %v1174 = vrot.slane %v1172, 1
      %v1175 = vsel %vm1163, %v1170, %v1174
      %v1177 = vshrl.u32 %v1133, 16
      %v1179 = vshll.u32 %v1133, 16
      %v1181 = vrot.slane %v1179, 1
      %v1182 = vor.u32 %v1177, %v1181
      %v1184 = vshll.u32 %v1134, 16
      %v1186 = vrot.slane %v1184, 1
      %v1187 = vsel %vm1163, %v1182, %v1186
      %v1189 = vshrl.u32 %v1135, 16
      %v1191 = vshll.u32 %v1135, 16
      %v1193 = vrot.slane %v1191, 1
      %v1194 = vor.u32 %v1189, %v1193
      %v1196 = vshll.u32 %v1136, 16
      %v1198 = vrot.slane %v1196, 1
      %v1199 = vsel %vm1163, %v1194, %v1198
      %v1201 = vshrl.u32 %v1137, 16
      %v1203 = vshll.u32 %v1137, 16
      %v1205 = vrot.slane %v1203, 1
      %v1206 = vor.u32 %v1201, %v1205
      %v1208 = vshll.u32 %v1138, 16
      %v1210 = vrot.slane %v1208, 1
      %v1211 = vsel %vm1163, %v1206, %v1210
      %v1213 = vshrl.u32 %v1139, 16
      %v1215 = vshll.u32 %v1139, 16
      %v1217 = vrot.slane %v1215, 1
      %v1218 = vor.u32 %v1213, %v1217
      %v1220 = vshll.u32 %v1140, 16
      %v1222 = vrot.slane %v1220, 1
      %v1223 = vsel %vm1163, %v1218, %v1222
      %v1225 = vshrl.u32 %v1141, 16
      %v1227 = vshll.u32 %v1141, 16
      %v1229 = vrot.slane %v1227, 1
      %v1230 = vor.u32 %v1225, %v1229
      %v1232 = vshll.u32 %v1142, 16
      %v1234 = vrot.slane %v1232, 1
      %v1235 = vsel %vm1163, %v1230, %v1234
      %v1237 = vshrl.u32 %v1143, 16
      %v1239 = vshll.u32 %v1143, 16
      %v1241 = vrot.slane %v1239, 1
      %v1242 = vor.u32 %v1237, %v1241
      %v1244 = vshll.u32 %v1144, 16
      %v1246 = vrot.slane %v1244, 1
      %v1247 = vsel %vm1163, %v1242, %v1246
      %v1249 = vshrl.u32 %v1145, 16
      %v1251 = vshll.u32 %v1145, 16
      %v1253 = vrot.slane %v1251, 1
      %v1254 = vor.u32 %v1249, %v1253
      %v1256 = vshll.u32 %v1146, 16
      %v1258 = vrot.slane %v1256, 1
      %v1259 = vsel %vm1163, %v1254, %v1258
      %v1261 = vshrl.u32 %v1147, 16
      %v1263 = vshll.u32 %v1147, 16
      %v1265 = vrot.slane %v1263, 1
      %v1266 = vor.u32 %v1261, %v1265
      %v1268 = vshll.u32 %v1148, 16
      %v1270 = vrot.slane %v1268, 1
      %v1271 = vsel %vm1163, %v1266, %v1270
      %v1273 = vshrl.u32 %v1149, 16
      %v1275 = vshll.u32 %v1149, 16
      %v1277 = vrot.slane %v1275, 1
      %v1278 = vor.u32 %v1273, %v1277
      %v1280 = vshll.u32 %v1150, 16
      %v1282 = vrot.slane %v1280, 1
      %v1283 = vsel %vm1163, %v1278, %v1282
      %v1285 = vshrl.u32 %v1151, 16
      %v1287 = vshll.u32 %v1151, 16
      %v1289 = vrot.slane %v1287, 1
      %v1290 = vor.u32 %v1285, %v1289
      %v1292 = vshll.u32 %v1152, 16
      %v1294 = vrot.slane %v1292, 1
      %v1295 = vsel %vm1163, %v1290, %v1294
      %v1297 = vshrl.u32 %v1153, 16
      %v1299 = vshll.u32 %v1153, 16
      %v1301 = vrot.slane %v1299, 1
      %v1302 = vor.u32 %v1297, %v1301
      %v1304 = vshll.u32 %v1154, 16
      %v1306 = vrot.slane %v1304, 1
      %v1307 = vsel %vm1163, %v1302, %v1306
      %v1309 = vshrl.u32 %v1155, 16
      %v1311 = vshll.u32 %v1155, 16
      %v1313 = vrot.slane %v1311, 1
      %v1314 = vor.u32 %v1309, %v1313
      %v1316 = vshll.u32 %v1156, 16
      %v1318 = vrot.slane %v1316, 1
      %v1319 = vsel %vm1163, %v1314, %v1318
      %v1321 = vshrl.u32 %v1157, 16
      %v1323 = vshll.u32 %v1157, 16
      %v1325 = vrot.slane %v1323, 1
      %v1326 = vor.u32 %v1321, %v1325
      %v1328 = vshll.u32 %v1158, 16
      %v1330 = vrot.slane %v1328, 1
      %v1331 = vsel %vm1163, %v1326, %v1330
      %v1333 = vshrl.u32 %v1159, 16
      %v1335 = vshll.u32 %v1159, 16
      %v1337 = vrot.slane %v1335, 1
      %v1338 = vor.u32 %v1333, %v1337
      %v1340 = vshll.u32 %v1160, 16
      %v1342 = vrot.slane %v1340, 1
      %v1343 = vsel %vm1163, %v1338, %v1342
      %v1345 = vshrl.u32 %v1161, 16
      %v1347 = vshll.u32 %v1161, 16
      %v1349 = vrot.slane %v1347, 1
      %v1350 = vor.u32 %v1345, %v1349
      %v1352 = vshll.u32 %v1162, 16
      %v1354 = vrot.slane %v1352, 1
      %v1355 = vsel %vm1163, %v1350, %v1354
      %1356 = vrot.lane.b32.xlu0 %v1175, 4
      %v1357 = vpop.permute.xlu0 %1356
      %1358 = vrot.lane.b32.xlu0 %v1187, 4
      %v1359 = vpop.permute.xlu0 %1358
      %1360 = vrot.lane.b32.xlu0 %v1199, 4
      %v1361 = vpop.permute.xlu0 %1360
      %1362 = vrot.lane.b32.xlu0 %v1211, 4
      %v1363 = vpop.permute.xlu0 %1362
      %1364 = vrot.lane.b32.xlu0 %v1223, 4
      %v1365 = vpop.permute.xlu0 %1364
      %1366 = vrot.lane.b32.xlu0 %v1235, 4
      %v1367 = vpop.permute.xlu0 %1366
      %1368 = vrot.lane.b32.xlu0 %v1247, 4
      %v1369 = vpop.permute.xlu0 %1368
      %1370 = vrot.lane.b32.xlu0 %v1259, 4
      %v1371 = vpop.permute.xlu0 %1370
      %1372 = vrot.lane.b32.xlu0 %v1271, 4
      %v1373 = vpop.permute.xlu0 %1372
      %1374 = vrot.lane.b32.xlu0 %v1283, 4
      %v1375 = vpop.permute.xlu0 %1374
      %1376 = vrot.lane.b32.xlu0 %v1295, 4
      %v1377 = vpop.permute.xlu0 %1376
      %1378 = vrot.lane.b32.xlu0 %v1307, 4
      %v1379 = vpop.permute.xlu0 %1378
      %1380 = vrot.lane.b32.xlu0 %v1319, 4
      %v1381 = vpop.permute.xlu0 %1380
      %1382 = vrot.lane.b32.xlu0 %v1331, 4
      %v1383 = vpop.permute.xlu0 %1382
      %1384 = vrot.lane.b32.xlu0 %v1343, 4
      %v1385 = vpop.permute.xlu0 %1384
      %1386 = vrot.lane.b32.xlu0 %v1355, 4
      %v1387 = vpop.permute.xlu0 %1386
      %vm1404 = vcmask 64544
      %1405 = vst.msk [vmem:[#allocation3] sm:$0xff] %vm1404, %v1357
      %1406 = vst.msk [vmem:[#allocation3 + $0x8] sm:$0xff] %vm1404, %v1359
      %1407 = vst.msk [vmem:[#allocation3 + $0x10] sm:$0xff] %vm1404, %v1361
      %1408 = vst.msk [vmem:[#allocation3 + $0x18] sm:$0xff] %vm1404, %v1363
      %1409 = vst.msk [vmem:[#allocation3 + $0x20] sm:$0xff] %vm1404, %v1365
      %1410 = vst.msk [vmem:[#allocation3 + $0x28] sm:$0xff] %vm1404, %v1367
      %1411 = vst.msk [vmem:[#allocation3 + $0x30] sm:$0xff] %vm1404, %v1369
      %1412 = vst.msk [vmem:[#allocation3 + $0x38] sm:$0xff] %vm1404, %v1371
      %1413 = vst.msk [vmem:[#allocation3 + $0x40] sm:$0xff] %vm1404, %v1373
      %1414 = vst.msk [vmem:[#allocation3 + $0x48] sm:$0xff] %vm1404, %v1375
      %1415 = vst.msk [vmem:[#allocation3 + $0x50] sm:$0xff] %vm1404, %v1377
      %1416 = vst.msk [vmem:[#allocation3 + $0x58] sm:$0xff] %vm1404, %v1379
      %1417 = vst.msk [vmem:[#allocation3 + $0x60] sm:$0xff] %vm1404, %v1381
      %1418 = vst.msk [vmem:[#allocation3 + $0x68] sm:$0xff] %vm1404, %v1383
      %1419 = vst.msk [vmem:[#allocation3 + $0x70] sm:$0xff] %vm1404, %v1385
      %1420 = vst.msk [vmem:[#allocation3 + $0x78] sm:$0xff] %vm1404, %v1387
      %v1421 = vld [vmem:[#allocation2] sm:$0xe]
      %v1422 = vld [vmem:[#allocation2 + $0x4] sm:$0xf]
      %v1423 = vld [vmem:[#allocation2 + $0x8] sm:$0x1]
      %v1424 = vld [vmem:[#allocation2 + $0xc] sm:$0xe]
      %v1425 = vld [vmem:[#allocation2 + $0x10] sm:$0xf]
      %v1426 = vld [vmem:[#allocation2 + $0x14] sm:$0x1]
      %v1427 = vld [vmem:[#allocation2 + $0x18] sm:$0xe]
      %v1428 = vld [vmem:[#allocation2 + $0x1c] sm:$0xf]
      %v1429 = vld [vmem:[#allocation2 + $0x20] sm:$0x1]
      %v1430 = vld [vmem:[#allocation2 + $0x24] sm:$0xe]
      %v1431 = vld [vmem:[#allocation2 + $0x28] sm:$0xf]
      %v1432 = vld [vmem:[#allocation2 + $0x2c] sm:$0x1]
      %v1433 = vld [vmem:[#allocation2 + $0x30] sm:$0xe]
      %v1434 = vld [vmem:[#allocation2 + $0x34] sm:$0xf]
      %v1435 = vld [vmem:[#allocation2 + $0x38] sm:$0x1]
      %v1436 = vld [vmem:[#allocation2 + $0x3c] sm:$0xe]
      %v1437 = vld [vmem:[#allocation2 + $0x40] sm:$0xf]
      %v1438 = vld [vmem:[#allocation2 + $0x44] sm:$0x1]
      %v1439 = vld [vmem:[#allocation2 + $0x48] sm:$0xe]
      %v1440 = vld [vmem:[#allocation2 + $0x4c] sm:$0xf]
      %v1441 = vld [vmem:[#allocation2 + $0x50] sm:$0x1]
      %v1442 = vld [vmem:[#allocation2 + $0x54] sm:$0xe]
      %v1443 = vld [vmem:[#allocation2 + $0x58] sm:$0xf]
      %v1444 = vld [vmem:[#allocation2 + $0x5c] sm:$0x1]
      %v1445 = vld [vmem:[#allocation2 + $0x60] sm:$0xe]
      %v1446 = vld [vmem:[#allocation2 + $0x64] sm:$0xf]
      %v1447 = vld [vmem:[#allocation2 + $0x68] sm:$0x1]
      %v1448 = vld [vmem:[#allocation2 + $0x6c] sm:$0xe]
      %v1449 = vld [vmem:[#allocation2 + $0x70] sm:$0xf]
      %v1450 = vld [vmem:[#allocation2 + $0x74] sm:$0x1]
      %v1451 = vld [vmem:[#allocation2 + $0x78] sm:$0xe]
      %v1452 = vld [vmem:[#allocation2 + $0x7c] sm:$0xf]
      %v1453 = vld [vmem:[#allocation2 + $0x80] sm:$0x1]
      %v1454 = vld [vmem:[#allocation2 + $0x84] sm:$0xe]
      %v1455 = vld [vmem:[#allocation2 + $0x88] sm:$0xf]
      %v1456 = vld [vmem:[#allocation2 + $0x8c] sm:$0x1]
      %v1457 = vld [vmem:[#allocation2 + $0x90] sm:$0xe]
      %v1458 = vld [vmem:[#allocation2 + $0x94] sm:$0xf]
      %v1459 = vld [vmem:[#allocation2 + $0x98] sm:$0x1]
      %v1460 = vld [vmem:[#allocation2 + $0x9c] sm:$0xe]
      %v1461 = vld [vmem:[#allocation2 + $0xa0] sm:$0xf]
      %v1462 = vld [vmem:[#allocation2 + $0xa4] sm:$0x1]
      %v1463 = vld [vmem:[#allocation2 + $0xa8] sm:$0xe]
      %v1464 = vld [vmem:[#allocation2 + $0xac] sm:$0xf]
      %v1465 = vld [vmem:[#allocation2 + $0xb0] sm:$0x1]
      %v1466 = vld [vmem:[#allocation2 + $0xb4] sm:$0xe]
      %v1467 = vld [vmem:[#allocation2 + $0xb8] sm:$0xf]
      %v1468 = vld [vmem:[#allocation2 + $0xbc] sm:$0x1]
      %v1517 = vunpack.c.l.b16 %v1421
      %v1518 = vunpack.c.l.b16 %v1422
      %v1519 = vunpack.c.l.b16 %v1423
      %v1520 = vunpack.c.l.b16 %v1424
      %v1521 = vunpack.c.l.b16 %v1425
      %v1522 = vunpack.c.l.b16 %v1426
      %v1523 = vunpack.c.l.b16 %v1427
      %v1524 = vunpack.c.l.b16 %v1428
      %v1525 = vunpack.c.l.b16 %v1429
      %v1526 = vunpack.c.l.b16 %v1430
      %v1527 = vunpack.c.l.b16 %v1431
      %v1528 = vunpack.c.l.b16 %v1432
      %v1529 = vunpack.c.l.b16 %v1433
      %v1530 = vunpack.c.l.b16 %v1434
      %v1531 = vunpack.c.l.b16 %v1435
      %v1532 = vunpack.c.l.b16 %v1436
      %v1533 = vunpack.c.l.b16 %v1437
      %v1534 = vunpack.c.l.b16 %v1438
      %v1535 = vunpack.c.l.b16 %v1439
      %v1536 = vunpack.c.l.b16 %v1440
      %v1537 = vunpack.c.l.b16 %v1441
      %v1538 = vunpack.c.l.b16 %v1442
      %v1539 = vunpack.c.l.b16 %v1443
      %v1540 = vunpack.c.l.b16 %v1444
      %v1541 = vunpack.c.l.b16 %v1445
      %v1542 = vunpack.c.l.b16 %v1446
      %v1543 = vunpack.c.l.b16 %v1447
      %v1544 = vunpack.c.l.b16 %v1448
      %v1545 = vunpack.c.l.b16 %v1449
      %v1546 = vunpack.c.l.b16 %v1450
      %v1547 = vunpack.c.l.b16 %v1451
      %v1548 = vunpack.c.l.b16 %v1452
      %v1549 = vunpack.c.l.b16 %v1453
      %v1550 = vunpack.c.l.b16 %v1454
      %v1551 = vunpack.c.l.b16 %v1455
      %v1552 = vunpack.c.l.b16 %v1456
      %v1553 = vunpack.c.l.b16 %v1457
      %v1554 = vunpack.c.l.b16 %v1458
      %v1555 = vunpack.c.l.b16 %v1459
      %v1556 = vunpack.c.l.b16 %v1460
      %v1557 = vunpack.c.l.b16 %v1461
      %v1558 = vunpack.c.l.b16 %v1462
      %v1559 = vunpack.c.l.b16 %v1463
      %v1560 = vunpack.c.l.b16 %v1464
      %v1561 = vunpack.c.l.b16 %v1465
      %v1562 = vunpack.c.l.b16 %v1466
      %v1563 = vunpack.c.l.b16 %v1467
      %v1564 = vunpack.c.l.b16 %v1468
      %v1565 = vpack.c.b16 %v1518, %v1517
      %v1566 = vpack.c.b16 %v1519, %v1519
      %v1567 = vpack.c.b16 %v1521, %v1520
      %v1568 = vpack.c.b16 %v1522, %v1522
      %v1569 = vpack.c.b16 %v1524, %v1523
      %v1570 = vpack.c.b16 %v1525, %v1525
      %v1571 = vpack.c.b16 %v1527, %v1526
      %v1572 = vpack.c.b16 %v1528, %v1528
      %v1573 = vpack.c.b16 %v1530, %v1529
      %v1574 = vpack.c.b16 %v1531, %v1531
      %v1575 = vpack.c.b16 %v1533, %v1532
      %v1576 = vpack.c.b16 %v1534, %v1534
      %v1577 = vpack.c.b16 %v1536, %v1535
      %v1578 = vpack.c.b16 %v1537, %v1537
      %v1579 = vpack.c.b16 %v1539, %v1538
      %v1580 = vpack.c.b16 %v1540, %v1540
      %v1581 = vpack.c.b16 %v1542, %v1541
      %v1582 = vpack.c.b16 %v1543, %v1543
      %v1583 = vpack.c.b16 %v1545, %v1544
      %v1584 = vpack.c.b16 %v1546, %v1546
      %v1585 = vpack.c.b16 %v1548, %v1547
      %v1586 = vpack.c.b16 %v1549, %v1549
      %v1587 = vpack.c.b16 %v1551, %v1550
      %v1588 = vpack.c.b16 %v1552, %v1552
      %v1589 = vpack.c.b16 %v1554, %v1553
      %v1590 = vpack.c.b16 %v1555, %v1555
      %v1591 = vpack.c.b16 %v1557, %v1556
      %v1592 = vpack.c.b16 %v1558, %v1558
      %v1593 = vpack.c.b16 %v1560, %v1559
      %v1594 = vpack.c.b16 %v1561, %v1561
      %v1595 = vpack.c.b16 %v1563, %v1562
      %v1596 = vpack.c.b16 %v1564, %v1564
      %vm1597 = vcmask 1046528
      %v1598 = vrot.slane %v1565, 1
      %v1599 = vrot.slane %v1566, 1
      %v1600 = vsel %vm1597, %v1598, %v1599
      %v1601 = vrot.slane %v1567, 1
      %v1602 = vrot.slane %v1568, 1
      %v1603 = vsel %vm1597, %v1601, %v1602
      %v1604 = vrot.slane %v1569, 1
      %v1605 = vrot.slane %v1570, 1
      %v1606 = vsel %vm1597, %v1604, %v1605
      %v1607 = vrot.slane %v1571, 1
      %v1608 = vrot.slane %v1572, 1
      %v1609 = vsel %vm1597, %v1607, %v1608
      %v1610 = vrot.slane %v1573, 1
      %v1611 = vrot.slane %v1574, 1
      %v1612 = vsel %vm1597, %v1610, %v1611
      %v1613 = vrot.slane %v1575, 1
      %v1614 = vrot.slane %v1576, 1
      %v1615 = vsel %vm1597, %v1613, %v1614
      %v1616 = vrot.slane %v1577, 1
      %v1617 = vrot.slane %v1578, 1
      %v1618 = vsel %vm1597, %v1616, %v1617
      %v1619 = vrot.slane %v1579, 1
      %v1620 = vrot.slane %v1580, 1
      %v1621 = vsel %vm1597, %v1619, %v1620
      %v1622 = vrot.slane %v1581, 1
      %v1623 = vrot.slane %v1582, 1
      %v1624 = vsel %vm1597, %v1622, %v1623
      %v1625 = vrot.slane %v1583, 1
      %v1626 = vrot.slane %v1584, 1
      %v1627 = vsel %vm1597, %v1625, %v1626
      %v1628 = vrot.slane %v1585, 1
      %v1629 = vrot.slane %v1586, 1
      %v1630 = vsel %vm1597, %v1628, %v1629
      %v1631 = vrot.slane %v1587, 1
      %v1632 = vrot.slane %v1588, 1
      %v1633 = vsel %vm1597, %v1631, %v1632
      %v1634 = vrot.slane %v1589, 1
      %v1635 = vrot.slane %v1590, 1
      %v1636 = vsel %vm1597, %v1634, %v1635
      %v1637 = vrot.slane %v1591, 1
      %v1638 = vrot.slane %v1592, 1
      %v1639 = vsel %vm1597, %v1637, %v1638
      %v1640 = vrot.slane %v1593, 1
      %v1641 = vrot.slane %v1594, 1
      %v1642 = vsel %vm1597, %v1640, %v1641
      %v1643 = vrot.slane %v1595, 1
      %v1644 = vrot.slane %v1596, 1
      %v1645 = vsel %vm1597, %v1643, %v1644
      %1646 = vrot.lane.b32.xlu0 %v1600, 8
      %v1647 = vpop.permute.xlu0 %1646
      %1648 = vrot.lane.b32.xlu0 %v1603, 8
      %v1649 = vpop.permute.xlu0 %1648
      %1650 = vrot.lane.b32.xlu0 %v1606, 8
      %v1651 = vpop.permute.xlu0 %1650
      %1652 = vrot.lane.b32.xlu0 %v1609, 8
      %v1653 = vpop.permute.xlu0 %1652
      %1654 = vrot.lane.b32.xlu0 %v1612, 8
      %v1655 = vpop.permute.xlu0 %1654
      %1656 = vrot.lane.b32.xlu0 %v1615, 8
      %v1657 = vpop.permute.xlu0 %1656
      %1658 = vrot.lane.b32.xlu0 %v1618, 8
      %v1659 = vpop.permute.xlu0 %1658
      %1660 = vrot.lane.b32.xlu0 %v1621, 8
      %v1661 = vpop.permute.xlu0 %1660
      %1662 = vrot.lane.b32.xlu0 %v1624, 8
      %v1663 = vpop.permute.xlu0 %1662
      %1664 = vrot.lane.b32.xlu0 %v1627, 8
      %v1665 = vpop.permute.xlu0 %1664
      %1666 = vrot.lane.b32.xlu0 %v1630, 8
      %v1667 = vpop.permute.xlu0 %1666
      %1668 = vrot.lane.b32.xlu0 %v1633, 8
      %v1669 = vpop.permute.xlu0 %1668
      %1670 = vrot.lane.b32.xlu0 %v1636, 8
      %v1671 = vpop.permute.xlu0 %1670
      %1672 = vrot.lane.b32.xlu0 %v1639, 8
      %v1673 = vpop.permute.xlu0 %1672
      %1674 = vrot.lane.b32.xlu0 %v1642, 8
      %v1675 = vpop.permute.xlu0 %1674
      %1676 = vrot.lane.b32.xlu0 %v1645, 8
      %v1677 = vpop.permute.xlu0 %1676
      %vm1694 = vcmask 97344
      %1695 = vst.msk [vmem:[#allocation3] sm:$0xff] %vm1694, %v1647
      %1696 = vst.msk [vmem:[#allocation3 + $0x8] sm:$0xff] %vm1694, %v1649
      %1697 = vst.msk [vmem:[#allocation3 + $0x10] sm:$0xff] %vm1694, %v1651
      %1698 = vst.msk [vmem:[#allocation3 + $0x18] sm:$0xff] %vm1694, %v1653
      %1699 = vst.msk [vmem:[#allocation3 + $0x20] sm:$0xff] %vm1694, %v1655
      %1700 = vst.msk [vmem:[#allocation3 + $0x28] sm:$0xff] %vm1694, %v1657
      %1701 = vst.msk [vmem:[#allocation3 + $0x30] sm:$0xff] %vm1694, %v1659
      %1702 = vst.msk [vmem:[#allocation3 + $0x38] sm:$0xff] %vm1694, %v1661
      %1703 = vst.msk [vmem:[#allocation3 + $0x40] sm:$0xff] %vm1694, %v1663
      %1704 = vst.msk [vmem:[#allocation3 + $0x48] sm:$0xff] %vm1694, %v1665
      %1705 = vst.msk [vmem:[#allocation3 + $0x50] sm:$0xff] %vm1694, %v1667
      %1706 = vst.msk [vmem:[#allocation3 + $0x58] sm:$0xff] %vm1694, %v1669
      %1707 = vst.msk [vmem:[#allocation3 + $0x60] sm:$0xff] %vm1694, %v1671
      %1708 = vst.msk [vmem:[#allocation3 + $0x68] sm:$0xff] %vm1694, %v1673
      %1709 = vst.msk [vmem:[#allocation3 + $0x70] sm:$0xff] %vm1694, %v1675
      %1710 = vst.msk [vmem:[#allocation3 + $0x78] sm:$0xff] %vm1694, %v1677
      %v1711 = vld [vmem:[%s648] sm:$0xf]
      %v1712 = vld [vmem:[%s648 + $0x4] sm:$0xf]
      %v1713 = vld [vmem:[%s648 + $0xc] sm:$0xf]
      %v1714 = vld [vmem:[%s648 + $0x10] sm:$0xf]
      %v1715 = vld [vmem:[%s648 + $0x18] sm:$0xf]
      %v1716 = vld [vmem:[%s648 + $0x1c] sm:$0xf]
      %v1717 = vld [vmem:[%s648 + $0x24] sm:$0xf]
      %v1718 = vld [vmem:[%s648 + $0x28] sm:$0xf]
      %v1719 = vld [vmem:[%s648 + $0x30] sm:$0xf]
      %v1720 = vld [vmem:[%s648 + $0x34] sm:$0xf]
      %v1721 = vld [vmem:[%s648 + $0x3c] sm:$0xf]
      %v1722 = vld [vmem:[%s648 + $0x40] sm:$0xf]
      %v1723 = vld [vmem:[%s648 + $0x48] sm:$0xf]
      %v1724 = vld [vmem:[%s648 + $0x4c] sm:$0xf]
      %v1725 = vld [vmem:[%s648 + $0x54] sm:$0xf]
      %v1726 = vld [vmem:[%s648 + $0x58] sm:$0xf]
      %v1727 = vld [vmem:[%s648 + $0x60] sm:$0xf]
      %v1728 = vld [vmem:[%s648 + $0x64] sm:$0xf]
      %v1729 = vld [vmem:[%s648 + $0x6c] sm:$0xf]
      %v1730 = vld [vmem:[%s648 + $0x70] sm:$0xf]
      %v1731 = vld [vmem:[%s648 + $0x78] sm:$0xf]
      %v1732 = vld [vmem:[%s648 + $0x7c] sm:$0xf]
      %v1733 = vld [vmem:[%s648 + $0x84] sm:$0xf]
      %v1734 = vld [vmem:[%s648 + $0x88] sm:$0xf]
      %v1735 = vld [vmem:[%s648 + $0x90] sm:$0xf]
      %v1736 = vld [vmem:[%s648 + $0x94] sm:$0xf]
      %v1737 = vld [vmem:[%s648 + $0x9c] sm:$0xf]
      %v1738 = vld [vmem:[%s648 + $0xa0] sm:$0xf]
      %v1739 = vld [vmem:[%s648 + $0xa8] sm:$0xf]
      %v1740 = vld [vmem:[%s648 + $0xac] sm:$0xf]
      %v1741 = vld [vmem:[%s648 + $0xb4] sm:$0xf]
      %v1742 = vld [vmem:[%s648 + $0xb8] sm:$0xf]
      %v1775 = vunpack.c.l.b16 %v1711
      %v1776 = vunpack.c.l.b16 %v1712
      %v1777 = vunpack.c.l.b16 %v1713
      %v1778 = vunpack.c.l.b16 %v1714
      %v1779 = vunpack.c.l.b16 %v1715
      %v1780 = vunpack.c.l.b16 %v1716
      %v1781 = vunpack.c.l.b16 %v1717
      %v1782 = vunpack.c.l.b16 %v1718
      %v1783 = vunpack.c.l.b16 %v1719
      %v1784 = vunpack.c.l.b16 %v1720
      %v1785 = vunpack.c.l.b16 %v1721
      %v1786 = vunpack.c.l.b16 %v1722
      %v1787 = vunpack.c.l.b16 %v1723
      %v1788 = vunpack.c.l.b16 %v1724
      %v1789 = vunpack.c.l.b16 %v1725
      %v1790 = vunpack.c.l.b16 %v1726
      %v1791 = vunpack.c.l.b16 %v1727
      %v1792 = vunpack.c.l.b16 %v1728
      %v1793 = vunpack.c.l.b16 %v1729
      %v1794 = vunpack.c.l.b16 %v1730
      %v1795 = vunpack.c.l.b16 %v1731
      %v1796 = vunpack.c.l.b16 %v1732
      %v1797 = vunpack.c.l.b16 %v1733
      %v1798 = vunpack.c.l.b16 %v1734
      %v1799 = vunpack.c.l.b16 %v1735
      %v1800 = vunpack.c.l.b16 %v1736
      %v1801 = vunpack.c.l.b16 %v1737
      %v1802 = vunpack.c.l.b16 %v1738
      %v1803 = vunpack.c.l.b16 %v1739
      %v1804 = vunpack.c.l.b16 %v1740
      %v1805 = vunpack.c.l.b16 %v1741
      %v1806 = vunpack.c.l.b16 %v1742
      %v1807 = vpack.c.b16 %v1776, %v1775
      %v1808 = vpack.c.b16 %v1778, %v1777
      %v1809 = vpack.c.b16 %v1780, %v1779
      %v1810 = vpack.c.b16 %v1782, %v1781
      %v1811 = vpack.c.b16 %v1784, %v1783
      %v1812 = vpack.c.b16 %v1786, %v1785
      %v1813 = vpack.c.b16 %v1788, %v1787
      %v1814 = vpack.c.b16 %v1790, %v1789
      %v1815 = vpack.c.b16 %v1792, %v1791
      %v1816 = vpack.c.b16 %v1794, %v1793
      %v1817 = vpack.c.b16 %v1796, %v1795
      %v1818 = vpack.c.b16 %v1798, %v1797
      %v1819 = vpack.c.b16 %v1800, %v1799
      %v1820 = vpack.c.b16 %v1802, %v1801
      %v1821 = vpack.c.b16 %v1804, %v1803
      %v1822 = vpack.c.b16 %v1806, %v1805
      %1823 = vrot.lane.b32.xlu0 %v1807, 12
      %v1824 = vpop.permute.xlu0 %1823
      %1825 = vrot.lane.b32.xlu0 %v1808, 12
      %v1826 = vpop.permute.xlu0 %1825
      %1827 = vrot.lane.b32.xlu0 %v1809, 12
      %v1828 = vpop.permute.xlu0 %1827
      %1829 = vrot.lane.b32.xlu0 %v1810, 12
      %v1830 = vpop.permute.xlu0 %1829
      %1831 = vrot.lane.b32.xlu0 %v1811, 12
      %v1832 = vpop.permute.xlu0 %1831
      %1833 = vrot.lane.b32.xlu0 %v1812, 12
      %v1834 = vpop.permute.xlu0 %1833
      %1835 = vrot.lane.b32.xlu0 %v1813, 12
      %v1836 = vpop.permute.xlu0 %1835
      %1837 = vrot.lane.b32.xlu0 %v1814, 12
      %v1838 = vpop.permute.xlu0 %1837
      %1839 = vrot.lane.b32.xlu0 %v1815, 12
      %v1840 = vpop.permute.xlu0 %1839
      %1841 = vrot.lane.b32.xlu0 %v1816, 12
      %v1842 = vpop.permute.xlu0 %1841
      %1843 = vrot.lane.b32.xlu0 %v1817, 12
      %v1844 = vpop.permute.xlu0 %1843
      %1845 = vrot.lane.b32.xlu0 %v1818, 12
      %v1846 = vpop.permute.xlu0 %1845
      %1847 = vrot.lane.b32.xlu0 %v1819, 12
      %v1848 = vpop.permute.xlu0 %1847
      %1849 = vrot.lane.b32.xlu0 %v1820, 12
      %v1850 = vpop.permute.xlu0 %1849
      %1851 = vrot.lane.b32.xlu0 %v1821, 12
      %v1852 = vpop.permute.xlu0 %1851
      %1853 = vrot.lane.b32.xlu0 %v1822, 12
      %v1854 = vpop.permute.xlu0 %1853
      %vm1871 = vcmask 130144
      %1872 = vst.msk [vmem:[#allocation3] sm:$0xff] %vm1871, %v1824
      %1873 = vst.msk [vmem:[#allocation3 + $0x8] sm:$0xff] %vm1871, %v1826
      %1874 = vst.msk [vmem:[#allocation3 + $0x10] sm:$0xff] %vm1871, %v1828
      %1875 = vst.msk [vmem:[#allocation3 + $0x18] sm:$0xff] %vm1871, %v1830
      %1876 = vst.msk [vmem:[#allocation3 + $0x20] sm:$0xff] %vm1871, %v1832
      %1877 = vst.msk [vmem:[#allocation3 + $0x28] sm:$0xff] %vm1871, %v1834
      %1878 = vst.msk [vmem:[#allocation3 + $0x30] sm:$0xff] %vm1871, %v1836
      %1879 = vst.msk [vmem:[#allocation3 + $0x38] sm:$0xff] %vm1871, %v1838
      %1880 = vst.msk [vmem:[#allocation3 + $0x40] sm:$0xff] %vm1871, %v1840
      %1881 = vst.msk [vmem:[#allocation3 + $0x48] sm:$0xff] %vm1871, %v1842
      %1882 = vst.msk [vmem:[#allocation3 + $0x50] sm:$0xff] %vm1871, %v1844
      %1883 = vst.msk [vmem:[#allocation3 + $0x58] sm:$0xff] %vm1871, %v1846
      %1884 = vst.msk [vmem:[#allocation3 + $0x60] sm:$0xff] %vm1871, %v1848
      %1885 = vst.msk [vmem:[#allocation3 + $0x68] sm:$0xff] %vm1871, %v1850
      %1886 = vst.msk [vmem:[#allocation3 + $0x70] sm:$0xff] %vm1871, %v1852
      %1887 = vst.msk [vmem:[#allocation3 + $0x78] sm:$0xff] %vm1871, %v1854
      %v1888 = vld [vmem:[%s648] sm:$0xf]
      %v1889 = vld [vmem:[%s648 + $0x4] sm:$0xf]
      %v1890 = vld [vmem:[%s648 + $0x8] sm:$0x1]
      %v1891 = vld [vmem:[%s648 + $0xc] sm:$0xf]
      %v1892 = vld [vmem:[%s648 + $0x10] sm:$0xf]
      %v1893 = vld [vmem:[%s648 + $0x14] sm:$0x1]
      %v1894 = vld [vmem:[%s648 + $0x18] sm:$0xf]
      %v1895 = vld [vmem:[%s648 + $0x1c] sm:$0xf]
      %v1896 = vld [vmem:[%s648 + $0x20] sm:$0x1]
      %v1897 = vld [vmem:[%s648 + $0x24] sm:$0xf]
      %v1898 = vld [vmem:[%s648 + $0x28] sm:$0xf]
      %v1899 = vld [vmem:[%s648 + $0x2c] sm:$0x1]
      %v1900 = vld [vmem:[%s648 + $0x30] sm:$0xf]
      %v1901 = vld [vmem:[%s648 + $0x34] sm:$0xf]
      %v1902 = vld [vmem:[%s648 + $0x38] sm:$0x1]
      %v1903 = vld [vmem:[%s648 + $0x3c] sm:$0xf]
      %v1904 = vld [vmem:[%s648 + $0x40] sm:$0xf]
      %v1905 = vld [vmem:[%s648 + $0x44] sm:$0x1]
      %v1906 = vld [vmem:[%s648 + $0x48] sm:$0xf]
      %v1907 = vld [vmem:[%s648 + $0x4c] sm:$0xf]
      %v1908 = vld [vmem:[%s648 + $0x50] sm:$0x1]
      %v1909 = vld [vmem:[%s648 + $0x54] sm:$0xf]
      %v1910 = vld [vmem:[%s648 + $0x58] sm:$0xf]
      %v1911 = vld [vmem:[%s648 + $0x5c] sm:$0x1]
      %v1912 = vld [vmem:[%s648 + $0x60] sm:$0xf]
      %v1913 = vld [vmem:[%s648 + $0x64] sm:$0xf]
      %v1914 = vld [vmem:[%s648 + $0x68] sm:$0x1]
      %v1915 = vld [vmem:[%s648 + $0x6c] sm:$0xf]
      %v1916 = vld [vmem:[%s648 + $0x70] sm:$0xf]
      %v1917 = vld [vmem:[%s648 + $0x74] sm:$0x1]
      %v1918 = vld [vmem:[%s648 + $0x78] sm:$0xf]
      %v1919 = vld [vmem:[%s648 + $0x7c] sm:$0xf]
      %v1920 = vld [vmem:[%s648 + $0x80] sm:$0x1]
      %v1921 = vld [vmem:[%s648 + $0x84] sm:$0xf]
      %v1922 = vld [vmem:[%s648 + $0x88] sm:$0xf]
      %v1923 = vld [vmem:[%s648 + $0x8c] sm:$0x1]
      %v1924 = vld [vmem:[%s648 + $0x90] sm:$0xf]
      %v1925 = vld [vmem:[%s648 + $0x94] sm:$0xf]
      %v1926 = vld [vmem:[%s648 + $0x98] sm:$0x1]
      %v1927 = vld [vmem:[%s648 + $0x9c] sm:$0xf]
      %v1928 = vld [vmem:[%s648 + $0xa0] sm:$0xf]
      %v1929 = vld [vmem:[%s648 + $0xa4] sm:$0x1]
      %v1930 = vld [vmem:[%s648 + $0xa8] sm:$0xf]
      %v1931 = vld [vmem:[%s648 + $0xac] sm:$0xf]
      %v1932 = vld [vmem:[%s648 + $0xb0] sm:$0x1]
      %v1933 = vld [vmem:[%s648 + $0xb4] sm:$0xf]
      %v1934 = vld [vmem:[%s648 + $0xb8] sm:$0xf]
      %v1935 = vld [vmem:[%s648 + $0xbc] sm:$0x1]
      %v1984 = vunpack.c.l.b16 %v1888
      %v1985 = vunpack.c.l.b16 %v1889
      %v1986 = vunpack.c.l.b16 %v1890
      %v1987 = vunpack.c.l.b16 %v1891
      %v1988 = vunpack.c.l.b16 %v1892
      %v1989 = vunpack.c.l.b16 %v1893
      %v1990 = vunpack.c.l.b16 %v1894
      %v1991 = vunpack.c.l.b16 %v1895
      %v1992 = vunpack.c.l.b16 %v1896
      %v1993 = vunpack.c.l.b16 %v1897
      %v1994 = vunpack.c.l.b16 %v1898
      %v1995 = vunpack.c.l.b16 %v1899
      %v1996 = vunpack.c.l.b16 %v1900
      %v1997 = vunpack.c.l.b16 %v1901
      %v1998 = vunpack.c.l.b16 %v1902
      %v1999 = vunpack.c.l.b16 %v1903
      %v2000 = vunpack.c.l.b16 %v1904
      %v2001 = vunpack.c.l.b16 %v1905
      %v2002 = vunpack.c.l.b16 %v1906
      %v2003 = vunpack.c.l.b16 %v1907
      %v2004 = vunpack.c.l.b16 %v1908
      %v2005 = vunpack.c.l.b16 %v1909
      %v2006 = vunpack.c.l.b16 %v1910
      %v2007 = vunpack.c.l.b16 %v1911
      %v2008 = vunpack.c.l.b16 %v1912
      %v2009 = vunpack.c.l.b16 %v1913
      %v2010 = vunpack.c.l.b16 %v1914
      %v2011 = vunpack.c.l.b16 %v1915
      %v2012 = vunpack.c.l.b16 %v1916
      %v2013 = vunpack.c.l.b16 %v1917
      %v2014 = vunpack.c.l.b16 %v1918
      %v2015 = vunpack.c.l.b16 %v1919
      %v2016 = vunpack.c.l.b16 %v1920
      %v2017 = vunpack.c.l.b16 %v1921
      %v2018 = vunpack.c.l.b16 %v1922
      %v2019 = vunpack.c.l.b16 %v1923
      %v2020 = vunpack.c.l.b16 %v1924
      %v2021 = vunpack.c.l.b16 %v1925
      %v2022 = vunpack.c.l.b16 %v1926
      %v2023 = vunpack.c.l.b16 %v1927
      %v2024 = vunpack.c.l.b16 %v1928
      %v2025 = vunpack.c.l.b16 %v1929
      %v2026 = vunpack.c.l.b16 %v1930
      %v2027 = vunpack.c.l.b16 %v1931
      %v2028 = vunpack.c.l.b16 %v1932
      %v2029 = vunpack.c.l.b16 %v1933
      %v2030 = vunpack.c.l.b16 %v1934
      %v2031 = vunpack.c.l.b16 %v1935
      %v2032 = vpack.c.b16 %v1985, %v1984
      %v2033 = vpack.c.b16 %v1986, %v1986
      %v2034 = vpack.c.b16 %v1988, %v1987
      %v2035 = vpack.c.b16 %v1989, %v1989
      %v2036 = vpack.c.b16 %v1991, %v1990
      %v2037 = vpack.c.b16 %v1992, %v1992
      %v2038 = vpack.c.b16 %v1994, %v1993
      %v2039 = vpack.c.b16 %v1995, %v1995
      %v2040 = vpack.c.b16 %v1997, %v1996
      %v2041 = vpack.c.b16 %v1998, %v1998
      %v2042 = vpack.c.b16 %v2000, %v1999
      %v2043 = vpack.c.b16 %v2001, %v2001
      %v2044 = vpack.c.b16 %v2003, %v2002
      %v2045 = vpack.c.b16 %v2004, %v2004
      %v2046 = vpack.c.b16 %v2006, %v2005
      %v2047 = vpack.c.b16 %v2007, %v2007
      %v2048 = vpack.c.b16 %v2009, %v2008
      %v2049 = vpack.c.b16 %v2010, %v2010
      %v2050 = vpack.c.b16 %v2012, %v2011
      %v2051 = vpack.c.b16 %v2013, %v2013
      %v2052 = vpack.c.b16 %v2015, %v2014
      %v2053 = vpack.c.b16 %v2016, %v2016
      %v2054 = vpack.c.b16 %v2018, %v2017
      %v2055 = vpack.c.b16 %v2019, %v2019
      %v2056 = vpack.c.b16 %v2021, %v2020
      %v2057 = vpack.c.b16 %v2022, %v2022
      %v2058 = vpack.c.b16 %v2024, %v2023
      %v2059 = vpack.c.b16 %v2025, %v2025
      %v2060 = vpack.c.b16 %v2027, %v2026
      %v2061 = vpack.c.b16 %v2028, %v2028
      %v2062 = vpack.c.b16 %v2030, %v2029
      %v2063 = vpack.c.b16 %v2031, %v2031
      %v2065 = vshrl.u32 %v2032, 16
      %v2067 = vshll.u32 %v2032, 16
      %v2069 = vrot.slane %v2067, 1
      %v2070 = vor.u32 %v2065, %v2069
      %v2072 = vshll.u32 %v2033, 16
      %v2074 = vrot.slane %v2072, 1
      %v2075 = vsel %vm1163, %v2070, %v2074
      %v2077 = vshrl.u32 %v2034, 16
      %v2079 = vshll.u32 %v2034, 16
      %v2081 = vrot.slane %v2079, 1
      %v2082 = vor.u32 %v2077, %v2081
      %v2084 = vshll.u32 %v2035, 16
      %v2086 = vrot.slane %v2084, 1
      %v2087 = vsel %vm1163, %v2082, %v2086
      %v2089 = vshrl.u32 %v2036, 16
      %v2091 = vshll.u32 %v2036, 16
      %v2093 = vrot.slane %v2091, 1
      %v2094 = vor.u32 %v2089, %v2093
      %v2096 = vshll.u32 %v2037, 16
      %v2098 = vrot.slane %v2096, 1
      %v2099 = vsel %vm1163, %v2094, %v2098
      %v2101 = vshrl.u32 %v2038, 16
      %v2103 = vshll.u32 %v2038, 16
      %v2105 = vrot.slane %v2103, 1
      %v2106 = vor.u32 %v2101, %v2105
      %v2108 = vshll.u32 %v2039, 16
      %v2110 = vrot.slane %v2108, 1
      %v2111 = vsel %vm1163, %v2106, %v2110
      %v2113 = vshrl.u32 %v2040, 16
      %v2115 = vshll.u32 %v2040, 16
      %v2117 = vrot.slane %v2115, 1
      %v2118 = vor.u32 %v2113, %v2117
      %v2120 = vshll.u32 %v2041, 16
      %v2122 = vrot.slane %v2120, 1
      %v2123 = vsel %vm1163, %v2118, %v2122
      %v2125 = vshrl.u32 %v2042, 16
      %v2127 = vshll.u32 %v2042, 16
      %v2129 = vrot.slane %v2127, 1
      %v2130 = vor.u32 %v2125, %v2129
      %v2132 = vshll.u32 %v2043, 16
      %v2134 = vrot.slane %v2132, 1
      %v2135 = vsel %vm1163, %v2130, %v2134
      %v2137 = vshrl.u32 %v2044, 16
      %v2139 = vshll.u32 %v2044, 16
      %v2141 = vrot.slane %v2139, 1
      %v2142 = vor.u32 %v2137, %v2141
      %v2144 = vshll.u32 %v2045, 16
      %v2146 = vrot.slane %v2144, 1
      %v2147 = vsel %vm1163, %v2142, %v2146
      %v2149 = vshrl.u32 %v2046, 16
      %v2151 = vshll.u32 %v2046, 16
      %v2153 = vrot.slane %v2151, 1
      %v2154 = vor.u32 %v2149, %v2153
      %v2156 = vshll.u32 %v2047, 16
      %v2158 = vrot.slane %v2156, 1
      %v2159 = vsel %vm1163, %v2154, %v2158
      %v2161 = vshrl.u32 %v2048, 16
      %v2163 = vshll.u32 %v2048, 16
      %v2165 = vrot.slane %v2163, 1
      %v2166 = vor.u32 %v2161, %v2165
      %v2168 = vshll.u32 %v2049, 16
      %v2170 = vrot.slane %v2168, 1
      %v2171 = vsel %vm1163, %v2166, %v2170
      %v2173 = vshrl.u32 %v2050, 16
      %v2175 = vshll.u32 %v2050, 16
      %v2177 = vrot.slane %v2175, 1
      %v2178 = vor.u32 %v2173, %v2177
      %v2180 = vshll.u32 %v2051, 16
      %v2182 = vrot.slane %v2180, 1
      %v2183 = vsel %vm1163, %v2178, %v2182
      %v2185 = vshrl.u32 %v2052, 16
      %v2187 = vshll.u32 %v2052, 16
      %v2189 = vrot.slane %v2187, 1
      %v2190 = vor.u32 %v2185, %v2189
      %v2192 = vshll.u32 %v2053, 16
      %v2194 = vrot.slane %v2192, 1
      %v2195 = vsel %vm1163, %v2190, %v2194
      %v2197 = vshrl.u32 %v2054, 16
      %v2199 = vshll.u32 %v2054, 16
      %v2201 = vrot.slane %v2199, 1
      %v2202 = vor.u32 %v2197, %v2201
      %v2204 = vshll.u32 %v2055, 16
      %v2206 = vrot.slane %v2204, 1
      %v2207 = vsel %vm1163, %v2202, %v2206
      %v2209 = vshrl.u32 %v2056, 16
      %v2211 = vshll.u32 %v2056, 16
      %v2213 = vrot.slane %v2211, 1
      %v2214 = vor.u32 %v2209, %v2213
      %v2216 = vshll.u32 %v2057, 16
      %v2218 = vrot.slane %v2216, 1
      %v2219 = vsel %vm1163, %v2214, %v2218
      %v2221 = vshrl.u32 %v2058, 16
      %v2223 = vshll.u32 %v2058, 16
      %v2225 = vrot.slane %v2223, 1
      %v2226 = vor.u32 %v2221, %v2225
      %v2228 = vshll.u32 %v2059, 16
      %v2230 = vrot.slane %v2228, 1
      %v2231 = vsel %vm1163, %v2226, %v2230
      %v2233 = vshrl.u32 %v2060, 16
      %v2235 = vshll.u32 %v2060, 16
      %v2237 = vrot.slane %v2235, 1
      %v2238 = vor.u32 %v2233, %v2237
      %v2240 = vshll.u32 %v2061, 16
      %v2242 = vrot.slane %v2240, 1
      %v2243 = vsel %vm1163, %v2238, %v2242
      %v2245 = vshrl.u32 %v2062, 16
      %v2247 = vshll.u32 %v2062, 16
      %v2249 = vrot.slane %v2247, 1
      %v2250 = vor.u32 %v2245, %v2249
      %v2252 = vshll.u32 %v2063, 16
      %v2254 = vrot.slane %v2252, 1
      %v2255 = vsel %vm1163, %v2250, %v2254
      %2256 = vrot.lane.b32.xlu0 %v2075, 16
      %v2257 = vpop.permute.xlu0 %2256
      %2258 = vrot.lane.b32.xlu0 %v2087, 16
      %v2259 = vpop.permute.xlu0 %2258
      %2260 = vrot.lane.b32.xlu0 %v2099, 16
      %v2261 = vpop.permute.xlu0 %2260
      %2262 = vrot.lane.b32.xlu0 %v2111, 16
      %v2263 = vpop.permute.xlu0 %2262
      %2264 = vrot.lane.b32.xlu0 %v2123, 16
      %v2265 = vpop.permute.xlu0 %2264
      %2266 = vrot.lane.b32.xlu0 %v2135, 16
      %v2267 = vpop.permute.xlu0 %2266
      %2268 = vrot.lane.b32.xlu0 %v2147, 16
      %v2269 = vpop.permute.xlu0 %2268
      %2270 = vrot.lane.b32.xlu0 %v2159, 16
      %v2271 = vpop.permute.xlu0 %2270
      %2272 = vrot.lane.b32.xlu0 %v2171, 16
      %v2273 = vpop.permute.xlu0 %2272
      %2274 = vrot.lane.b32.xlu0 %v2183, 16
      %v2275 = vpop.permute.xlu0 %2274
      %2276 = vrot.lane.b32.xlu0 %v2195, 16
      %v2277 = vpop.permute.xlu0 %2276
      %2278 = vrot.lane.b32.xlu0 %v2207, 16
      %v2279 = vpop.permute.xlu0 %2278
      %2280 = vrot.lane.b32.xlu0 %v2219, 16
      %v2281 = vpop.permute.xlu0 %2280
      %2282 = vrot.lane.b32.xlu0 %v2231, 16
      %v2283 = vpop.permute.xlu0 %2282
      %2284 = vrot.lane.b32.xlu0 %v2243, 16
      %v2285 = vpop.permute.xlu0 %2284
      %2286 = vrot.lane.b32.xlu0 %v2255, 16
      %v2287 = vpop.permute.xlu0 %2286
      %vm2304 = vcmask 162944
      %2305 = vst.msk [vmem:[#allocation3] sm:$0xff] %vm2304, %v2257
      %2306 = vst.msk [vmem:[#allocation3 + $0x8] sm:$0xff] %vm2304, %v2259
      %2307 = vst.msk [vmem:[#allocation3 + $0x10] sm:$0xff] %vm2304, %v2261
      %2308 = vst.msk [vmem:[#allocation3 + $0x18] sm:$0xff] %vm2304, %v2263
      %2309 = vst.msk [vmem:[#allocation3 + $0x20] sm:$0xff] %vm2304, %v2265
      %2310 = vst.msk [vmem:[#allocation3 + $0x28] sm:$0xff] %vm2304, %v2267
      %2311 = vst.msk [vmem:[#allocation3 + $0x30] sm:$0xff] %vm2304, %v2269
      %2312 = vst.msk [vmem:[#allocation3 + $0x38] sm:$0xff] %vm2304, %v2271
      %2313 = vst.msk [vmem:[#allocation3 + $0x40] sm:$0xff] %vm2304, %v2273
      %2314 = vst.msk [vmem:[#allocation3 + $0x48] sm:$0xff] %vm2304, %v2275
      %2315 = vst.msk [vmem:[#allocation3 + $0x50] sm:$0xff] %vm2304, %v2277
      %2316 = vst.msk [vmem:[#allocation3 + $0x58] sm:$0xff] %vm2304, %v2279
      %2317 = vst.msk [vmem:[#allocation3 + $0x60] sm:$0xff] %vm2304, %v2281
      %2318 = vst.msk [vmem:[#allocation3 + $0x68] sm:$0xff] %vm2304, %v2283
      %2319 = vst.msk [vmem:[#allocation3 + $0x70] sm:$0xff] %vm2304, %v2285
      %2320 = vst.msk [vmem:[#allocation3 + $0x78] sm:$0xff] %vm2304, %v2287
      %v2321 = vld [vmem:[%s648] sm:$0xe]
      %v2322 = vld [vmem:[%s648 + $0x4] sm:$0xf]
      %v2323 = vld [vmem:[%s648 + $0x8] sm:$0x1]
      %v2324 = vld [vmem:[%s648 + $0xc] sm:$0xe]
      %v2325 = vld [vmem:[%s648 + $0x10] sm:$0xf]
      %v2326 = vld [vmem:[%s648 + $0x14] sm:$0x1]
      %v2327 = vld [vmem:[%s648 + $0x18] sm:$0xe]
      %v2328 = vld [vmem:[%s648 + $0x1c] sm:$0xf]
      %v2329 = vld [vmem:[%s648 + $0x20] sm:$0x1]
      %v2330 = vld [vmem:[%s648 + $0x24] sm:$0xe]
      %v2331 = vld [vmem:[%s648 + $0x28] sm:$0xf]
      %v2332 = vld [vmem:[%s648 + $0x2c] sm:$0x1]
      %v2333 = vld [vmem:[%s648 + $0x30] sm:$0xe]
      %v2334 = vld [vmem:[%s648 + $0x34] sm:$0xf]
      %v2335 = vld [vmem:[%s648 + $0x38] sm:$0x1]
      %v2336 = vld [vmem:[%s648 + $0x3c] sm:$0xe]
      %v2337 = vld [vmem:[%s648 + $0x40] sm:$0xf]
      %v2338 = vld [vmem:[%s648 + $0x44] sm:$0x1]
      %v2339 = vld [vmem:[%s648 + $0x48] sm:$0xe]
      %v2340 = vld [vmem:[%s648 + $0x4c] sm:$0xf]
      %v2341 = vld [vmem:[%s648 + $0x50] sm:$0x1]
      %v2342 = vld [vmem:[%s648 + $0x54] sm:$0xe]
      %v2343 = vld [vmem:[%s648 + $0x58] sm:$0xf]
      %v2344 = vld [vmem:[%s648 + $0x5c] sm:$0x1]
      %v2345 = vld [vmem:[%s648 + $0x60] sm:$0xe]
      %v2346 = vld [vmem:[%s648 + $0x64] sm:$0xf]
      %v2347 = vld [vmem:[%s648 + $0x68] sm:$0x1]
      %v2348 = vld [vmem:[%s648 + $0x6c] sm:$0xe]
      %v2349 = vld [vmem:[%s648 + $0x70] sm:$0xf]
      %v2350 = vld [vmem:[%s648 + $0x74] sm:$0x1]
      %v2351 = vld [vmem:[%s648 + $0x78] sm:$0xe]
      %v2352 = vld [vmem:[%s648 + $0x7c] sm:$0xf]
      %v2353 = vld [vmem:[%s648 + $0x80] sm:$0x1]
      %v2354 = vld [vmem:[%s648 + $0x84] sm:$0xe]
      %v2355 = vld [vmem:[%s648 + $0x88] sm:$0xf]
      %v2356 = vld [vmem:[%s648 + $0x8c] sm:$0x1]
      %v2357 = vld [vmem:[%s648 + $0x90] sm:$0xe]
      %v2358 = vld [vmem:[%s648 + $0x94] sm:$0xf]
      %v2359 = vld [vmem:[%s648 + $0x98] sm:$0x1]
      %v2360 = vld [vmem:[%s648 + $0x9c] sm:$0xe]
      %v2361 = vld [vmem:[%s648 + $0xa0] sm:$0xf]
      %v2362 = vld [vmem:[%s648 + $0xa4] sm:$0x1]
      %v2363 = vld [vmem:[%s648 + $0xa8] sm:$0xe]
      %v2364 = vld [vmem:[%s648 + $0xac] sm:$0xf]
      %v2365 = vld [vmem:[%s648 + $0xb0] sm:$0x1]
      %v2366 = vld [vmem:[%s648 + $0xb4] sm:$0xe]
      %v2367 = vld [vmem:[%s648 + $0xb8] sm:$0xf]
      %v2368 = vld [vmem:[%s648 + $0xbc] sm:$0x1]
      %v2417 = vunpack.c.l.b16 %v2321
      %v2418 = vunpack.c.l.b16 %v2322
      %v2419 = vunpack.c.l.b16 %v2323
      %v2420 = vunpack.c.l.b16 %v2324
      %v2421 = vunpack.c.l.b16 %v2325
      %v2422 = vunpack.c.l.b16 %v2326
      %v2423 = vunpack.c.l.b16 %v2327
      %v2424 = vunpack.c.l.b16 %v2328
      %v2425 = vunpack.c.l.b16 %v2329
      %v2426 = vunpack.c.l.b16 %v2330
      %v2427 = vunpack.c.l.b16 %v2331
      %v2428 = vunpack.c.l.b16 %v2332
      %v2429 = vunpack.c.l.b16 %v2333
      %v2430 = vunpack.c.l.b16 %v2334
      %v2431 = vunpack.c.l.b16 %v2335
      %v2432 = vunpack.c.l.b16 %v2336
      %v2433 = vunpack.c.l.b16 %v2337
      %v2434 = vunpack.c.l.b16 %v2338
      %v2435 = vunpack.c.l.b16 %v2339
      %v2436 = vunpack.c.l.b16 %v2340
      %v2437 = vunpack.c.l.b16 %v2341
      %v2438 = vunpack.c.l.b16 %v2342
      %v2439 = vunpack.c.l.b16 %v2343
      %v2440 = vunpack.c.l.b16 %v2344
      %v2441 = vunpack.c.l.b16 %v2345
      %v2442 = vunpack.c.l.b16 %v2346
      %v2443 = vunpack.c.l.b16 %v2347
      %v2444 = vunpack.c.l.b16 %v2348
      %v2445 = vunpack.c.l.b16 %v2349
      %v2446 = vunpack.c.l.b16 %v2350
      %v2447 = vunpack.c.l.b16 %v2351
      %v2448 = vunpack.c.l.b16 %v2352
      %v2449 = vunpack.c.l.b16 %v2353
      %v2450 = vunpack.c.l.b16 %v2354
      %v2451 = vunpack.c.l.b16 %v2355
      %v2452 = vunpack.c.l.b16 %v2356
      %v2453 = vunpack.c.l.b16 %v2357
      %v2454 = vunpack.c.l.b16 %v2358
      %v2455 = vunpack.c.l.b16 %v2359
      %v2456 = vunpack.c.l.b16 %v2360
      %v2457 = vunpack.c.l.b16 %v2361
      %v2458 = vunpack.c.l.b16 %v2362
      %v2459 = vunpack.c.l.b16 %v2363
      %v2460 = vunpack.c.l.b16 %v2364
      %v2461 = vunpack.c.l.b16 %v2365
      %v2462 = vunpack.c.l.b16 %v2366
      %v2463 = vunpack.c.l.b16 %v2367
      %v2464 = vunpack.c.l.b16 %v2368
      %v2465 = vpack.c.b16 %v2418, %v2417
      %v2466 = vpack.c.b16 %v2419, %v2419
      %v2467 = vpack.c.b16 %v2421, %v2420
      %v2468 = vpack.c.b16 %v2422, %v2422
      %v2469 = vpack.c.b16 %v2424, %v2423
      %v2470 = vpack.c.b16 %v2425, %v2425
      %v2471 = vpack.c.b16 %v2427, %v2426
      %v2472 = vpack.c.b16 %v2428, %v2428
      %v2473 = vpack.c.b16 %v2430, %v2429
      %v2474 = vpack.c.b16 %v2431, %v2431
      %v2475 = vpack.c.b16 %v2433, %v2432
      %v2476 = vpack.c.b16 %v2434, %v2434
      %v2477 = vpack.c.b16 %v2436, %v2435
      %v2478 = vpack.c.b16 %v2437, %v2437
      %v2479 = vpack.c.b16 %v2439, %v2438
      %v2480 = vpack.c.b16 %v2440, %v2440
      %v2481 = vpack.c.b16 %v2442, %v2441
      %v2482 = vpack.c.b16 %v2443, %v2443
      %v2483 = vpack.c.b16 %v2445, %v2444
      %v2484 = vpack.c.b16 %v2446, %v2446
      %v2485 = vpack.c.b16 %v2448, %v2447
      %v2486 = vpack.c.b16 %v2449, %v2449
      %v2487 = vpack.c.b16 %v2451, %v2450
      %v2488 = vpack.c.b16 %v2452, %v2452
      %v2489 = vpack.c.b16 %v2454, %v2453
      %v2490 = vpack.c.b16 %v2455, %v2455
      %v2491 = vpack.c.b16 %v2457, %v2456
      %v2492 = vpack.c.b16 %v2458, %v2458
      %v2493 = vpack.c.b16 %v2460, %v2459
      %v2494 = vpack.c.b16 %v2461, %v2461
      %v2495 = vpack.c.b16 %v2463, %v2462
      %v2496 = vpack.c.b16 %v2464, %v2464
      %v2497 = vrot.slane %v2465, 1
      %v2498 = vrot.slane %v2466, 1
      %v2499 = vsel %vm1597, %v2497, %v2498
      %v2500 = vrot.slane %v2467, 1
      %v2501 = vrot.slane %v2468, 1
      %v2502 = vsel %vm1597, %v2500, %v2501
      %v2503 = vrot.slane %v2469, 1
      %v2504 = vrot.slane %v2470, 1
      %v2505 = vsel %vm1597, %v2503, %v2504
      %v2506 = vrot.slane %v2471, 1
      %v2507 = vrot.slane %v2472, 1
      %v2508 = vsel %vm1597, %v2506, %v2507
      %v2509 = vrot.slane %v2473, 1
      %v2510 = vrot.slane %v2474, 1
      %v2511 = vsel %vm1597, %v2509, %v2510
      %v2512 = vrot.slane %v2475, 1
      %v2513 = vrot.slane %v2476, 1
      %v2514 = vsel %vm1597, %v2512, %v2513
      %v2515 = vrot.slane %v2477, 1
      %v2516 = vrot.slane %v2478, 1
      %v2517 = vsel %vm1597, %v2515, %v2516
      %v2518 = vrot.slane %v2479, 1
      %v2519 = vrot.slane %v2480, 1
      %v2520 = vsel %vm1597, %v2518, %v2519
      %v2521 = vrot.slane %v2481, 1
      %v2522 = vrot.slane %v2482, 1
      %v2523 = vsel %vm1597, %v2521, %v2522
      %v2524 = vrot.slane %v2483, 1
      %v2525 = vrot.slane %v2484, 1
      %v2526 = vsel %vm1597, %v2524, %v2525
      %v2527 = vrot.slane %v2485, 1
      %v2528 = vrot.slane %v2486, 1
      %v2529 = vsel %vm1597, %v2527, %v2528
      %v2530 = vrot.slane %v2487, 1
      %v2531 = vrot.slane %v2488, 1
      %v2532 = vsel %vm1597, %v2530, %v2531
      %v2533 = vrot.slane %v2489, 1
      %v2534 = vrot.slane %v2490, 1
      %v2535 = vsel %vm1597, %v2533, %v2534
      %v2536 = vrot.slane %v2491, 1
      %v2537 = vrot.slane %v2492, 1
      %v2538 = vsel %vm1597, %v2536, %v2537
      %v2539 = vrot.slane %v2493, 1
      %v2540 = vrot.slane %v2494, 1
      %v2541 = vsel %vm1597, %v2539, %v2540
      %v2542 = vrot.slane %v2495, 1
      %v2543 = vrot.slane %v2496, 1
      %v2544 = vsel %vm1597, %v2542, %v2543
      %2545 = vrot.lane.b32.xlu0 %v2499, 20
      %v2546 = vpop.permute.xlu0 %2545
      %2547 = vrot.lane.b32.xlu0 %v2502, 20
      %v2548 = vpop.permute.xlu0 %2547
      %2549 = vrot.lane.b32.xlu0 %v2505, 20
      %v2550 = vpop.permute.xlu0 %2549
      %2551 = vrot.lane.b32.xlu0 %v2508, 20
      %v2552 = vpop.permute.xlu0 %2551
      %2553 = vrot.lane.b32.xlu0 %v2511, 20
      %v2554 = vpop.permute.xlu0 %2553
      %2555 = vrot.lane.b32.xlu0 %v2514, 20
      %v2556 = vpop.permute.xlu0 %2555
      %2557 = vrot.lane.b32.xlu0 %v2517, 20
      %v2558 = vpop.permute.xlu0 %2557
      %2559 = vrot.lane.b32.xlu0 %v2520, 20
      %v2560 = vpop.permute.xlu0 %2559
      %2561 = vrot.lane.b32.xlu0 %v2523, 20
      %v2562 = vpop.permute.xlu0 %2561
      %2563 = vrot.lane.b32.xlu0 %v2526, 20
      %v2564 = vpop.permute.xlu0 %2563
      %2565 = vrot.lane.b32.xlu0 %v2529, 20
      %v2566 = vpop.permute.xlu0 %2565
      %2567 = vrot.lane.b32.xlu0 %v2532, 20
      %v2568 = vpop.permute.xlu0 %2567
      %2569 = vrot.lane.b32.xlu0 %v2535, 20
      %v2570 = vpop.permute.xlu0 %2569
      %2571 = vrot.lane.b32.xlu0 %v2538, 20
      %v2572 = vpop.permute.xlu0 %2571
      %2573 = vrot.lane.b32.xlu0 %v2541, 20
      %v2574 = vpop.permute.xlu0 %2573
      %2575 = vrot.lane.b32.xlu0 %v2544, 20
      %v2576 = vpop.permute.xlu0 %2575
      %vm2593 = vcmask 195744
      %2594 = vst.msk [vmem:[#allocation3] sm:$0xff] %vm2593, %v2546
      %2595 = vst.msk [vmem:[#allocation3 + $0x8] sm:$0xff] %vm2593, %v2548
      %2596 = vst.msk [vmem:[#allocation3 + $0x10] sm:$0xff] %vm2593, %v2550
      %2597 = vst.msk [vmem:[#allocation3 + $0x18] sm:$0xff] %vm2593, %v2552
      %2598 = vst.msk [vmem:[#allocation3 + $0x20] sm:$0xff] %vm2593, %v2554
      %2599 = vst.msk [vmem:[#allocation3 + $0x28] sm:$0xff] %vm2593, %v2556
      %2600 = vst.msk [vmem:[#allocation3 + $0x30] sm:$0xff] %vm2593, %v2558
      %2601 = vst.msk [vmem:[#allocation3 + $0x38] sm:$0xff] %vm2593, %v2560
      %2602 = vst.msk [vmem:[#allocation3 + $0x40] sm:$0xff] %vm2593, %v2562
      %2603 = vst.msk [vmem:[#allocation3 + $0x48] sm:$0xff] %vm2593, %v2564
      %2604 = vst.msk [vmem:[#allocation3 + $0x50] sm:$0xff] %vm2593, %v2566
      %2605 = vst.msk [vmem:[#allocation3 + $0x58] sm:$0xff] %vm2593, %v2568
      %2606 = vst.msk [vmem:[#allocation3 + $0x60] sm:$0xff] %vm2593, %v2570
      %2607 = vst.msk [vmem:[#allocation3 + $0x68] sm:$0xff] %vm2593, %v2572
      %2608 = vst.msk [vmem:[#allocation3 + $0x70] sm:$0xff] %vm2593, %v2574
      %2609 = vst.msk [vmem:[#allocation3 + $0x78] sm:$0xff] %vm2593, %v2576
      %s2610 = scalar_lea.vmem [#allocation2], 24
      %v2611 = vld [vmem:[%s2610] sm:$0xf]
      %v2612 = vld [vmem:[%s2610 + $0x4] sm:$0xf]
      %v2613 = vld [vmem:[%s2610 + $0xc] sm:$0xf]
      %v2614 = vld [vmem:[%s2610 + $0x10] sm:$0xf]
      %v2615 = vld [vmem:[%s2610 + $0x18] sm:$0xf]
      %v2616 = vld [vmem:[%s2610 + $0x1c] sm:$0xf]
      %v2617 = vld [vmem:[%s2610 + $0x24] sm:$0xf]
      %v2618 = vld [vmem:[%s2610 + $0x28] sm:$0xf]
      %v2619 = vld [vmem:[%s2610 + $0x30] sm:$0xf]
      %v2620 = vld [vmem:[%s2610 + $0x34] sm:$0xf]
      %v2621 = vld [vmem:[%s2610 + $0x3c] sm:$0xf]
      %v2622 = vld [vmem:[%s2610 + $0x40] sm:$0xf]
      %v2623 = vld [vmem:[%s2610 + $0x48] sm:$0xf]
      %v2624 = vld [vmem:[%s2610 + $0x4c] sm:$0xf]
      %v2625 = vld [vmem:[%s2610 + $0x54] sm:$0xf]
      %v2626 = vld [vmem:[%s2610 + $0x58] sm:$0xf]
      %v2627 = vld [vmem:[%s2610 + $0x60] sm:$0xf]
      %v2628 = vld [vmem:[%s2610 + $0x64] sm:$0xf]
      %v2629 = vld [vmem:[%s2610 + $0x6c] sm:$0xf]
      %v2630 = vld [vmem:[%s2610 + $0x70] sm:$0xf]
      %v2631 = vld [vmem:[%s2610 + $0x78] sm:$0xf]
      %v2632 = vld [vmem:[%s2610 + $0x7c] sm:$0xf]
      %v2633 = vld [vmem:[%s2610 + $0x84] sm:$0xf]
      %v2634 = vld [vmem:[%s2610 + $0x88] sm:$0xf]
      %v2635 = vld [vmem:[%s2610 + $0x90] sm:$0xf]
      %v2636 = vld [vmem:[%s2610 + $0x94] sm:$0xf]
      %v2637 = vld [vmem:[%s2610 + $0x9c] sm:$0xf]
      %v2638 = vld [vmem:[%s2610 + $0xa0] sm:$0xf]
      %v2639 = vld [vmem:[%s2610 + $0xa8] sm:$0xf]
      %v2640 = vld [vmem:[%s2610 + $0xac] sm:$0xf]
      %v2641 = vld [vmem:[%s2610 + $0xb4] sm:$0xf]
      %v2642 = vld [vmem:[%s2610 + $0xb8] sm:$0xf]
      %v2675 = vunpack.c.l.b16 %v2611
      %v2676 = vunpack.c.l.b16 %v2612
      %v2677 = vunpack.c.l.b16 %v2613
      %v2678 = vunpack.c.l.b16 %v2614
      %v2679 = vunpack.c.l.b16 %v2615
      %v2680 = vunpack.c.l.b16 %v2616
      %v2681 = vunpack.c.l.b16 %v2617
      %v2682 = vunpack.c.l.b16 %v2618
      %v2683 = vunpack.c.l.b16 %v2619
      %v2684 = vunpack.c.l.b16 %v2620
      %v2685 = vunpack.c.l.b16 %v2621
      %v2686 = vunpack.c.l.b16 %v2622
      %v2687 = vunpack.c.l.b16 %v2623
      %v2688 = vunpack.c.l.b16 %v2624
      %v2689 = vunpack.c.l.b16 %v2625
      %v2690 = vunpack.c.l.b16 %v2626
      %v2691 = vunpack.c.l.b16 %v2627
      %v2692 = vunpack.c.l.b16 %v2628
      %v2693 = vunpack.c.l.b16 %v2629
      %v2694 = vunpack.c.l.b16 %v2630
      %v2695 = vunpack.c.l.b16 %v2631
      %v2696 = vunpack.c.l.b16 %v2632
      %v2697 = vunpack.c.l.b16 %v2633
      %v2698 = vunpack.c.l.b16 %v2634
      %v2699 = vunpack.c.l.b16 %v2635
      %v2700 = vunpack.c.l.b16 %v2636
      %v2701 = vunpack.c.l.b16 %v2637
      %v2702 = vunpack.c.l.b16 %v2638
      %v2703 = vunpack.c.l.b16 %v2639
      %v2704 = vunpack.c.l.b16 %v2640
      %v2705 = vunpack.c.l.b16 %v2641
      %v2706 = vunpack.c.l.b16 %v2642
      %v2707 = vpack.c.b16 %v2676, %v2675
      %v2708 = vpack.c.b16 %v2678, %v2677
      %v2709 = vpack.c.b16 %v2680, %v2679
      %v2710 = vpack.c.b16 %v2682, %v2681
      %v2711 = vpack.c.b16 %v2684, %v2683
      %v2712 = vpack.c.b16 %v2686, %v2685
      %v2713 = vpack.c.b16 %v2688, %v2687
      %v2714 = vpack.c.b16 %v2690, %v2689
      %v2715 = vpack.c.b16 %v2692, %v2691
      %v2716 = vpack.c.b16 %v2694, %v2693
      %v2717 = vpack.c.b16 %v2696, %v2695
      %v2718 = vpack.c.b16 %v2698, %v2697
      %v2719 = vpack.c.b16 %v2700, %v2699
      %v2720 = vpack.c.b16 %v2702, %v2701
      %v2721 = vpack.c.b16 %v2704, %v2703
      %v2722 = vpack.c.b16 %v2706, %v2705
      %2723 = vrot.lane.b32.xlu0 %v2707, 24
      %v2724 = vpop.permute.xlu0 %2723
      %2725 = vrot.lane.b32.xlu0 %v2708, 24
      %v2726 = vpop.permute.xlu0 %2725
      %2727 = vrot.lane.b32.xlu0 %v2709, 24
      %v2728 = vpop.permute.xlu0 %2727
      %2729 = vrot.lane.b32.xlu0 %v2710, 24
      %v2730 = vpop.permute.xlu0 %2729
      %2731 = vrot.lane.b32.xlu0 %v2711, 24
      %v2732 = vpop.permute.xlu0 %2731
      %2733 = vrot.lane.b32.xlu0 %v2712, 24
      %v2734 = vpop.permute.xlu0 %2733
      %2735 = vrot.lane.b32.xlu0 %v2713, 24
      %v2736 = vpop.permute.xlu0 %2735
      %2737 = vrot.lane.b32.xlu0 %v2714, 24
      %v2738 = vpop.permute.xlu0 %2737
      %2739 = vrot.lane.b32.xlu0 %v2715, 24
      %v2740 = vpop.permute.xlu0 %2739
      %2741 = vrot.lane.b32.xlu0 %v2716, 24
      %v2742 = vpop.permute.xlu0 %2741
      %2743 = vrot.lane.b32.xlu0 %v2717, 24
      %v2744 = vpop.permute.xlu0 %2743
      %2745 = vrot.lane.b32.xlu0 %v2718, 24
      %v2746 = vpop.permute.xlu0 %2745
      %2747 = vrot.lane.b32.xlu0 %v2719, 24
      %v2748 = vpop.permute.xlu0 %2747
      %2749 = vrot.lane.b32.xlu0 %v2720, 24
      %v2750 = vpop.permute.xlu0 %2749
      %2751 = vrot.lane.b32.xlu0 %v2721, 24
      %v2752 = vpop.permute.xlu0 %2751
      %2753 = vrot.lane.b32.xlu0 %v2722, 24
      %v2754 = vpop.permute.xlu0 %2753
      %vm2771 = vcmask 228544
      %2772 = vst.msk [vmem:[#allocation3] sm:$0xff] %vm2771, %v2724
      %2773 = vst.msk [vmem:[#allocation3 + $0x8] sm:$0xff] %vm2771, %v2726
      %2774 = vst.msk [vmem:[#allocation3 + $0x10] sm:$0xff] %vm2771, %v2728
      %2775 = vst.msk [vmem:[#allocation3 + $0x18] sm:$0xff] %vm2771, %v2730
      %2776 = vst.msk [vmem:[#allocation3 + $0x20] sm:$0xff] %vm2771, %v2732
      %2777 = vst.msk [vmem:[#allocation3 + $0x28] sm:$0xff] %vm2771, %v2734
      %2778 = vst.msk [vmem:[#allocation3 + $0x30] sm:$0xff] %vm2771, %v2736
      %2779 = vst.msk [vmem:[#allocation3 + $0x38] sm:$0xff] %vm2771, %v2738
      %2780 = vst.msk [vmem:[#allocation3 + $0x40] sm:$0xff] %vm2771, %v2740
      %2781 = vst.msk [vmem:[#allocation3 + $0x48] sm:$0xff] %vm2771, %v2742
      %2782 = vst.msk [vmem:[#allocation3 + $0x50] sm:$0xff] %vm2771, %v2744
      %2783 = vst.msk [vmem:[#allocation3 + $0x58] sm:$0xff] %vm2771, %v2746
      %2784 = vst.msk [vmem:[#allocation3 + $0x60] sm:$0xff] %vm2771, %v2748
      %2785 = vst.msk [vmem:[#allocation3 + $0x68] sm:$0xff] %vm2771, %v2750
      %2786 = vst.msk [vmem:[#allocation3 + $0x70] sm:$0xff] %vm2771, %v2752
      %2787 = vst.msk [vmem:[#allocation3 + $0x78] sm:$0xff] %vm2771, %v2754
      %v2788 = vld [vmem:[%s2610] sm:$0xf]
      %v2789 = vld [vmem:[%s2610 + $0x4] sm:$0xf]
      %v2790 = vld [vmem:[%s2610 + $0x8] sm:$0x1]
      %v2791 = vld [vmem:[%s2610 + $0xc] sm:$0xf]
      %v2792 = vld [vmem:[%s2610 + $0x10] sm:$0xf]
      %v2793 = vld [vmem:[%s2610 + $0x14] sm:$0x1]
      %v2794 = vld [vmem:[%s2610 + $0x18] sm:$0xf]
      %v2795 = vld [vmem:[%s2610 + $0x1c] sm:$0xf]
      %v2796 = vld [vmem:[%s2610 + $0x20] sm:$0x1]
      %v2797 = vld [vmem:[%s2610 + $0x24] sm:$0xf]
      %v2798 = vld [vmem:[%s2610 + $0x28] sm:$0xf]
      %v2799 = vld [vmem:[%s2610 + $0x2c] sm:$0x1]
      %v2800 = vld [vmem:[%s2610 + $0x30] sm:$0xf]
      %v2801 = vld [vmem:[%s2610 + $0x34] sm:$0xf]
      %v2802 = vld [vmem:[%s2610 + $0x38] sm:$0x1]
      %v2803 = vld [vmem:[%s2610 + $0x3c] sm:$0xf]
      %v2804 = vld [vmem:[%s2610 + $0x40] sm:$0xf]
      %v2805 = vld [vmem:[%s2610 + $0x44] sm:$0x1]
      %v2806 = vld [vmem:[%s2610 + $0x48] sm:$0xf]
      %v2807 = vld [vmem:[%s2610 + $0x4c] sm:$0xf]
      %v2808 = vld [vmem:[%s2610 + $0x50] sm:$0x1]
      %v2809 = vld [vmem:[%s2610 + $0x54] sm:$0xf]
      %v2810 = vld [vmem:[%s2610 + $0x58] sm:$0xf]
      %v2811 = vld [vmem:[%s2610 + $0x5c] sm:$0x1]
      %v2812 = vld [vmem:[%s2610 + $0x60] sm:$0xf]
      %v2813 = vld [vmem:[%s2610 + $0x64] sm:$0xf]
      %v2814 = vld [vmem:[%s2610 + $0x68] sm:$0x1]
      %v2815 = vld [vmem:[%s2610 + $0x6c] sm:$0xf]
      %v2816 = vld [vmem:[%s2610 + $0x70] sm:$0xf]
      %v2817 = vld [vmem:[%s2610 + $0x74] sm:$0x1]
      %v2818 = vld [vmem:[%s2610 + $0x78] sm:$0xf]
      %v2819 = vld [vmem:[%s2610 + $0x7c] sm:$0xf]
      %v2820 = vld [vmem:[%s2610 + $0x80] sm:$0x1]
      %v2821 = vld [vmem:[%s2610 + $0x84] sm:$0xf]
      %v2822 = vld [vmem:[%s2610 + $0x88] sm:$0xf]
      %v2823 = vld [vmem:[%s2610 + $0x8c] sm:$0x1]
      %v2824 = vld [vmem:[%s2610 + $0x90] sm:$0xf]
      %v2825 = vld [vmem:[%s2610 + $0x94] sm:$0xf]
      %v2826 = vld [vmem:[%s2610 + $0x98] sm:$0x1]
      %v2827 = vld [vmem:[%s2610 + $0x9c] sm:$0xf]
      %v2828 = vld [vmem:[%s2610 + $0xa0] sm:$0xf]
      %v2829 = vld [vmem:[%s2610 + $0xa4] sm:$0x1]
      %v2830 = vld [vmem:[%s2610 + $0xa8] sm:$0xf]
      %v2831 = vld [vmem:[%s2610 + $0xac] sm:$0xf]
      %v2832 = vld [vmem:[%s2610 + $0xb0] sm:$0x1]
      %v2833 = vld [vmem:[%s2610 + $0xb4] sm:$0xf]
      %v2834 = vld [vmem:[%s2610 + $0xb8] sm:$0xf]
      %v2835 = vld [vmem:[%s2610 + $0xbc] sm:$0x1]
      %v2884 = vunpack.c.l.b16 %v2788
      %v2885 = vunpack.c.l.b16 %v2789
      %v2886 = vunpack.c.l.b16 %v2790
      %v2887 = vunpack.c.l.b16 %v2791
      %v2888 = vunpack.c.l.b16 %v2792
      %v2889 = vunpack.c.l.b16 %v2793
      %v2890 = vunpack.c.l.b16 %v2794
      %v2891 = vunpack.c.l.b16 %v2795
      %v2892 = vunpack.c.l.b16 %v2796
      %v2893 = vunpack.c.l.b16 %v2797
      %v2894 = vunpack.c.l.b16 %v2798
      %v2895 = vunpack.c.l.b16 %v2799
      %v2896 = vunpack.c.l.b16 %v2800
      %v2897 = vunpack.c.l.b16 %v2801
      %v2898 = vunpack.c.l.b16 %v2802
      %v2899 = vunpack.c.l.b16 %v2803
      %v2900 = vunpack.c.l.b16 %v2804
      %v2901 = vunpack.c.l.b16 %v2805
      %v2902 = vunpack.c.l.b16 %v2806
      %v2903 = vunpack.c.l.b16 %v2807
      %v2904 = vunpack.c.l.b16 %v2808
      %v2905 = vunpack.c.l.b16 %v2809
      %v2906 = vunpack.c.l.b16 %v2810
      %v2907 = vunpack.c.l.b16 %v2811
      %v2908 = vunpack.c.l.b16 %v2812
      %v2909 = vunpack.c.l.b16 %v2813
      %v2910 = vunpack.c.l.b16 %v2814
      %v2911 = vunpack.c.l.b16 %v2815
      %v2912 = vunpack.c.l.b16 %v2816
      %v2913 = vunpack.c.l.b16 %v2817
      %v2914 = vunpack.c.l.b16 %v2818
      %v2915 = vunpack.c.l.b16 %v2819
      %v2916 = vunpack.c.l.b16 %v2820
      %v2917 = vunpack.c.l.b16 %v2821
      %v2918 = vunpack.c.l.b16 %v2822
      %v2919 = vunpack.c.l.b16 %v2823
      %v2920 = vunpack.c.l.b16 %v2824
      %v2921 = vunpack.c.l.b16 %v2825
      %v2922 = vunpack.c.l.b16 %v2826
      %v2923 = vunpack.c.l.b16 %v2827
      %v2924 = vunpack.c.l.b16 %v2828
      %v2925 = vunpack.c.l.b16 %v2829
      %v2926 = vunpack.c.l.b16 %v2830
      %v2927 = vunpack.c.l.b16 %v2831
      %v2928 = vunpack.c.l.b16 %v2832
      %v2929 = vunpack.c.l.b16 %v2833
      %v2930 = vunpack.c.l.b16 %v2834
      %v2931 = vunpack.c.l.b16 %v2835
      %v2932 = vpack.c.b16 %v2885, %v2884
      %v2933 = vpack.c.b16 %v2886, %v2886
      %v2934 = vpack.c.b16 %v2888, %v2887
      %v2935 = vpack.c.b16 %v2889, %v2889
      %v2936 = vpack.c.b16 %v2891, %v2890
      %v2937 = vpack.c.b16 %v2892, %v2892
      %v2938 = vpack.c.b16 %v2894, %v2893
      %v2939 = vpack.c.b16 %v2895, %v2895
      %v2940 = vpack.c.b16 %v2897, %v2896
      %v2941 = vpack.c.b16 %v2898, %v2898
      %v2942 = vpack.c.b16 %v2900, %v2899
      %v2943 = vpack.c.b16 %v2901, %v2901
      %v2944 = vpack.c.b16 %v2903, %v2902
      %v2945 = vpack.c.b16 %v2904, %v2904
      %v2946 = vpack.c.b16 %v2906, %v2905
      %v2947 = vpack.c.b16 %v2907, %v2907
      %v2948 = vpack.c.b16 %v2909, %v2908
      %v2949 = vpack.c.b16 %v2910, %v2910
      %v2950 = vpack.c.b16 %v2912, %v2911
      %v2951 = vpack.c.b16 %v2913, %v2913
      %v2952 = vpack.c.b16 %v2915, %v2914
      %v2953 = vpack.c.b16 %v2916, %v2916
      %v2954 = vpack.c.b16 %v2918, %v2917
      %v2955 = vpack.c.b16 %v2919, %v2919
      %v2956 = vpack.c.b16 %v2921, %v2920
      %v2957 = vpack.c.b16 %v2922, %v2922
      %v2958 = vpack.c.b16 %v2924, %v2923
      %v2959 = vpack.c.b16 %v2925, %v2925
      %v2960 = vpack.c.b16 %v2927, %v2926
      %v2961 = vpack.c.b16 %v2928, %v2928
      %v2962 = vpack.c.b16 %v2930, %v2929
      %v2963 = vpack.c.b16 %v2931, %v2931
      %v2965 = vshrl.u32 %v2932, 16
      %v2967 = vshll.u32 %v2932, 16
      %v2969 = vrot.slane %v2967, 1
      %v2970 = vor.u32 %v2965, %v2969
      %v2972 = vshll.u32 %v2933, 16
      %v2974 = vrot.slane %v2972, 1
      %v2975 = vsel %vm1163, %v2970, %v2974
      %v2977 = vshrl.u32 %v2934, 16
      %v2979 = vshll.u32 %v2934, 16
      %v2981 = vrot.slane %v2979, 1
      %v2982 = vor.u32 %v2977, %v2981
      %v2984 = vshll.u32 %v2935, 16
      %v2986 = vrot.slane %v2984, 1
      %v2987 = vsel %vm1163, %v2982, %v2986
      %v2989 = vshrl.u32 %v2936, 16
      %v2991 = vshll.u32 %v2936, 16
      %v2993 = vrot.slane %v2991, 1
      %v2994 = vor.u32 %v2989, %v2993
      %v2996 = vshll.u32 %v2937, 16
      %v2998 = vrot.slane %v2996, 1
      %v2999 = vsel %vm1163, %v2994, %v2998
      %v3001 = vshrl.u32 %v2938, 16
      %v3003 = vshll.u32 %v2938, 16
      %v3005 = vrot.slane %v3003, 1
      %v3006 = vor.u32 %v3001, %v3005
      %v3008 = vshll.u32 %v2939, 16
      %v3010 = vrot.slane %v3008, 1
      %v3011 = vsel %vm1163, %v3006, %v3010
      %v3013 = vshrl.u32 %v2940, 16
      %v3015 = vshll.u32 %v2940, 16
      %v3017 = vrot.slane %v3015, 1
      %v3018 = vor.u32 %v3013, %v3017
      %v3020 = vshll.u32 %v2941, 16
      %v3022 = vrot.slane %v3020, 1
      %v3023 = vsel %vm1163, %v3018, %v3022
      %v3025 = vshrl.u32 %v2942, 16
      %v3027 = vshll.u32 %v2942, 16
      %v3029 = vrot.slane %v3027, 1
      %v3030 = vor.u32 %v3025, %v3029
      %v3032 = vshll.u32 %v2943, 16
      %v3034 = vrot.slane %v3032, 1
      %v3035 = vsel %vm1163, %v3030, %v3034
      %v3037 = vshrl.u32 %v2944, 16
      %v3039 = vshll.u32 %v2944, 16
      %v3041 = vrot.slane %v3039, 1
      %v3042 = vor.u32 %v3037, %v3041
      %v3044 = vshll.u32 %v2945, 16
      %v3046 = vrot.slane %v3044, 1
      %v3047 = vsel %vm1163, %v3042, %v3046
      %v3049 = vshrl.u32 %v2946, 16
      %v3051 = vshll.u32 %v2946, 16
      %v3053 = vrot.slane %v3051, 1
      %v3054 = vor.u32 %v3049, %v3053
      %v3056 = vshll.u32 %v2947, 16
      %v3058 = vrot.slane %v3056, 1
      %v3059 = vsel %vm1163, %v3054, %v3058
      %v3061 = vshrl.u32 %v2948, 16
      %v3063 = vshll.u32 %v2948, 16
      %v3065 = vrot.slane %v3063, 1
      %v3066 = vor.u32 %v3061, %v3065
      %v3068 = vshll.u32 %v2949, 16
      %v3070 = vrot.slane %v3068, 1
      %v3071 = vsel %vm1163, %v3066, %v3070
      %v3073 = vshrl.u32 %v2950, 16
      %v3075 = vshll.u32 %v2950, 16
      %v3077 = vrot.slane %v3075, 1
      %v3078 = vor.u32 %v3073, %v3077
      %v3080 = vshll.u32 %v2951, 16
      %v3082 = vrot.slane %v3080, 1
      %v3083 = vsel %vm1163, %v3078, %v3082
      %v3085 = vshrl.u32 %v2952, 16
      %v3087 = vshll.u32 %v2952, 16
      %v3089 = vrot.slane %v3087, 1
      %v3090 = vor.u32 %v3085, %v3089
      %v3092 = vshll.u32 %v2953, 16
      %v3094 = vrot.slane %v3092, 1
      %v3095 = vsel %vm1163, %v3090, %v3094
      %v3097 = vshrl.u32 %v2954, 16
      %v3099 = vshll.u32 %v2954, 16
      %v3101 = vrot.slane %v3099, 1
      %v3102 = vor.u32 %v3097, %v3101
      %v3104 = vshll.u32 %v2955, 16
      %v3106 = vrot.slane %v3104, 1
      %v3107 = vsel %vm1163, %v3102, %v3106
      %v3109 = vshrl.u32 %v2956, 16
      %v3111 = vshll.u32 %v2956, 16
      %v3113 = vrot.slane %v3111, 1
      %v3114 = vor.u32 %v3109, %v3113
      %v3116 = vshll.u32 %v2957, 16
      %v3118 = vrot.slane %v3116, 1
      %v3119 = vsel %vm1163, %v3114, %v3118
      %v3121 = vshrl.u32 %v2958, 16
      %v3123 = vshll.u32 %v2958, 16
      %v3125 = vrot.slane %v3123, 1
      %v3126 = vor.u32 %v3121, %v3125
      %v3128 = vshll.u32 %v2959, 16
      %v3130 = vrot.slane %v3128, 1
      %v3131 = vsel %vm1163, %v3126, %v3130
      %v3133 = vshrl.u32 %v2960, 16
      %v3135 = vshll.u32 %v2960, 16
      %v3137 = vrot.slane %v3135, 1
      %v3138 = vor.u32 %v3133, %v3137
      %v3140 = vshll.u32 %v2961, 16
      %v3142 = vrot.slane %v3140, 1
      %v3143 = vsel %vm1163, %v3138, %v3142
      %v3145 = vshrl.u32 %v2962, 16
      %v3147 = vshll.u32 %v2962, 16
      %v3149 = vrot.slane %v3147, 1
      %v3150 = vor.u32 %v3145, %v3149
      %v3152 = vshll.u32 %v2963, 16
      %v3154 = vrot.slane %v3152, 1
      %v3155 = vsel %vm1163, %v3150, %v3154
      %3156 = vrot.lane.b32.xlu0 %v2975, 28
      %v3157 = vpop.permute.xlu0 %3156
      %3158 = vrot.lane.b32.xlu0 %v2987, 28
      %v3159 = vpop.permute.xlu0 %3158
      %3160 = vrot.lane.b32.xlu0 %v2999, 28
      %v3161 = vpop.permute.xlu0 %3160
      %3162 = vrot.lane.b32.xlu0 %v3011, 28
      %v3163 = vpop.permute.xlu0 %3162
      %3164 = vrot.lane.b32.xlu0 %v3023, 28
      %v3165 = vpop.permute.xlu0 %3164
      %3166 = vrot.lane.b32.xlu0 %v3035, 28
      %v3167 = vpop.permute.xlu0 %3166
      %3168 = vrot.lane.b32.xlu0 %v3047, 28
      %v3169 = vpop.permute.xlu0 %3168
      %3170 = vrot.lane.b32.xlu0 %v3059, 28
      %v3171 = vpop.permute.xlu0 %3170
      %3172 = vrot.lane.b32.xlu0 %v3071, 28
      %v3173 = vpop.permute.xlu0 %3172
      %3174 = vrot.lane.b32.xlu0 %v3083, 28
      %v3175 = vpop.permute.xlu0 %3174
      %3176 = vrot.lane.b32.xlu0 %v3095, 28
      %v3177 = vpop.permute.xlu0 %3176
      %3178 = vrot.lane.b32.xlu0 %v3107, 28
      %v3179 = vpop.permute.xlu0 %3178
      %3180 = vrot.lane.b32.xlu0 %v3119, 28
      %v3181 = vpop.permute.xlu0 %3180
      %3182 = vrot.lane.b32.xlu0 %v3131, 28
      %v3183 = vpop.permute.xlu0 %3182
      %3184 = vrot.lane.b32.xlu0 %v3143, 28
      %v3185 = vpop.permute.xlu0 %3184
      %3186 = vrot.lane.b32.xlu0 %v3155, 28
      %v3187 = vpop.permute.xlu0 %3186
      %vm3204 = vcmask 261344
      %3205 = vst.msk [vmem:[#allocation3] sm:$0xff] %vm3204, %v3157
      %3206 = vst.msk [vmem:[#allocation3 + $0x8] sm:$0xff] %vm3204, %v3159
      %3207 = vst.msk [vmem:[#allocation3 + $0x10] sm:$0xff] %vm3204, %v3161
      %3208 = vst.msk [vmem:[#allocation3 + $0x18] sm:$0xff] %vm3204, %v3163
      %3209 = vst.msk [vmem:[#allocation3 + $0x20] sm:$0xff] %vm3204, %v3165
      %3210 = vst.msk [vmem:[#allocation3 + $0x28] sm:$0xff] %vm3204, %v3167
      %3211 = vst.msk [vmem:[#allocation3 + $0x30] sm:$0xff] %vm3204, %v3169
      %3212 = vst.msk [vmem:[#allocation3 + $0x38] sm:$0xff] %vm3204, %v3171
      %3213 = vst.msk [vmem:[#allocation3 + $0x40] sm:$0xff] %vm3204, %v3173
      %3214 = vst.msk [vmem:[#allocation3 + $0x48] sm:$0xff] %vm3204, %v3175
      %3215 = vst.msk [vmem:[#allocation3 + $0x50] sm:$0xff] %vm3204, %v3177
      %3216 = vst.msk [vmem:[#allocation3 + $0x58] sm:$0xff] %vm3204, %v3179
      %3217 = vst.msk [vmem:[#allocation3 + $0x60] sm:$0xff] %vm3204, %v3181
      %3218 = vst.msk [vmem:[#allocation3 + $0x68] sm:$0xff] %vm3204, %v3183
      %3219 = vst.msk [vmem:[#allocation3 + $0x70] sm:$0xff] %vm3204, %v3185
      %3220 = vst.msk [vmem:[#allocation3 + $0x78] sm:$0xff] %vm3204, %v3187
      %v3221 = vld [vmem:[%s2610] sm:$0xe]
      %v3222 = vld [vmem:[%s2610 + $0x4] sm:$0xf]
      %v3223 = vld [vmem:[%s2610 + $0x8] sm:$0x1]
      %v3224 = vld [vmem:[%s2610 + $0xc] sm:$0xe]
      %v3225 = vld [vmem:[%s2610 + $0x10] sm:$0xf]
      %v3226 = vld [vmem:[%s2610 + $0x14] sm:$0x1]
      %v3227 = vld [vmem:[%s2610 + $0x18] sm:$0xe]
      %v3228 = vld [vmem:[%s2610 + $0x1c] sm:$0xf]
      %v3229 = vld [vmem:[%s2610 + $0x20] sm:$0x1]
      %v3230 = vld [vmem:[%s2610 + $0x24] sm:$0xe]
      %v3231 = vld [vmem:[%s2610 + $0x28] sm:$0xf]
      %v3232 = vld [vmem:[%s2610 + $0x2c] sm:$0x1]
      %v3233 = vld [vmem:[%s2610 + $0x30] sm:$0xe]
      %v3234 = vld [vmem:[%s2610 + $0x34] sm:$0xf]
      %v3235 = vld [vmem:[%s2610 + $0x38] sm:$0x1]
      %v3236 = vld [vmem:[%s2610 + $0x3c] sm:$0xe]
      %v3237 = vld [vmem:[%s2610 + $0x40] sm:$0xf]
      %v3238 = vld [vmem:[%s2610 + $0x44] sm:$0x1]
      %v3239 = vld [vmem:[%s2610 + $0x48] sm:$0xe]
      %v3240 = vld [vmem:[%s2610 + $0x4c] sm:$0xf]
      %v3241 = vld [vmem:[%s2610 + $0x50] sm:$0x1]
      %v3242 = vld [vmem:[%s2610 + $0x54] sm:$0xe]
      %v3243 = vld [vmem:[%s2610 + $0x58] sm:$0xf]
      %v3244 = vld [vmem:[%s2610 + $0x5c] sm:$0x1]
      %v3245 = vld [vmem:[%s2610 + $0x60] sm:$0xe]
      %v3246 = vld [vmem:[%s2610 + $0x64] sm:$0xf]
      %v3247 = vld [vmem:[%s2610 + $0x68] sm:$0x1]
      %v3248 = vld [vmem:[%s2610 + $0x6c] sm:$0xe]
      %v3249 = vld [vmem:[%s2610 + $0x70] sm:$0xf]
      %v3250 = vld [vmem:[%s2610 + $0x74] sm:$0x1]
      %v3251 = vld [vmem:[%s2610 + $0x78] sm:$0xe]
      %v3252 = vld [vmem:[%s2610 + $0x7c] sm:$0xf]
      %v3253 = vld [vmem:[%s2610 + $0x80] sm:$0x1]
      %v3254 = vld [vmem:[%s2610 + $0x84] sm:$0xe]
      %v3255 = vld [vmem:[%s2610 + $0x88] sm:$0xf]
      %v3256 = vld [vmem:[%s2610 + $0x8c] sm:$0x1]
      %v3257 = vld [vmem:[%s2610 + $0x90] sm:$0xe]
      %v3258 = vld [vmem:[%s2610 + $0x94] sm:$0xf]
      %v3259 = vld [vmem:[%s2610 + $0x98] sm:$0x1]
      %v3260 = vld [vmem:[%s2610 + $0x9c] sm:$0xe]
      %v3261 = vld [vmem:[%s2610 + $0xa0] sm:$0xf]
      %v3262 = vld [vmem:[%s2610 + $0xa4] sm:$0x1]
      %v3263 = vld [vmem:[%s2610 + $0xa8] sm:$0xe]
      %v3264 = vld [vmem:[%s2610 + $0xac] sm:$0xf]
      %v3265 = vld [vmem:[%s2610 + $0xb0] sm:$0x1]
      %v3266 = vld [vmem:[%s2610 + $0xb4] sm:$0xe]
      %v3267 = vld [vmem:[%s2610 + $0xb8] sm:$0xf]
      %v3268 = vld [vmem:[%s2610 + $0xbc] sm:$0x1]
      %v3317 = vunpack.c.l.b16 %v3221
      %v3318 = vunpack.c.l.b16 %v3222
      %v3319 = vunpack.c.l.b16 %v3223
      %v3320 = vunpack.c.l.b16 %v3224
      %v3321 = vunpack.c.l.b16 %v3225
      %v3322 = vunpack.c.l.b16 %v3226
      %v3323 = vunpack.c.l.b16 %v3227
      %v3324 = vunpack.c.l.b16 %v3228
      %v3325 = vunpack.c.l.b16 %v3229
      %v3326 = vunpack.c.l.b16 %v3230
      %v3327 = vunpack.c.l.b16 %v3231
      %v3328 = vunpack.c.l.b16 %v3232
      %v3329 = vunpack.c.l.b16 %v3233
      %v3330 = vunpack.c.l.b16 %v3234
      %v3331 = vunpack.c.l.b16 %v3235
      %v3332 = vunpack.c.l.b16 %v3236
      %v3333 = vunpack.c.l.b16 %v3237
      %v3334 = vunpack.c.l.b16 %v3238
      %v3335 = vunpack.c.l.b16 %v3239
      %v3336 = vunpack.c.l.b16 %v3240
      %v3337 = vunpack.c.l.b16 %v3241
      %v3338 = vunpack.c.l.b16 %v3242
      %v3339 = vunpack.c.l.b16 %v3243
      %v3340 = vunpack.c.l.b16 %v3244
      %v3341 = vunpack.c.l.b16 %v3245
      %v3342 = vunpack.c.l.b16 %v3246
      %v3343 = vunpack.c.l.b16 %v3247
      %v3344 = vunpack.c.l.b16 %v3248
      %v3345 = vunpack.c.l.b16 %v3249
      %v3346 = vunpack.c.l.b16 %v3250
      %v3347 = vunpack.c.l.b16 %v3251
      %v3348 = vunpack.c.l.b16 %v3252
      %v3349 = vunpack.c.l.b16 %v3253
      %v3350 = vunpack.c.l.b16 %v3254
      %v3351 = vunpack.c.l.b16 %v3255
      %v3352 = vunpack.c.l.b16 %v3256
      %v3353 = vunpack.c.l.b16 %v3257
      %v3354 = vunpack.c.l.b16 %v3258
      %v3355 = vunpack.c.l.b16 %v3259
      %v3356 = vunpack.c.l.b16 %v3260
      %v3357 = vunpack.c.l.b16 %v3261
      %v3358 = vunpack.c.l.b16 %v3262
      %v3359 = vunpack.c.l.b16 %v3263
      %v3360 = vunpack.c.l.b16 %v3264
      %v3361 = vunpack.c.l.b16 %v3265
      %v3362 = vunpack.c.l.b16 %v3266
      %v3363 = vunpack.c.l.b16 %v3267
      %v3364 = vunpack.c.l.b16 %v3268
      %v3365 = vpack.c.b16 %v3318, %v3317
      %v3366 = vpack.c.b16 %v3319, %v3319
      %v3367 = vpack.c.b16 %v3321, %v3320
      %v3368 = vpack.c.b16 %v3322, %v3322
      %v3369 = vpack.c.b16 %v3324, %v3323
      %v3370 = vpack.c.b16 %v3325, %v3325
      %v3371 = vpack.c.b16 %v3327, %v3326
      %v3372 = vpack.c.b16 %v3328, %v3328
      %v3373 = vpack.c.b16 %v3330, %v3329
      %v3374 = vpack.c.b16 %v3331, %v3331
      %v3375 = vpack.c.b16 %v3333, %v3332
      %v3376 = vpack.c.b16 %v3334, %v3334
      %v3377 = vpack.c.b16 %v3336, %v3335
      %v3378 = vpack.c.b16 %v3337, %v3337
      %v3379 = vpack.c.b16 %v3339, %v3338
      %v3380 = vpack.c.b16 %v3340, %v3340
      %v3381 = vpack.c.b16 %v3342, %v3341
      %v3382 = vpack.c.b16 %v3343, %v3343
      %v3383 = vpack.c.b16 %v3345, %v3344
      %v3384 = vpack.c.b16 %v3346, %v3346
      %v3385 = vpack.c.b16 %v3348, %v3347
      %v3386 = vpack.c.b16 %v3349, %v3349
      %v3387 = vpack.c.b16 %v3351, %v3350
      %v3388 = vpack.c.b16 %v3352, %v3352
      %v3389 = vpack.c.b16 %v3354, %v3353
      %v3390 = vpack.c.b16 %v3355, %v3355
      %v3391 = vpack.c.b16 %v3357, %v3356
      %v3392 = vpack.c.b16 %v3358, %v3358
      %v3393 = vpack.c.b16 %v3360, %v3359
      %v3394 = vpack.c.b16 %v3361, %v3361
      %v3395 = vpack.c.b16 %v3363, %v3362
      %v3396 = vpack.c.b16 %v3364, %v3364
      %v3397 = vrot.slane %v3365, 1
      %v3398 = vrot.slane %v3366, 1
      %v3399 = vsel %vm1597, %v3397, %v3398
      %v3400 = vrot.slane %v3367, 1
      %v3401 = vrot.slane %v3368, 1
      %v3402 = vsel %vm1597, %v3400, %v3401
      %v3403 = vrot.slane %v3369, 1
      %v3404 = vrot.slane %v3370, 1
      %v3405 = vsel %vm1597, %v3403, %v3404
      %v3406 = vrot.slane %v3371, 1
      %v3407 = vrot.slane %v3372, 1
      %v3408 = vsel %vm1597, %v3406, %v3407
      %v3409 = vrot.slane %v3373, 1
      %v3410 = vrot.slane %v3374, 1
      %v3411 = vsel %vm1597, %v3409, %v3410
      %v3412 = vrot.slane %v3375, 1
      %v3413 = vrot.slane %v3376, 1
      %v3414 = vsel %vm1597, %v3412, %v3413
      %v3415 = vrot.slane %v3377, 1
      %v3416 = vrot.slane %v3378, 1
      %v3417 = vsel %vm1597, %v3415, %v3416
      %v3418 = vrot.slane %v3379, 1
      %v3419 = vrot.slane %v3380, 1
      %v3420 = vsel %vm1597, %v3418, %v3419
      %v3421 = vrot.slane %v3381, 1
      %v3422 = vrot.slane %v3382, 1
      %v3423 = vsel %vm1597, %v3421, %v3422
      %v3424 = vrot.slane %v3383, 1
      %v3425 = vrot.slane %v3384, 1
      %v3426 = vsel %vm1597, %v3424, %v3425
      %v3427 = vrot.slane %v3385, 1
      %v3428 = vrot.slane %v3386, 1
      %v3429 = vsel %vm1597, %v3427, %v3428
      %v3430 = vrot.slane %v3387, 1
      %v3431 = vrot.slane %v3388, 1
      %v3432 = vsel %vm1597, %v3430, %v3431
      %v3433 = vrot.slane %v3389, 1
      %v3434 = vrot.slane %v3390, 1
      %v3435 = vsel %vm1597, %v3433, %v3434
      %v3436 = vrot.slane %v3391, 1
      %v3437 = vrot.slane %v3392, 1
      %v3438 = vsel %vm1597, %v3436, %v3437
      %v3439 = vrot.slane %v3393, 1
      %v3440 = vrot.slane %v3394, 1
      %v3441 = vsel %vm1597, %v3439, %v3440
      %v3442 = vrot.slane %v3395, 1
      %v3443 = vrot.slane %v3396, 1
      %v3444 = vsel %vm1597, %v3442, %v3443
      %3445 = vrot.lane.b32.xlu0 %v3399, 32
      %v3446 = vpop.permute.xlu0 %3445
      %3447 = vrot.lane.b32.xlu0 %v3402, 32
      %v3448 = vpop.permute.xlu0 %3447
      %3449 = vrot.lane.b32.xlu0 %v3405, 32
      %v3450 = vpop.permute.xlu0 %3449
      %3451 = vrot.lane.b32.xlu0 %v3408, 32
      %v3452 = vpop.permute.xlu0 %3451
      %3453 = vrot.lane.b32.xlu0 %v3411, 32
      %v3454 = vpop.permute.xlu0 %3453
      %3455 = vrot.lane.b32.xlu0 %v3414, 32
      %v3456 = vpop.permute.xlu0 %3455
      %3457 = vrot.lane.b32.xlu0 %v3417, 32
      %v3458 = vpop.permute.xlu0 %3457
      %3459 = vrot.lane.b32.xlu0 %v3420, 32
      %v3460 = vpop.permute.xlu0 %3459
      %3461 = vrot.lane.b32.xlu0 %v3423, 32
      %v3462 = vpop.permute.xlu0 %3461
      %3463 = vrot.lane.b32.xlu0 %v3426, 32
      %v3464 = vpop.permute.xlu0 %3463
      %3465 = vrot.lane.b32.xlu0 %v3429, 32
      %v3466 = vpop.permute.xlu0 %3465
      %3467 = vrot.lane.b32.xlu0 %v3432, 32
      %v3468 = vpop.permute.xlu0 %3467
      %3469 = vrot.lane.b32.xlu0 %v3435, 32
      %v3470 = vpop.permute.xlu0 %3469
      %3471 = vrot.lane.b32.xlu0 %v3438, 32
      %v3472 = vpop.permute.xlu0 %3471
      %3473 = vrot.lane.b32.xlu0 %v3441, 32
      %v3474 = vpop.permute.xlu0 %3473
      %3475 = vrot.lane.b32.xlu0 %v3444, 32
      %v3476 = vpop.permute.xlu0 %3475
      %vm3493 = vcmask 294144
      %3494 = vst.msk [vmem:[#allocation3] sm:$0xff] %vm3493, %v3446
      %3495 = vst.msk [vmem:[#allocation3 + $0x8] sm:$0xff] %vm3493, %v3448
      %3496 = vst.msk [vmem:[#allocation3 + $0x10] sm:$0xff] %vm3493, %v3450
      %3497 = vst.msk [vmem:[#allocation3 + $0x18] sm:$0xff] %vm3493, %v3452
      %3498 = vst.msk [vmem:[#allocation3 + $0x20] sm:$0xff] %vm3493, %v3454
      %3499 = vst.msk [vmem:[#allocation3 + $0x28] sm:$0xff] %vm3493, %v3456
      %3500 = vst.msk [vmem:[#allocation3 + $0x30] sm:$0xff] %vm3493, %v3458
      %3501 = vst.msk [vmem:[#allocation3 + $0x38] sm:$0xff] %vm3493, %v3460
      %3502 = vst.msk [vmem:[#allocation3 + $0x40] sm:$0xff] %vm3493, %v3462
      %3503 = vst.msk [vmem:[#allocation3 + $0x48] sm:$0xff] %vm3493, %v3464
      %3504 = vst.msk [vmem:[#allocation3 + $0x50] sm:$0xff] %vm3493, %v3466
      %3505 = vst.msk [vmem:[#allocation3 + $0x58] sm:$0xff] %vm3493, %v3468
      %3506 = vst.msk [vmem:[#allocation3 + $0x60] sm:$0xff] %vm3493, %v3470
      %3507 = vst.msk [vmem:[#allocation3 + $0x68] sm:$0xff] %vm3493, %v3472
      %3508 = vst.msk [vmem:[#allocation3 + $0x70] sm:$0xff] %vm3493, %v3474
      %3509 = vst.msk [vmem:[#allocation3 + $0x78] sm:$0xff] %vm3493, %v3476
      %v3510 = vld [vmem:[#allocation3] sm:$0xff]
      %v3511 = vld [vmem:[#allocation3 + $0x8] sm:$0xff]
      %v3512 = vld [vmem:[#allocation3 + $0x10] sm:$0xff]
      %v3513 = vld [vmem:[#allocation3 + $0x18] sm:$0xff]
      %v3514 = vld [vmem:[#allocation3 + $0x20] sm:$0xff]
      %v3515 = vld [vmem:[#allocation3 + $0x28] sm:$0xff]
      %v3516 = vld [vmem:[#allocation3 + $0x30] sm:$0xff]
      %v3517 = vld [vmem:[#allocation3 + $0x38] sm:$0xff]
      %v3518 = vld [vmem:[#allocation3 + $0x40] sm:$0xff]
      %v3519 = vld [vmem:[#allocation3 + $0x48] sm:$0xff]
      %v3520 = vld [vmem:[#allocation3 + $0x50] sm:$0xff]
      %v3521 = vld [vmem:[#allocation3 + $0x58] sm:$0xff]
      %v3522 = vld [vmem:[#allocation3 + $0x60] sm:$0xff]
      %v3523 = vld [vmem:[#allocation3 + $0x68] sm:$0xff]
      %v3524 = vld [vmem:[#allocation3 + $0x70] sm:$0xff]
      %v3525 = vld [vmem:[#allocation3 + $0x78] sm:$0xff]
      %v3531 = vunpack.c.l.b16 %v837
      %v3532 = vunpack.c.l.b16 %v838
      %v3533 = vunpack.c.l.b16 %v839
      %v3534 = vunpack.c.l.b16 %v840
      %v3535 = vunpack.c.l.b16 %v841
      %v3536 = vpack.c.b16 %v3532, %v3531
      %v3537 = vpack.c.b16 %v3534, %v3533
      %v3538 = vpack.c.b16 %v3535, %v3535
      %vm3541 = vcmask 293888
      %v3543 = vsel %vm3541, %v3510, 0
      %v3546 = vsel %vm3541, %v3511, 0
      %v3549 = vsel %vm3541, %v3512, 0
      %v3552 = vsel %vm3541, %v3513, 0
      %v3555 = vsel %vm3541, %v3514, 0
      %v3558 = vsel %vm3541, %v3515, 0
      %v3561 = vsel %vm3541, %v3516, 0
      %v3564 = vsel %vm3541, %v3517, 0
      %v3567 = vsel %vm3541, %v3518, 0
      %v3570 = vsel %vm3541, %v3519, 0
      %v3573 = vsel %vm3541, %v3520, 0
      %v3576 = vsel %vm3541, %v3521, 0
      %v3579 = vsel %vm3541, %v3522, 0
      %v3582 = vsel %vm3541, %v3523, 0
      %v3585 = vsel %vm3541, %v3524, 0
      %v3588 = vsel %vm3541, %v3525, 0
      %vm3590 = vcmask 1041408
      %v3592 = vsel %vm3590, %v3538, 0
      %3594 = vmatprep.subr.bf16.mxu0 0
      %3595 = vmatpush1.bf16.msra.mxu0 %v3536
      %3596 = vmatprep.subr.bf16.mxu0 0
      %3597 = vmatpush1.bf16.msra.mxu0 %v3537
      %3598 = vmatprep.subr.bf16.mxu0 0
      %3599 = vmatpush1.bf16.msra.mxu0 %v3592
      %3600 = vmatprep.subr.bf16.mxu0 0
      %3601 = vmatpush1.bf16.msra.mxu0 0
      %3602 = vmatprep.subr.bf16.mxu0 0
      %3603 = vmatpush1.bf16.msra.mxu0 0
      %3604 = vmatprep.subr.bf16.mxu0 0
      %3605 = vmatpush1.bf16.msra.mxu0 0
      %3606 = vmatprep.subr.bf16.mxu0 0
      %3607 = vmatpush1.bf16.msra.mxu0 0
      %3608 = vmatprep.subr.bf16.mxu0 0
      %3609 = vmatpush1.bf16.msra.mxu0 0
      %3610 = vmatprep.subr.bf16.mxu0 0
      %3611 = vmatpush1.bf16.msra.mxu0 0
      %3612 = vmatprep.subr.bf16.mxu0 0
      %3613 = vmatpush1.bf16.msra.mxu0 0
      %3614 = vmatprep.subr.bf16.mxu0 0
      %3615 = vmatpush1.bf16.msra.mxu0 0
      %3616 = vmatprep.subr.bf16.mxu0 0
      %3617 = vmatpush1.bf16.msra.mxu0 0
      %3618 = vmatprep.subr.bf16.mxu0 0
      %3619 = vmatpush1.bf16.msra.mxu0 0
      %3620 = vmatprep.subr.bf16.mxu0 0
      %3621 = vmatpush1.bf16.msra.mxu0 0
      %3622 = vmatprep.subr.bf16.mxu0 0
      %3623 = vmatpush1.bf16.msra.mxu0 0
      %3624 = vmatprep.subr.bf16.mxu0 0
      %3625 = vmatpush1.bf16.msra.mxu0 0
      %3626 = vmatprep.mubr.bf16.mxu0 0
      %3627 = vmatmul.mubr.bf16.gmra.mrb[0].mxu0 %v3543
      %v3628 = vpop.f32.mrb[0].mxu0
      %v3629 = vadd.f32 0.0, %v3628
      %v3630 = vpop.f32.mrb[0].mxu0
      %v3631 = vpop.f32.mrb[0].mxu0
      %v3632 = vadd.f32 0.0, %v3631
      %v3633 = vpop.f32.mrb[0].mxu0
      %3634 = vmatprep.mubr.bf16.mxu0 0
      %3635 = vmatmul.mubr.bf16.gmra.mrb[0].mxu0 %v3546
      %v3636 = vpop.f32.mrb[0].mxu0
      %v3637 = vadd.f32 0.0, %v3636
      %v3638 = vpop.f32.mrb[0].mxu0
      %v3639 = vpop.f32.mrb[0].mxu0
      %v3640 = vadd.f32 0.0, %v3639
      %v3641 = vpop.f32.mrb[0].mxu0
      %3642 = vmatprep.mubr.bf16.mxu0 0
      %3643 = vmatmul.mubr.bf16.gmra.mrb[0].mxu0 %v3549
      %v3644 = vpop.f32.mrb[0].mxu0
      %v3645 = vadd.f32 0.0, %v3644
      %v3646 = vpop.f32.mrb[0].mxu0
      %v3647 = vpop.f32.mrb[0].mxu0
      %v3648 = vadd.f32 0.0, %v3647
      %v3649 = vpop.f32.mrb[0].mxu0
      %3650 = vmatprep.mubr.bf16.mxu0 0
      %3651 = vmatmul.mubr.bf16.gmra.mrb[0].mxu0 %v3552
      %v3652 = vpop.f32.mrb[0].mxu0
      %v3653 = vadd.f32 0.0, %v3652
      %v3654 = vpop.f32.mrb[0].mxu0
      %v3655 = vpop.f32.mrb[0].mxu0
      %v3656 = vadd.f32 0.0, %v3655
      %v3657 = vpop.f32.mrb[0].mxu0
      %3658 = vmatprep.mubr.bf16.mxu0 0
      %3659 = vmatmul.mubr.bf16.gmra.mrb[0].mxu0 %v3555
      %v3660 = vpop.f32.mrb[0].mxu0
      %v3661 = vadd.f32 0.0, %v3660
      %v3662 = vpop.f32.mrb[0].mxu0
      %v3663 = vpop.f32.mrb[0].mxu0
      %v3664 = vadd.f32 0.0, %v3663
      %v3665 = vpop.f32.mrb[0].mxu0
      %3666 = vmatprep.mubr.bf16.mxu0 0
      %3667 = vmatmul.mubr.bf16.gmra.mrb[0].mxu0 %v3558
      %v3668 = vpop.f32.mrb[0].mxu0
      %v3669 = vadd.f32 0.0, %v3668
      %v3670 = vpop.f32.mrb[0].mxu0
      %v3671 = vpop.f32.mrb[0].mxu0
      %v3672 = vadd.f32 0.0, %v3671
      %v3673 = vpop.f32.mrb[0].mxu0
      %3674 = vmatprep.mubr.bf16.mxu0 0
      %3675 = vmatmul.mubr.bf16.gmra.mrb[0].mxu0 %v3561
      %v3676 = vpop.f32.mrb[0].mxu0
      %v3677 = vadd.f32 0.0, %v3676
      %v3678 = vpop.f32.mrb[0].mxu0
      %v3679 = vpop.f32.mrb[0].mxu0
      %v3680 = vadd.f32 0.0, %v3679
      %v3681 = vpop.f32.mrb[0].mxu0
      %3682 = vmatprep.mubr.bf16.mxu0 0
      %3683 = vmatmul.mubr.bf16.gmra.mrb[0].mxu0 %v3564
      %v3684 = vpop.f32.mrb[0].mxu0
      %v3685 = vadd.f32 0.0, %v3684
      %v3686 = vpop.f32.mrb[0].mxu0
      %v3687 = vpop.f32.mrb[0].mxu0
      %v3688 = vadd.f32 0.0, %v3687
      %v3689 = vpop.f32.mrb[0].mxu0
      %3690 = vmatprep.mubr.bf16.mxu0 0
      %3691 = vmatmul.mubr.bf16.gmra.mrb[0].mxu0 %v3567
      %v3692 = vpop.f32.mrb[0].mxu0
      %v3693 = vadd.f32 0.0, %v3692
      %v3694 = vpop.f32.mrb[0].mxu0
      %v3695 = vpop.f32.mrb[0].mxu0
      %v3696 = vadd.f32 0.0, %v3695
      %v3697 = vpop.f32.mrb[0].mxu0
      %3698 = vmatprep.mubr.bf16.mxu0 0
      %3699 = vmatmul.mubr.bf16.gmra.mrb[0].mxu0 %v3570
      %v3700 = vpop.f32.mrb[0].mxu0
      %v3701 = vadd.f32 0.0, %v3700
      %v3702 = vpop.f32.mrb[0].mxu0
      %v3703 = vpop.f32.mrb[0].mxu0
      %v3704 = vadd.f32 0.0, %v3703
      %v3705 = vpop.f32.mrb[0].mxu0
      %3706 = vmatprep.mubr.bf16.mxu0 0
      %3707 = vmatmul.mubr.bf16.gmra.mrb[0].mxu0 %v3573
      %v3708 = vpop.f32.mrb[0].mxu0
      %v3709 = vadd.f32 0.0, %v3708
      %v3710 = vpop.f32.mrb[0].mxu0
      %v3711 = vpop.f32.mrb[0].mxu0
      %v3712 = vadd.f32 0.0, %v3711
      %v3713 = vpop.f32.mrb[0].mxu0
      %3714 = vmatprep.mubr.bf16.mxu0 0
      %3715 = vmatmul.mubr.bf16.gmra.mrb[0].mxu0 %v3576
      %v3716 = vpop.f32.mrb[0].mxu0
      %v3717 = vadd.f32 0.0, %v3716
      %v3718 = vpop.f32.mrb[0].mxu0
      %v3719 = vpop.f32.mrb[0].mxu0
      %v3720 = vadd.f32 0.0, %v3719
      %v3721 = vpop.f32.mrb[0].mxu0
      %3722 = vmatprep.mubr.bf16.mxu0 0
      %3723 = vmatmul.mubr.bf16.gmra.mrb[0].mxu0 %v3579
      %v3724 = vpop.f32.mrb[0].mxu0
      %v3725 = vadd.f32 0.0, %v3724
      %v3726 = vpop.f32.mrb[0].mxu0
      %v3727 = vpop.f32.mrb[0].mxu0
      %v3728 = vadd.f32 0.0, %v3727
      %v3729 = vpop.f32.mrb[0].mxu0
      %3730 = vmatprep.mubr.bf16.mxu0 0
      %3731 = vmatmul.mubr.bf16.gmra.mrb[0].mxu0 %v3582
      %v3732 = vpop.f32.mrb[0].mxu0
      %v3733 = vadd.f32 0.0, %v3732
      %v3734 = vpop.f32.mrb[0].mxu0
      %v3735 = vpop.f32.mrb[0].mxu0
      %v3736 = vadd.f32 0.0, %v3735
      %v3737 = vpop.f32.mrb[0].mxu0
      %3738 = vmatprep.mubr.bf16.mxu0 0
      %3739 = vmatmul.mubr.bf16.gmra.mrb[0].mxu0 %v3585
      %v3740 = vpop.f32.mrb[0].mxu0
      %v3741 = vadd.f32 0.0, %v3740
      %v3742 = vpop.f32.mrb[0].mxu0
      %v3743 = vpop.f32.mrb[0].mxu0
      %v3744 = vadd.f32 0.0, %v3743
      %v3745 = vpop.f32.mrb[0].mxu0
      %3746 = vmatprep.mubr.bf16.mxu0 0
      %3747 = vmatmul.mubr.bf16.gmra.mrb[0].mxu0 %v3588
      %v3748 = vpop.f32.mrb[0].mxu0
      %v3749 = vadd.f32 0.0, %v3748
      %v3750 = vpop.f32.mrb[0].mxu0
      %v3751 = vpop.f32.mrb[0].mxu0
      %v3752 = vadd.f32 0.0, %v3751
      %v3753 = vpop.f32.mrb[0].mxu0
      %3754 = vdwg.mxu0
      %3755 = vst [vmem:[%s165] sm:$0xff] %v3629
      %3756 = vst [vmem:[%s165 + $0x8] sm:$0xff] %v3632
      %3757 = vst [vmem:[%s165 + $0x10] sm:$0xff] %v3637
      %3758 = vst [vmem:[%s165 + $0x18] sm:$0xff] %v3640
      %3759 = vst [vmem:[%s165 + $0x20] sm:$0xff] %v3645
      %3760 = vst [vmem:[%s165 + $0x28] sm:$0xff] %v3648
      %3761 = vst [vmem:[%s165 + $0x30] sm:$0xff] %v3653
      %3762 = vst [vmem:[%s165 + $0x38] sm:$0xff] %v3656
      %3763 = vst [vmem:[%s165 + $0x40] sm:$0xff] %v3661
      %3764 = vst [vmem:[%s165 + $0x48] sm:$0xff] %v3664
      %3765 = vst [vmem:[%s165 + $0x50] sm:$0xff] %v3669
      %3766 = vst [vmem:[%s165 + $0x58] sm:$0xff] %v3672
      %3767 = vst [vmem:[%s165 + $0x60] sm:$0xff] %v3677
      %3768 = vst [vmem:[%s165 + $0x68] sm:$0xff] %v3680
      %3769 = vst [vmem:[%s165 + $0x70] sm:$0xff] %v3685
      %3770 = vst [vmem:[%s165 + $0x78] sm:$0xff] %v3688
      %3771 = vst [vmem:[%s165 + $0x80] sm:$0xff] %v3693
      %3772 = vst [vmem:[%s165 + $0x88] sm:$0xff] %v3696
      %3773 = vst [vmem:[%s165 + $0x90] sm:$0xff] %v3701
      %3774 = vst [vmem:[%s165 + $0x98] sm:$0xff] %v3704
      %3775 = vst [vmem:[%s165 + $0xa0] sm:$0xff] %v3709
      %3776 = vst [vmem:[%s165 + $0xa8] sm:$0xff] %v3712
      %3777 = vst [vmem:[%s165 + $0xb0] sm:$0xff] %v3717
      %3778 = vst [vmem:[%s165 + $0xb8] sm:$0xff] %v3720
      %3779 = vst [vmem:[%s165 + $0xc0] sm:$0xff] %v3725
      %3780 = vst [vmem:[%s165 + $0xc8] sm:$0xff] %v3728
      %3781 = vst [vmem:[%s165 + $0xd0] sm:$0xff] %v3733
      %3782 = vst [vmem:[%s165 + $0xd8] sm:$0xff] %v3736
      %3783 = vst [vmem:[%s165 + $0xe0] sm:$0xff] %v3741
      %3784 = vst [vmem:[%s165 + $0xe8] sm:$0xff] %v3744
      %3785 = vst [vmem:[%s165 + $0xf0] sm:$0xff] %v3749
      %3786 = vst [vmem:[%s165 + $0xf8] sm:$0xff] %v3752
      %s3787 = smul.u32 32, %s18
      %p3788 = scmp.lt.s32.totalorder %s17, 1
      %s3789 = scalar_select %p3788, %s17, 1
      %p3790 = scmp.lt.s32.totalorder %s3787, 31
      %s3791 = scalar_select %p3790, %s3787, 31
      %s3792 = smul.addr %s3789, 32
      %s3793 = sadd.s32 %s3791, %s3792
      %s3794 = smul.addr %s3793, 8
      %s3795 = scalar_lea.vmem %s2, %s3794
      // Predicated region
      $region37: #{upsample_forward.1} parent=27 // pred_check
        %p3796 = pneg %p92
      $region38: #{upsample_forward.1} parent=27 // pred_check_branch
        %3798 = sbr.rel (%p3796) target = $region40
      $region39: #{upsample_forward.1} parent=27 // pred_region
        %s3799 = smul.u32 32, %s18
      $region40: #{upsample_forward.1} parent=27 // pred_fallthru
        _
    $region28: #{upsample_forward.1} parent=5 // pred_fallthru
      _
    %p3800 = scmp.le.s32.totalorder 2, %s8
    // Predicated region
    $region41: #{upsample_forward.1} parent=5 // pred_check
      %p3801 = pneg %p3800
    $region42: #{upsample_forward.1} parent=5 // pred_check_branch
      %3803 = sbr.rel (%p3801) target = $region44
    $region43: #{upsample_forward.1} parent=5 // pred_region
      %s3804 = ssub.s32 %s8, 2
      // Predicated region
      $region45: #{upsample_forward.1} parent=43 // pred_check
        %p3805 = pneg %p98
      $region46: #{upsample_forward.1} parent=43 // pred_check_branch
        %3807 = sbr.rel (%p3805) target = $region48
      $region47: #{upsample_forward.1} parent=43 // pred_region
        %s3808 = smul.u32 32, %s20
        %p3809 = scmp.lt.s32.totalorder %s19, 1
        %s3810 = scalar_select %p3809, %s19, 1
        %p3811 = scmp.lt.s32.totalorder %s3808, 31
        %s3812 = scalar_select %p3811, %s3808, 31
        %s3813 = smul.addr %s3810, 32
        %s3814 = sadd.s32 %s3812, %s3813
        %s3815 = smul.addr %s3814, 8
        %s3816 = scalar_lea.vmem %s2, %s3815
      $region48: #{upsample_forward.1} parent=43 // pred_fallthru
        _
    $region44: #{upsample_forward.1} parent=5 // pred_fallthru
      _
  $region6: #{upsample_forward.1} parent=0 // loop_footer
    %s12 = sadd.s32 1, %s8
  $region7: #{upsample_forward.1} parent=0 // loop_footer_branch
    %7 = sbr.rel target = $region3
  $region8: #{upsample_forward.1} parent=0 // loop_exit
    _

</llo_original>
